<compile_context>
chip_gen: v7x
topology: tpu7x:2x2x1
jax: 0.10.0
libtpu: 0.0.40
codegen_flags: <defaults>
</compile_context>

<pallas_src>
import jax
import jax.numpy as jnp
from jax.experimental import pallas as pl
from jax.experimental.pallas import tpu as pltpu

KSIZE = 7
PAD = (KSIZE - 1) // 2


def _cbam_fused_kernel(x_ref, w1_ref, b1_ref, w2_ref, b2_ref, convw_ref,
                       bn_ref, out_ref, pad_ref):
    """Fused ChannelGate + SpatialGate (ChannelPool, 7x7 conv, BN, sigmoid)."""
    x = x_ref[...]                                          # (B, C, HW) f32
    B, C, HW = x.shape
    Hpad, Wpad = pad_ref.shape[1], pad_ref.shape[2]
    H, W = Hpad - 2 * PAD, Wpad - 2 * PAD

    # ---- ChannelGate: global avg / max pool over HW (lane reduce) ----------
    avg_p = jnp.mean(x, axis=2)                             # (B, C)
    max_p = jnp.max(x, axis=2)                              # (B, C)
    pools = jnp.concatenate([avg_p, max_p], axis=0)         # (2B, C)

    # Shared MLP: Linear(C -> C//r) -> ReLU -> Linear(C//r -> C), applied to
    # all B avg-pools and all B max-pools in two dots total.
    h = jnp.maximum(
        jnp.dot(pools, w1_ref[...], preferred_element_type=jnp.float32)
        + b1_ref[...], 0.0)                                 # (2B, Cr)
    o = (jnp.dot(h, w2_ref[...], preferred_element_type=jnp.float32)
         + b2_ref[...])                                     # (2B, C)
    att = o[:B] + o[B:]                                     # avg + max branch
    scale_c = jax.nn.sigmoid(att)                           # (B, C)

    x_cg = x * scale_c[:, :, None]                          # (B, C, HW)

    # ---- ChannelPool: [max over C ; mean over C] -> padded conv slab -------
    max_c = jnp.max(x_cg, axis=1).reshape(B, H, W)          # (B, H, W)
    mean_c = jnp.mean(x_cg, axis=1).reshape(B, H, W)        # (B, H, W)

    pad_ref[...] = jnp.zeros_like(pad_ref)                  # halo zero (once)
    pad_ref[0:B, PAD:PAD + H, PAD:PAD + W] = max_c
    pad_ref[B:2 * B, PAD:PAD + H, PAD:PAD + W] = mean_c

    # ---- 7x7 conv (2 -> 1 channel, bias=False), "same" padding -------------
    # All B images per tap; row slice hoisted out of the column loop.
    acc = jnp.zeros((B, H, W), jnp.float32)
    for i in range(KSIZE):
        row_max = pad_ref[0:B, i:i + H, :]                  # (B, H, Wpad)
        row_mean = pad_ref[B:2 * B, i:i + H, :]             # (B, H, Wpad)
        for j in range(KSIZE):
            w_max = convw_ref[i * KSIZE + j]                # SMEM scalars
            w_mean = convw_ref[KSIZE * KSIZE + i * KSIZE + j]
            acc = (acc
                   + row_max[:, :, j:j + W] * w_max
                   + row_mean[:, :, j:j + W] * w_mean)

    # ---- BatchNorm2d (training-mode batch stats) + sigmoid spatial gate ----
    gamma, beta, eps = bn_ref[0], bn_ref[1], bn_ref[2]
    mean = jnp.mean(acc)
    var = jnp.mean((acc - mean) ** 2)                       # biased variance
    inv = jax.lax.rsqrt(var + eps) * gamma
    scale_s = jax.nn.sigmoid((acc - mean) * inv + beta)     # (B, H, W)

    # Lane-dense final gate multiply + unmasked store.
    out_ref[...] = x_cg * scale_s.reshape(B, 1, HW)


def cbam_forward(x, params):
    B, C, H, W = x.shape
    HW = H * W
    x2 = x.reshape(B, C, HW)

    # Pre-transpose the Linear weights so the kernel does plain row-major dots.
    w1t = params["w1"].T                    # (C, Cr)
    b1 = params["b1"].reshape(1, -1)        # (1, Cr)
    w2t = params["w2"].T                    # (Cr, C)
    b2 = params["b2"].reshape(1, -1)        # (1, C)
    conv_w = params["conv_w"]               # (2*7*7,)
    bn = params["bn"]                       # (gamma, beta, eps)
    Cr = w1t.shape[1]

    fused = pl.pallas_call(
        _cbam_fused_kernel,
        out_shape=jax.ShapeDtypeStruct((B, C, HW), jnp.float32),
        grid=(1,),
        in_specs=[
            pl.BlockSpec((B, C, HW), lambda i: (0, 0, 0)),
            pl.BlockSpec((C, Cr), lambda i: (0, 0)),
            pl.BlockSpec((1, Cr), lambda i: (0, 0)),
            pl.BlockSpec((Cr, C), lambda i: (0, 0)),
            pl.BlockSpec((1, C), lambda i: (0, 0)),
            pl.BlockSpec(memory_space=pltpu.MemorySpace.SMEM),
            pl.BlockSpec(memory_space=pltpu.MemorySpace.SMEM),
        ],
        out_specs=pl.BlockSpec((B, C, HW), lambda i: (0, 0, 0)),
        scratch_shapes=[
            pltpu.VMEM((2 * B, H + 2 * PAD, W + 2 * PAD), jnp.float32)],
        compiler_params=pltpu.CompilerParams(
            dimension_semantics=("arbitrary",)),
    )
    out2 = fused(x2, w1t, b1, w2t, b2, conv_w, bn)
    return out2.reshape(B, C, H, W)


def cbam_reference(x, params):
    """Pure-JAX reference of the PyTorch CBAM forward (train-mode BN)."""
    w1, b1, w2, b2 = params["w1"], params["b1"], params["w2"], params["b2"]
    conv_w = params["conv_w"].reshape(1, 2, KSIZE, KSIZE)
    gamma, beta, eps = params["bn"]

    avg = jnp.mean(x, axis=(2, 3))
    mx = jnp.max(x, axis=(2, 3))

    def mlp(p):
        h = jnp.maximum(p @ w1.T + b1.reshape(1, -1), 0.0)
        return h @ w2.T + b2.reshape(1, -1)

    att = mlp(avg) + mlp(mx)
    x_cg = x * jax.nn.sigmoid(att)[:, :, None, None]

    pooled = jnp.concatenate(
        [jnp.max(x_cg, axis=1, keepdims=True),
         jnp.mean(x_cg, axis=1, keepdims=True)], axis=1)
    conv = jax.lax.conv_general_dilated(
        pooled, conv_w, window_strides=(1, 1),
        padding=[(PAD, PAD), (PAD, PAD)],
        dimension_numbers=("NCHW", "OIHW", "NCHW"))
    m = jnp.mean(conv)
    v = jnp.mean((conv - m) ** 2)
    norm = (conv - m) / jnp.sqrt(v + eps) * gamma + beta
    return x_cg * jax.nn.sigmoid(norm)


if __name__ == "__main__":
    B, C, H, W = 2, 32, 16, 16          # gate_channels=32, reduction_ratio=16
    reduction = 16
    Cr = C // reduction

    key = jax.random.PRNGKey(0)
    kx, k1, k2, k3, k4, k5 = jax.random.split(key, 6)
    x = jax.random.normal(kx, (B, C, H, W), jnp.float32)

    params = {
        # nn.Linear(C, C//r) / nn.Linear(C//r, C): weights (out, in), biases (out, 1)
        "w1": jax.random.normal(k1, (Cr, C), jnp.float32) * 0.2,
        "b1": jax.random.normal(k2, (Cr, 1), jnp.float32) * 0.1,
        "w2": jax.random.normal(k3, (C, Cr), jnp.float32) * 0.2,
        "b2": jax.random.normal(k4, (C, 1), jnp.float32) * 0.1,
        # nn.Conv2d(2, 1, 7, padding=3, bias=False): weight (1, 2, 7, 7), flattened
        "conv_w": (jax.random.normal(k5, (1, 2, KSIZE, KSIZE), jnp.float32)
                   * 0.1).reshape(-1),
        # BatchNorm2d(1) affine params at default init (gamma=1, beta=0) + eps.
        # TODO(synk): running-stat updates of BN (a training side effect) are
        # not reproduced; they do not affect the forward output.
        "bn": jnp.array([1.0, 0.0, 1e-5], jnp.float32),
    }

    out = jax.block_until_ready(cbam_forward(x, params))
    ref = cbam_reference(x, params)
    assert out.shape == x.shape and out.dtype == x.dtype
    assert jnp.allclose(out, ref, rtol=1e-4, atol=1e-5), float(
        jnp.max(jnp.abs(out - ref)))
    print("KERNEL_OK")
</pallas_src>

<mosaic_0001>
module attributes {stable_mosaic.version = 11 : i64} {
  func.func @_cbam_fused_kernel(%arg0: i32, %arg1: memref<2x32x256xf32, #tpu.memory_space<vmem>>, %arg2: memref<32x2xf32, #tpu.memory_space<vmem>>, %arg3: memref<1x2xf32, #tpu.memory_space<vmem>>, %arg4: memref<2x32xf32, #tpu.memory_space<vmem>>, %arg5: memref<1x32xf32, #tpu.memory_space<vmem>>, %arg6: memref<98xf32, #tpu.memory_space<smem>>, %arg7: memref<3xf32, #tpu.memory_space<smem>>, %arg8: memref<2x32x256xf32, #tpu.memory_space<vmem>>, %arg9: memref<4x22x22xf32, #tpu.memory_space<vmem>>) attributes {dimension_semantics = [#tpu.dimension_semantics<arbitrary>], iteration_bounds = array<i64: 1>, scalar_prefetch = 0 : i64, scratch_operands = 1 : i64, tpu.core_type = #tpu.core_type<tc>, window_params = [{pipeline_mode = #tpu.pipeline_mode<synchronous>, transform_indices = @transform_0, window_bounds = array<i64: 2, 32, 256>}, {pipeline_mode = #tpu.pipeline_mode<synchronous>, transform_indices = @transform_1, window_bounds = array<i64: 32, 2>}, {pipeline_mode = #tpu.pipeline_mode<synchronous>, transform_indices = @transform_2, window_bounds = array<i64: 1, 2>}, {pipeline_mode = #tpu.pipeline_mode<synchronous>, transform_indices = @transform_3, window_bounds = array<i64: 2, 32>}, {pipeline_mode = #tpu.pipeline_mode<synchronous>, transform_indices = @transform_4, window_bounds = array<i64: 1, 32>}, {transform_indices = @transform_5, window_bounds = array<i64: 98>}, {transform_indices = @transform_6, window_bounds = array<i64: 3>}, {pipeline_mode = #tpu.pipeline_mode<synchronous>, transform_indices = @transform_7, window_bounds = array<i64: 2, 32, 256>}]} {
    %c0 = arith.constant 0 : index
    %c0_0 = arith.constant 0 : index
    %c0_1 = arith.constant 0 : index
    %0 = vector.load %arg1[%c0, %c0_0, %c0_1] : memref<2x32x256xf32, #tpu.memory_space<vmem>>, vector<2x32x256xf32>
    %cst = arith.constant dense<0.000000e+00> : vector<2x32xf32>
    %1 = vector.multi_reduction <add>, %0, %cst [2] : vector<2x32x256xf32> to vector<2x32xf32>
    %cst_2 = arith.constant 2.560000e+02 : f32
    %2 = vector.broadcast %cst_2 : f32 to vector<2x32xf32>
    %3 = arith.divf %1, %2 : vector<2x32xf32>
    %cst_3 = arith.constant dense<0xFF800000> : vector<2x32xf32>
    %4 = vector.multi_reduction <maximumf>, %0, %cst_3 [2] : vector<2x32x256xf32> to vector<2x32xf32>
    %5 = tpu.concatenate %3, %4 in 0 : vector<2x32xf32>, vector<2x32xf32> -> vector<4x32xf32>
    %c0_4 = arith.constant 0 : index
    %c0_5 = arith.constant 0 : index
    %6 = vector.load %arg2[%c0_4, %c0_5] : memref<32x2xf32, #tpu.memory_space<vmem>>, vector<32x2xf32>
    %cst_6 = arith.constant dense<0.000000e+00> : vector<4x2xf32>
    %7 = tpu.matmul %5, %6, %cst_6 {dimension_numbers = #tpu.dot_dimension_numbers<[1], [0], [0], [1], [0, 0, 1, 1], [], []>} : vector<4x32xf32>, vector<32x2xf32>, vector<4x2xf32> -> vector<4x2xf32>
    %c0_7 = arith.constant 0 : index
    %c0_8 = arith.constant 0 : index
    %8 = vector.load %arg3[%c0_7, %c0_8] : memref<1x2xf32, #tpu.memory_space<vmem>>, vector<1x2xf32>
    %9 = vector.broadcast %8 : vector<1x2xf32> to vector<4x2xf32>
    %10 = arith.addf %7, %9 : vector<4x2xf32>
    %cst_9 = arith.constant 0.000000e+00 : f32
    %11 = vector.broadcast %cst_9 : f32 to vector<4x2xf32>
    %12 = arith.maximumf %10, %11 : vector<4x2xf32>
    %c0_10 = arith.constant 0 : index
    %c0_11 = arith.constant 0 : index
    %13 = vector.load %arg4[%c0_10, %c0_11] : memref<2x32xf32, #tpu.memory_space<vmem>>, vector<2x32xf32>
    %cst_12 = arith.constant dense<0.000000e+00> : vector<4x32xf32>
    %14 = tpu.matmul %12, %13, %cst_12 {dimension_numbers = #tpu.dot_dimension_numbers<[1], [0], [0], [1], [0, 0, 1, 1], [], []>} : vector<4x2xf32>, vector<2x32xf32>, vector<4x32xf32> -> vector<4x32xf32>
    %c0_13 = arith.constant 0 : index
    %c0_14 = arith.constant 0 : index
    %15 = vector.load %arg5[%c0_13, %c0_14] : memref<1x32xf32, #tpu.memory_space<vmem>>, vector<1x32xf32>
    %16 = vector.broadcast %15 : vector<1x32xf32> to vector<4x32xf32>
    %17 = arith.addf %14, %16 : vector<4x32xf32>
    %18 = vector.extract_strided_slice %17 {offsets = [0, 0], sizes = [2, 32], strides = [1, 1]} : vector<4x32xf32> to vector<2x32xf32>
    %19 = vector.extract_strided_slice %17 {offsets = [2, 0], sizes = [2, 32], strides = [1, 1]} : vector<4x32xf32> to vector<2x32xf32>
    %20 = arith.addf %18, %19 : vector<2x32xf32>
    %21 = arith.negf %20 : vector<2x32xf32>
    %22 = math.exp %21 : vector<2x32xf32>
    %cst_15 = arith.constant 1.000000e+00 : f32
    %23 = vector.broadcast %cst_15 : f32 to vector<2x32xf32>
    %24 = arith.addf %23, %22 : vector<2x32xf32>
    %25 = arith.divf %23, %24 : vector<2x32xf32>
    %26 = vector.shape_cast %25 : vector<2x32xf32> to vector<2x32x1xf32>
    %27 = vector.broadcast %26 : vector<2x32x1xf32> to vector<2x32x256xf32>
    %28 = arith.mulf %0, %27 : vector<2x32x256xf32>
    %cst_16 = arith.constant dense<0xFF800000> : vector<2x256xf32>
    %29 = vector.multi_reduction <maximumf>, %28, %cst_16 [1] : vector<2x32x256xf32> to vector<2x256xf32>
    %30 = vector.shape_cast %29 : vector<2x256xf32> to vector<2x16x16xf32>
    %cst_17 = arith.constant dense<0.000000e+00> : vector<2x256xf32>
    %31 = vector.multi_reduction <add>, %28, %cst_17 [1] : vector<2x32x256xf32> to vector<2x256xf32>
    %cst_18 = arith.constant 3.200000e+01 : f32
    %32 = vector.broadcast %cst_18 : f32 to vector<2x256xf32>
    %33 = arith.divf %31, %32 : vector<2x256xf32>
    %34 = vector.shape_cast %33 : vector<2x256xf32> to vector<2x16x16xf32>
    %cst_19 = arith.constant 0.000000e+00 : f32
    %35 = vector.broadcast %cst_19 : f32 to vector<4x22x22xf32>
    %c0_20 = arith.constant 0 : index
    %c0_21 = arith.constant 0 : index
    %c0_22 = arith.constant 0 : index
    %36 = vector.load %arg9[%c0_20, %c0_21, %c0_22] : memref<4x22x22xf32, #tpu.memory_space<vmem>>, vector<4x22x22xf32>
    tpu.vector_store %arg9[%c0_20, %c0_21, %c0_22], %35 {strides = array<i32>} : memref<4x22x22xf32, #tpu.memory_space<vmem>>, vector<4x22x22xf32>,
    %c0_23 = arith.constant 0 : index
    %c3 = arith.constant 3 : index
    %c3_24 = arith.constant 3 : index
    %37 = vector.load %arg9[%c0_23, %c3, %c3_24] : memref<4x22x22xf32, #tpu.memory_space<vmem>>, vector<2x16x16xf32>
    tpu.vector_store %arg9[%c0_23, %c3, %c3_24], %30 {strides = array<i32>} : memref<4x22x22xf32, #tpu.memory_space<vmem>>, vector<2x16x16xf32>,
    %c2 = arith.constant 2 : index
    %c3_25 = arith.constant 3 : index
    %c3_26 = arith.constant 3 : index
    %38 = vector.load %arg9[%c2, %c3_25, %c3_26] : memref<4x22x22xf32, #tpu.memory_space<vmem>>, vector<2x16x16xf32>
    tpu.vector_store %arg9[%c2, %c3_25, %c3_26], %34 {strides = array<i32>} : memref<4x22x22xf32, #tpu.memory_space<vmem>>, vector<2x16x16xf32>,
    %cst_27 = arith.constant 0.000000e+00 : f32
    %39 = vector.broadcast %cst_27 : f32 to vector<2x16x16xf32>
    %c0_28 = arith.constant 0 : index
    %c0_29 = arith.constant 0 : index
    %c0_30 = arith.constant 0 : index
    %40 = vector.load %arg9[%c0_28, %c0_29, %c0_30] : memref<4x22x22xf32, #tpu.memory_space<vmem>>, vector<2x16x22xf32>
    %c2_31 = arith.constant 2 : index
    %c0_32 = arith.constant 0 : index
    %c0_33 = arith.constant 0 : index
    %41 = vector.load %arg9[%c2_31, %c0_32, %c0_33] : memref<4x22x22xf32, #tpu.memory_space<vmem>>, vector<2x16x22xf32>
    %c0_34 = arith.constant 0 : index
    %42 = memref.load %arg6[%c0_34] : memref<98xf32, #tpu.memory_space<smem>>
    %c49 = arith.constant 49 : index
    %43 = memref.load %arg6[%c49] : memref<98xf32, #tpu.memory_space<smem>>
    %44 = vector.extract_strided_slice %40 {offsets = [0, 0, 0], sizes = [2, 16, 16], strides = [1, 1, 1]} : vector<2x16x22xf32> to vector<2x16x16xf32>
    %45 = vector.broadcast %42 : f32 to vector<2x16x16xf32>
    %46 = arith.mulf %44, %45 : vector<2x16x16xf32>
    %47 = arith.addf %39, %46 : vector<2x16x16xf32>
    %48 = vector.extract_strided_slice %41 {offsets = [0, 0, 0], sizes = [2, 16, 16], strides = [1, 1, 1]} : vector<2x16x22xf32> to vector<2x16x16xf32>
    %49 = vector.broadcast %43 : f32 to vector<2x16x16xf32>
    %50 = arith.mulf %48, %49 : vector<2x16x16xf32>
    %51 = arith.addf %47, %50 : vector<2x16x16xf32>
    %c1 = arith.constant 1 : index
    %52 = memref.load %arg6[%c1] : memref<98xf32, #tpu.memory_space<smem>>
    %c50 = arith.constant 50 : index
    %53 = memref.load %arg6[%c50] : memref<98xf32, #tpu.memory_space<smem>>
    %54 = vector.extract_strided_slice %40 {offsets = [0, 0, 1], sizes = [2, 16, 16], strides = [1, 1, 1]} : vector<2x16x22xf32> to vector<2x16x16xf32>
    %55 = vector.broadcast %52 : f32 to vector<2x16x16xf32>
    %56 = arith.mulf %54, %55 : vector<2x16x16xf32>
    %57 = arith.addf %51, %56 : vector<2x16x16xf32>
    %58 = vector.extract_strided_slice %41 {offsets = [0, 0, 1], sizes = [2, 16, 16], strides = [1, 1, 1]} : vector<2x16x22xf32> to vector<2x16x16xf32>
    %59 = vector.broadcast %53 : f32 to vector<2x16x16xf32>
    %60 = arith.mulf %58, %59 : vector<2x16x16xf32>
    %61 = arith.addf %57, %60 : vector<2x16x16xf32>
    %c2_35 = arith.constant 2 : index
    %62 = memref.load %arg6[%c2_35] : memref<98xf32, #tpu.memory_space<smem>>
    %c51 = arith.constant 51 : index
    %63 = memref.load %arg6[%c51] : memref<98xf32, #tpu.memory_space<smem>>
    %64 = vector.extract_strided_slice %40 {offsets = [0, 0, 2], sizes = [2, 16, 16], strides = [1, 1, 1]} : vector<2x16x22xf32> to vector<2x16x16xf32>
    %65 = vector.broadcast %62 : f32 to vector<2x16x16xf32>
    %66 = arith.mulf %64, %65 : vector<2x16x16xf32>
    %67 = arith.addf %61, %66 : vector<2x16x16xf32>
    %68 = vector.extract_strided_slice %41 {offsets = [0, 0, 2], sizes = [2, 16, 16], strides = [1, 1, 1]} : vector<2x16x22xf32> to vector<2x16x16xf32>
    %69 = vector.broadcast %63 : f32 to vector<2x16x16xf32>
    %70 = arith.mulf %68, %69 : vector<2x16x16xf32>
    %71 = arith.addf %67, %70 : vector<2x16x16xf32>
    %c3_36 = arith.constant 3 : index
    %72 = memref.load %arg6[%c3_36] : memref<98xf32, #tpu.memory_space<smem>>
    %c52 = arith.constant 52 : index
    %73 = memref.load %arg6[%c52] : memref<98xf32, #tpu.memory_space<smem>>
    %74 = vector.extract_strided_slice %40 {offsets = [0, 0, 3], sizes = [2, 16, 16], strides = [1, 1, 1]} : vector<2x16x22xf32> to vector<2x16x16xf32>
    %75 = vector.broadcast %72 : f32 to vector<2x16x16xf32>
    %76 = arith.mulf %74, %75 : vector<2x16x16xf32>
    %77 = arith.addf %71, %76 : vector<2x16x16xf32>
    %78 = vector.extract_strided_slice %41 {offsets = [0, 0, 3], sizes = [2, 16, 16], strides = [1, 1, 1]} : vector<2x16x22xf32> to vector<2x16x16xf32>
    %79 = vector.broadcast %73 : f32 to vector<2x16x16xf32>
    %80 = arith.mulf %78, %79 : vector<2x16x16xf32>
    %81 = arith.addf %77, %80 : vector<2x16x16xf32>
    %c4 = arith.constant 4 : index
    %82 = memref.load %arg6[%c4] : memref<98xf32, #tpu.memory_space<smem>>
    %c53 = arith.constant 53 : index
    %83 = memref.load %arg6[%c53] : memref<98xf32, #tpu.memory_space<smem>>
    %84 = vector.extract_strided_slice %40 {offsets = [0, 0, 4], sizes = [2, 16, 16], strides = [1, 1, 1]} : vector<2x16x22xf32> to vector<2x16x16xf32>
    %85 = vector.broadcast %82 : f32 to vector<2x16x16xf32>
    %86 = arith.mulf %84, %85 : vector<2x16x16xf32>
    %87 = arith.addf %81, %86 : vector<2x16x16xf32>
    %88 = vector.extract_strided_slice %41 {offsets = [0, 0, 4], sizes = [2, 16, 16], strides = [1, 1, 1]} : vector<2x16x22xf32> to vector<2x16x16xf32>
    %89 = vector.broadcast %83 : f32 to vector<2x16x16xf32>
    %90 = arith.mulf %88, %89 : vector<2x16x16xf32>
    %91 = arith.addf %87, %90 : vector<2x16x16xf32>
    %c5 = arith.constant 5 : index
    %92 = memref.load %arg6[%c5] : memref<98xf32, #tpu.memory_space<smem>>
    %c54 = arith.constant 54 : index
    %93 = memref.load %arg6[%c54] : memref<98xf32, #tpu.memory_space<smem>>
    %94 = vector.extract_strided_slice %40 {offsets = [0, 0, 5], sizes = [2, 16, 16], strides = [1, 1, 1]} : vector<2x16x22xf32> to vector<2x16x16xf32>
    %95 = vector.broadcast %92 : f32 to vector<2x16x16xf32>
    %96 = arith.mulf %94, %95 : vector<2x16x16xf32>
    %97 = arith.addf %91, %96 : vector<2x16x16xf32>
    %98 = vector.extract_strided_slice %41 {offsets = [0, 0, 5], sizes = [2, 16, 16], strides = [1, 1, 1]} : vector<2x16x22xf32> to vector<2x16x16xf32>
    %99 = vector.broadcast %93 : f32 to vector<2x16x16xf32>
    %100 = arith.mulf %98, %99 : vector<2x16x16xf32>
    %101 = arith.addf %97, %100 : vector<2x16x16xf32>
    %c6 = arith.constant 6 : index
    %102 = memref.load %arg6[%c6] : memref<98xf32, #tpu.memory_space<smem>>
    %c55 = arith.constant 55 : index
    %103 = memref.load %arg6[%c55] : memref<98xf32, #tpu.memory_space<smem>>
    %104 = vector.extract_strided_slice %40 {offsets = [0, 0, 6], sizes = [2, 16, 16], strides = [1, 1, 1]} : vector<2x16x22xf32> to vector<2x16x16xf32>
    %105 = vector.broadcast %102 : f32 to vector<2x16x16xf32>
    %106 = arith.mulf %104, %105 : vector<2x16x16xf32>
    %107 = arith.addf %101, %106 : vector<2x16x16xf32>
    %108 = vector.extract_strided_slice %41 {offsets = [0, 0, 6], sizes = [2, 16, 16], strides = [1, 1, 1]} : vector<2x16x22xf32> to vector<2x16x16xf32>
    %109 = vector.broadcast %103 : f32 to vector<2x16x16xf32>
    %110 = arith.mulf %108, %109 : vector<2x16x16xf32>
    %111 = arith.addf %107, %110 : vector<2x16x16xf32>
    %c0_37 = arith.constant 0 : index
    %c1_38 = arith.constant 1 : index
    %c0_39 = arith.constant 0 : index
    %112 = vector.load %arg9[%c0_37, %c1_38, %c0_39] : memref<4x22x22xf32, #tpu.memory_space<vmem>>, vector<2x16x22xf32>
    %c2_40 = arith.constant 2 : index
    %c1_41 = arith.constant 1 : index
    %c0_42 = arith.constant 0 : index
    %113 = vector.load %arg9[%c2_40, %c1_41, %c0_42] : memref<4x22x22xf32, #tpu.memory_space<vmem>>, vector<2x16x22xf32>
    %c7 = arith.constant 7 : index
    %114 = memref.load %arg6[%c7] : memref<98xf32, #tpu.memory_space<smem>>
    %c56 = arith.constant 56 : index
    %115 = memref.load %arg6[%c56] : memref<98xf32, #tpu.memory_space<smem>>
    %116 = vector.extract_strided_slice %112 {offsets = [0, 0, 0], sizes = [2, 16, 16], strides = [1, 1, 1]} : vector<2x16x22xf32> to vector<2x16x16xf32>
    %117 = vector.broadcast %114 : f32 to vector<2x16x16xf32>
    %118 = arith.mulf %116, %117 : vector<2x16x16xf32>
    %119 = arith.addf %111, %118 : vector<2x16x16xf32>
    %120 = vector.extract_strided_slice %113 {offsets = [0, 0, 0], sizes = [2, 16, 16], strides = [1, 1, 1]} : vector<2x16x22xf32> to vector<2x16x16xf32>
    %121 = vector.broadcast %115 : f32 to vector<2x16x16xf32>
    %122 = arith.mulf %120, %121 : vector<2x16x16xf32>
    %123 = arith.addf %119, %122 : vector<2x16x16xf32>
    %c8 = arith.constant 8 : index
    %124 = memref.load %arg6[%c8] : memref<98xf32, #tpu.memory_space<smem>>
    %c57 = arith.constant 57 : index
    %125 = memref.load %arg6[%c57] : memref<98xf32, #tpu.memory_space<smem>>
    %126 = vector.extract_strided_slice %112 {offsets = [0, 0, 1], sizes = [2, 16, 16], strides = [1, 1, 1]} : vector<2x16x22xf32> to vector<2x16x16xf32>
    %127 = vector.broadcast %124 : f32 to vector<2x16x16xf32>
    %128 = arith.mulf %126, %127 : vector<2x16x16xf32>
    %129 = arith.addf %123, %128 : vector<2x16x16xf32>
    %130 = vector.extract_strided_slice %113 {offsets = [0, 0, 1], sizes = [2, 16, 16], strides = [1, 1, 1]} : vector<2x16x22xf32> to vector<2x16x16xf32>
    %131 = vector.broadcast %125 : f32 to vector<2x16x16xf32>
    %132 = arith.mulf %130, %131 : vector<2x16x16xf32>
    %133 = arith.addf %129, %132 : vector<2x16x16xf32>
    %c9 = arith.constant 9 : index
    %134 = memref.load %arg6[%c9] : memref<98xf32, #tpu.memory_space<smem>>
    %c58 = arith.constant 58 : index
    %135 = memref.load %arg6[%c58] : memref<98xf32, #tpu.memory_space<smem>>
    %136 = vector.extract_strided_slice %112 {offsets = [0, 0, 2], sizes = [2, 16, 16], strides = [1, 1, 1]} : vector<2x16x22xf32> to vector<2x16x16xf32>
    %137 = vector.broadcast %134 : f32 to vector<2x16x16xf32>
    %138 = arith.mulf %136, %137 : vector<2x16x16xf32>
    %139 = arith.addf %133, %138 : vector<2x16x16xf32>
    %140 = vector.extract_strided_slice %113 {offsets = [0, 0, 2], sizes = [2, 16, 16], strides = [1, 1, 1]} : vector<2x16x22xf32> to vector<2x16x16xf32>
    %141 = vector.broadcast %135 : f32 to vector<2x16x16xf32>
    %142 = arith.mulf %140, %141 : vector<2x16x16xf32>
    %143 = arith.addf %139, %142 : vector<2x16x16xf32>
    %c10 = arith.constant 10 : index
    %144 = memref.load %arg6[%c10] : memref<98xf32, #tpu.memory_space<smem>>
    %c59 = arith.constant 59 : index
    %145 = memref.load %arg6[%c59] : memref<98xf32, #tpu.memory_space<smem>>
    %146 = vector.extract_strided_slice %112 {offsets = [0, 0, 3], sizes = [2, 16, 16], strides = [1, 1, 1]} : vector<2x16x22xf32> to vector<2x16x16xf32>
    %147 = vector.broadcast %144 : f32 to vector<2x16x16xf32>
    %148 = arith.mulf %146, %147 : vector<2x16x16xf32>
    %149 = arith.addf %143, %148 : vector<2x16x16xf32>
    %150 = vector.extract_strided_slice %113 {offsets = [0, 0, 3], sizes = [2, 16, 16], strides = [1, 1, 1]} : vector<2x16x22xf32> to vector<2x16x16xf32>
    %151 = vector.broadcast %145 : f32 to vector<2x16x16xf32>
    %152 = arith.mulf %150, %151 : vector<2x16x16xf32>
    %153 = arith.addf %149, %152 : vector<2x16x16xf32>
    %c11 = arith.constant 11 : index
    %154 = memref.load %arg6[%c11] : memref<98xf32, #tpu.memory_space<smem>>
    %c60 = arith.constant 60 : index
    %155 = memref.load %arg6[%c60] : memref<98xf32, #tpu.memory_space<smem>>
    %156 = vector.extract_strided_slice %112 {offsets = [0, 0, 4], sizes = [2, 16, 16], strides = [1, 1, 1]} : vector<2x16x22xf32> to vector<2x16x16xf32>
    %157 = vector.broadcast %154 : f32 to vector<2x16x16xf32>
    %158 = arith.mulf %156, %157 : vector<2x16x16xf32>
    %159 = arith.addf %153, %158 : vector<2x16x16xf32>
    %160 = vector.extract_strided_slice %113 {offsets = [0, 0, 4], sizes = [2, 16, 16], strides = [1, 1, 1]} : vector<2x16x22xf32> to vector<2x16x16xf32>
    %161 = vector.broadcast %155 : f32 to vector<2x16x16xf32>
    %162 = arith.mulf %160, %161 : vector<2x16x16xf32>
    %163 = arith.addf %159, %162 : vector<2x16x16xf32>
    %c12 = arith.constant 12 : index
    %164 = memref.load %arg6[%c12] : memref<98xf32, #tpu.memory_space<smem>>
    %c61 = arith.constant 61 : index
    %165 = memref.load %arg6[%c61] : memref<98xf32, #tpu.memory_space<smem>>
    %166 = vector.extract_strided_slice %112 {offsets = [0, 0, 5], sizes = [2, 16, 16], strides = [1, 1, 1]} : vector<2x16x22xf32> to vector<2x16x16xf32>
    %167 = vector.broadcast %164 : f32 to vector<2x16x16xf32>
    %168 = arith.mulf %166, %167 : vector<2x16x16xf32>
    %169 = arith.addf %163, %168 : vector<2x16x16xf32>
    %170 = vector.extract_strided_slice %113 {offsets = [0, 0, 5], sizes = [2, 16, 16], strides = [1, 1, 1]} : vector<2x16x22xf32> to vector<2x16x16xf32>
    %171 = vector.broadcast %165 : f32 to vector<2x16x16xf32>
    %172 = arith.mulf %170, %171 : vector<2x16x16xf32>
    %173 = arith.addf %169, %172 : vector<2x16x16xf32>
    %c13 = arith.constant 13 : index
    %174 = memref.load %arg6[%c13] : memref<98xf32, #tpu.memory_space<smem>>
    %c62 = arith.constant 62 : index
    %175 = memref.load %arg6[%c62] : memref<98xf32, #tpu.memory_space<smem>>
    %176 = vector.extract_strided_slice %112 {offsets = [0, 0, 6], sizes = [2, 16, 16], strides = [1, 1, 1]} : vector<2x16x22xf32> to vector<2x16x16xf32>
    %177 = vector.broadcast %174 : f32 to vector<2x16x16xf32>
    %178 = arith.mulf %176, %177 : vector<2x16x16xf32>
    %179 = arith.addf %173, %178 : vector<2x16x16xf32>
    %180 = vector.extract_strided_slice %113 {offsets = [0, 0, 6], sizes = [2, 16, 16], strides = [1, 1, 1]} : vector<2x16x22xf32> to vector<2x16x16xf32>
    %181 = vector.broadcast %175 : f32 to vector<2x16x16xf32>
    %182 = arith.mulf %180, %181 : vector<2x16x16xf32>
    %183 = arith.addf %179, %182 : vector<2x16x16xf32>
    %c0_43 = arith.constant 0 : index
    %c2_44 = arith.constant 2 : index
    %c0_45 = arith.constant 0 : index
    %184 = vector.load %arg9[%c0_43, %c2_44, %c0_45] : memref<4x22x22xf32, #tpu.memory_space<vmem>>, vector<2x16x22xf32>
    %c2_46 = arith.constant 2 : index
    %c2_47 = arith.constant 2 : index
    %c0_48 = arith.constant 0 : index
    %185 = vector.load %arg9[%c2_46, %c2_47, %c0_48] : memref<4x22x22xf32, #tpu.memory_space<vmem>>, vector<2x16x22xf32>
    %c14 = arith.constant 14 : index
    %186 = memref.load %arg6[%c14] : memref<98xf32, #tpu.memory_space<smem>>
    %c63 = arith.constant 63 : index
    %187 = memref.load %arg6[%c63] : memref<98xf32, #tpu.memory_space<smem>>
    %188 = vector.extract_strided_slice %184 {offsets = [0, 0, 0], sizes = [2, 16, 16], strides = [1, 1, 1]} : vector<2x16x22xf32> to vector<2x16x16xf32>
    %189 = vector.broadcast %186 : f32 to vector<2x16x16xf32>
    %190 = arith.mulf %188, %189 : vector<2x16x16xf32>
    %191 = arith.addf %183, %190 : vector<2x16x16xf32>
    %192 = vector.extract_strided_slice %185 {offsets = [0, 0, 0], sizes = [2, 16, 16], strides = [1, 1, 1]} : vector<2x16x22xf32> to vector<2x16x16xf32>
    %193 = vector.broadcast %187 : f32 to vector<2x16x16xf32>
    %194 = arith.mulf %192, %193 : vector<2x16x16xf32>
    %195 = arith.addf %191, %194 : vector<2x16x16xf32>
    %c15 = arith.constant 15 : index
    %196 = memref.load %arg6[%c15] : memref<98xf32, #tpu.memory_space<smem>>
    %c64 = arith.constant 64 : index
    %197 = memref.load %arg6[%c64] : memref<98xf32, #tpu.memory_space<smem>>
    %198 = vector.extract_strided_slice %184 {offsets = [0, 0, 1], sizes = [2, 16, 16], strides = [1, 1, 1]} : vector<2x16x22xf32> to vector<2x16x16xf32>
    %199 = vector.broadcast %196 : f32 to vector<2x16x16xf32>
    %200 = arith.mulf %198, %199 : vector<2x16x16xf32>
    %201 = arith.addf %195, %200 : vector<2x16x16xf32>
    %202 = vector.extract_strided_slice %185 {offsets = [0, 0, 1], sizes = [2, 16, 16], strides = [1, 1, 1]} : vector<2x16x22xf32> to vector<2x16x16xf32>
    %203 = vector.broadcast %197 : f32 to vector<2x16x16xf32>
    %204 = arith.mulf %202, %203 : vector<2x16x16xf32>
    %205 = arith.addf %201, %204 : vector<2x16x16xf32>
    %c16 = arith.constant 16 : index
    %206 = memref.load %arg6[%c16] : memref<98xf32, #tpu.memory_space<smem>>
    %c65 = arith.constant 65 : index
    %207 = memref.load %arg6[%c65] : memref<98xf32, #tpu.memory_space<smem>>
    %208 = vector.extract_strided_slice %184 {offsets = [0, 0, 2], sizes = [2, 16, 16], strides = [1, 1, 1]} : vector<2x16x22xf32> to vector<2x16x16xf32>
    %209 = vector.broadcast %206 : f32 to vector<2x16x16xf32>
    %210 = arith.mulf %208, %209 : vector<2x16x16xf32>
    %211 = arith.addf %205, %210 : vector<2x16x16xf32>
    %212 = vector.extract_strided_slice %185 {offsets = [0, 0, 2], sizes = [2, 16, 16], strides = [1, 1, 1]} : vector<2x16x22xf32> to vector<2x16x16xf32>
    %213 = vector.broadcast %207 : f32 to vector<2x16x16xf32>
    %214 = arith.mulf %212, %213 : vector<2x16x16xf32>
    %215 = arith.addf %211, %214 : vector<2x16x16xf32>
    %c17 = arith.constant 17 : index
    %216 = memref.load %arg6[%c17] : memref<98xf32, #tpu.memory_space<smem>>
    %c66 = arith.constant 66 : index
    %217 = memref.load %arg6[%c66] : memref<98xf32, #tpu.memory_space<smem>>
    %218 = vector.extract_strided_slice %184 {offsets = [0, 0, 3], sizes = [2, 16, 16], strides = [1, 1, 1]} : vector<2x16x22xf32> to vector<2x16x16xf32>
    %219 = vector.broadcast %216 : f32 to vector<2x16x16xf32>
    %220 = arith.mulf %218, %219 : vector<2x16x16xf32>
    %221 = arith.addf %215, %220 : vector<2x16x16xf32>
    %222 = vector.extract_strided_slice %185 {offsets = [0, 0, 3], sizes = [2, 16, 16], strides = [1, 1, 1]} : vector<2x16x22xf32> to vector<2x16x16xf32>
    %223 = vector.broadcast %217 : f32 to vector<2x16x16xf32>
    %224 = arith.mulf %222, %223 : vector<2x16x16xf32>
    %225 = arith.addf %221, %224 : vector<2x16x16xf32>
    %c18 = arith.constant 18 : index
    %226 = memref.load %arg6[%c18] : memref<98xf32, #tpu.memory_space<smem>>
    %c67 = arith.constant 67 : index
    %227 = memref.load %arg6[%c67] : memref<98xf32, #tpu.memory_space<smem>>
    %228 = vector.extract_strided_slice %184 {offsets = [0, 0, 4], sizes = [2, 16, 16], strides = [1, 1, 1]} : vector<2x16x22xf32> to vector<2x16x16xf32>
    %229 = vector.broadcast %226 : f32 to vector<2x16x16xf32>
    %230 = arith.mulf %228, %229 : vector<2x16x16xf32>
    %231 = arith.addf %225, %230 : vector<2x16x16xf32>
    %232 = vector.extract_strided_slice %185 {offsets = [0, 0, 4], sizes = [2, 16, 16], strides = [1, 1, 1]} : vector<2x16x22xf32> to vector<2x16x16xf32>
    %233 = vector.broadcast %227 : f32 to vector<2x16x16xf32>
    %234 = arith.mulf %232, %233 : vector<2x16x16xf32>
    %235 = arith.addf %231, %234 : vector<2x16x16xf32>
    %c19 = arith.constant 19 : index
    %236 = memref.load %arg6[%c19] : memref<98xf32, #tpu.memory_space<smem>>
    %c68 = arith.constant 68 : index
    %237 = memref.load %arg6[%c68] : memref<98xf32, #tpu.memory_space<smem>>
    %238 = vector.extract_strided_slice %184 {offsets = [0, 0, 5], sizes = [2, 16, 16], strides = [1, 1, 1]} : vector<2x16x22xf32> to vector<2x16x16xf32>
    %239 = vector.broadcast %236 : f32 to vector<2x16x16xf32>
    %240 = arith.mulf %238, %239 : vector<2x16x16xf32>
    %241 = arith.addf %235, %240 : vector<2x16x16xf32>
    %242 = vector.extract_strided_slice %185 {offsets = [0, 0, 5], sizes = [2, 16, 16], strides = [1, 1, 1]} : vector<2x16x22xf32> to vector<2x16x16xf32>
    %243 = vector.broadcast %237 : f32 to vector<2x16x16xf32>
    %244 = arith.mulf %242, %243 : vector<2x16x16xf32>
    %245 = arith.addf %241, %244 : vector<2x16x16xf32>
    %c20 = arith.constant 20 : index
    %246 = memref.load %arg6[%c20] : memref<98xf32, #tpu.memory_space<smem>>
    %c69 = arith.constant 69 : index
    %247 = memref.load %arg6[%c69] : memref<98xf32, #tpu.memory_space<smem>>
    %248 = vector.extract_strided_slice %184 {offsets = [0, 0, 6], sizes = [2, 16, 16], strides = [1, 1, 1]} : vector<2x16x22xf32> to vector<2x16x16xf32>
    %249 = vector.broadcast %246 : f32 to vector<2x16x16xf32>
    %250 = arith.mulf %248, %249 : vector<2x16x16xf32>
    %251 = arith.addf %245, %250 : vector<2x16x16xf32>
    %252 = vector.extract_strided_slice %185 {offsets = [0, 0, 6], sizes = [2, 16, 16], strides = [1, 1, 1]} : vector<2x16x22xf32> to vector<2x16x16xf32>
    %253 = vector.broadcast %247 : f32 to vector<2x16x16xf32>
    %254 = arith.mulf %252, %253 : vector<2x16x16xf32>
    %255 = arith.addf %251, %254 : vector<2x16x16xf32>
    %c0_49 = arith.constant 0 : index
    %c3_50 = arith.constant 3 : index
    %c0_51 = arith.constant 0 : index
    %256 = vector.load %arg9[%c0_49, %c3_50, %c0_51] : memref<4x22x22xf32, #tpu.memory_space<vmem>>, vector<2x16x22xf32>
    %c2_52 = arith.constant 2 : index
    %c3_53 = arith.constant 3 : index
    %c0_54 = arith.constant 0 : index
    %257 = vector.load %arg9[%c2_52, %c3_53, %c0_54] : memref<4x22x22xf32, #tpu.memory_space<vmem>>, vector<2x16x22xf32>
    %c21 = arith.constant 21 : index
    %258 = memref.load %arg6[%c21] : memref<98xf32, #tpu.memory_space<smem>>
    %c70 = arith.constant 70 : index
    %259 = memref.load %arg6[%c70] : memref<98xf32, #tpu.memory_space<smem>>
    %260 = vector.extract_strided_slice %256 {offsets = [0, 0, 0], sizes = [2, 16, 16], strides = [1, 1, 1]} : vector<2x16x22xf32> to vector<2x16x16xf32>
    %261 = vector.broadcast %258 : f32 to vector<2x16x16xf32>
    %262 = arith.mulf %260, %261 : vector<2x16x16xf32>
    %263 = arith.addf %255, %262 : vector<2x16x16xf32>
    %264 = vector.extract_strided_slice %257 {offsets = [0, 0, 0], sizes = [2, 16, 16], strides = [1, 1, 1]} : vector<2x16x22xf32> to vector<2x16x16xf32>
    %265 = vector.broadcast %259 : f32 to vector<2x16x16xf32>
    %266 = arith.mulf %264, %265 : vector<2x16x16xf32>
    %267 = arith.addf %263, %266 : vector<2x16x16xf32>
    %c22 = arith.constant 22 : index
    %268 = memref.load %arg6[%c22] : memref<98xf32, #tpu.memory_space<smem>>
    %c71 = arith.constant 71 : index
    %269 = memref.load %arg6[%c71] : memref<98xf32, #tpu.memory_space<smem>>
    %270 = vector.extract_strided_slice %256 {offsets = [0, 0, 1], sizes = [2, 16, 16], strides = [1, 1, 1]} : vector<2x16x22xf32> to vector<2x16x16xf32>
    %271 = vector.broadcast %268 : f32 to vector<2x16x16xf32>
    %272 = arith.mulf %270, %271 : vector<2x16x16xf32>
    %273 = arith.addf %267, %272 : vector<2x16x16xf32>
    %274 = vector.extract_strided_slice %257 {offsets = [0, 0, 1], sizes = [2, 16, 16], strides = [1, 1, 1]} : vector<2x16x22xf32> to vector<2x16x16xf32>
    %275 = vector.broadcast %269 : f32 to vector<2x16x16xf32>
    %276 = arith.mulf %274, %275 : vector<2x16x16xf32>
    %277 = arith.addf %273, %276 : vector<2x16x16xf32>
    %c23 = arith.constant 23 : index
    %278 = memref.load %arg6[%c23] : memref<98xf32, #tpu.memory_space<smem>>
    %c72 = arith.constant 72 : index
    %279 = memref.load %arg6[%c72] : memref<98xf32, #tpu.memory_space<smem>>
    %280 = vector.extract_strided_slice %256 {offsets = [0, 0, 2], sizes = [2, 16, 16], strides = [1, 1, 1]} : vector<2x16x22xf32> to vector<2x16x16xf32>
    %281 = vector.broadcast %278 : f32 to vector<2x16x16xf32>
    %282 = arith.mulf %280, %281 : vector<2x16x16xf32>
    %283 = arith.addf %277, %282 : vector<2x16x16xf32>
    %284 = vector.extract_strided_slice %257 {offsets = [0, 0, 2], sizes = [2, 16, 16], strides = [1, 1, 1]} : vector<2x16x22xf32> to vector<2x16x16xf32>
    %285 = vector.broadcast %279 : f32 to vector<2x16x16xf32>
    %286 = arith.mulf %284, %285 : vector<2x16x16xf32>
    %287 = arith.addf %283, %286 : vector<2x16x16xf32>
    %c24 = arith.constant 24 : index
    %288 = memref.load %arg6[%c24] : memref<98xf32, #tpu.memory_space<smem>>
    %c73 = arith.constant 73 : index
    %289 = memref.load %arg6[%c73] : memref<98xf32, #tpu.memory_space<smem>>
    %290 = vector.extract_strided_slice %256 {offsets = [0, 0, 3], sizes = [2, 16, 16], strides = [1, 1, 1]} : vector<2x16x22xf32> to vector<2x16x16xf32>
    %291 = vector.broadcast %288 : f32 to vector<2x16x16xf32>
    %292 = arith.mulf %290, %291 : vector<2x16x16xf32>
    %293 = arith.addf %287, %292 : vector<2x16x16xf32>
    %294 = vector.extract_strided_slice %257 {offsets = [0, 0, 3], sizes = [2, 16, 16], strides = [1, 1, 1]} : vector<2x16x22xf32> to vector<2x16x16xf32>
    %295 = vector.broadcast %289 : f32 to vector<2x16x16xf32>
    %296 = arith.mulf %294, %295 : vector<2x16x16xf32>
    %297 = arith.addf %293, %296 : vector<2x16x16xf32>
    %c25 = arith.constant 25 : index
    %298 = memref.load %arg6[%c25] : memref<98xf32, #tpu.memory_space<smem>>
    %c74 = arith.constant 74 : index
    %299 = memref.load %arg6[%c74] : memref<98xf32, #tpu.memory_space<smem>>
    %300 = vector.extract_strided_slice %256 {offsets = [0, 0, 4], sizes = [2, 16, 16], strides = [1, 1, 1]} : vector<2x16x22xf32> to vector<2x16x16xf32>
    %301 = vector.broadcast %298 : f32 to vector<2x16x16xf32>
    %302 = arith.mulf %300, %301 : vector<2x16x16xf32>
    %303 = arith.addf %297, %302 : vector<2x16x16xf32>
    %304 = vector.extract_strided_slice %257 {offsets = [0, 0, 4], sizes = [2, 16, 16], strides = [1, 1, 1]} : vector<2x16x22xf32> to vector<2x16x16xf32>
    %305 = vector.broadcast %299 : f32 to vector<2x16x16xf32>
    %306 = arith.mulf %304, %305 : vector<2x16x16xf32>
    %307 = arith.addf %303, %306 : vector<2x16x16xf32>
    %c26 = arith.constant 26 : index
    %308 = memref.load %arg6[%c26] : memref<98xf32, #tpu.memory_space<smem>>
    %c75 = arith.constant 75 : index
    %309 = memref.load %arg6[%c75] : memref<98xf32, #tpu.memory_space<smem>>
    %310 = vector.extract_strided_slice %256 {offsets = [0, 0, 5], sizes = [2, 16, 16], strides = [1, 1, 1]} : vector<2x16x22xf32> to vector<2x16x16xf32>
    %311 = vector.broadcast %308 : f32 to vector<2x16x16xf32>
    %312 = arith.mulf %310, %311 : vector<2x16x16xf32>
    %313 = arith.addf %307, %312 : vector<2x16x16xf32>
    %314 = vector.extract_strided_slice %257 {offsets = [0, 0, 5], sizes = [2, 16, 16], strides = [1, 1, 1]} : vector<2x16x22xf32> to vector<2x16x16xf32>
    %315 = vector.broadcast %309 : f32 to vector<2x16x16xf32>
    %316 = arith.mulf %314, %315 : vector<2x16x16xf32>
    %317 = arith.addf %313, %316 : vector<2x16x16xf32>
    %c27 = arith.constant 27 : index
    %318 = memref.load %arg6[%c27] : memref<98xf32, #tpu.memory_space<smem>>
    %c76 = arith.constant 76 : index
    %319 = memref.load %arg6[%c76] : memref<98xf32, #tpu.memory_space<smem>>
    %320 = vector.extract_strided_slice %256 {offsets = [0, 0, 6], sizes = [2, 16, 16], strides = [1, 1, 1]} : vector<2x16x22xf32> to vector<2x16x16xf32>
    %321 = vector.broadcast %318 : f32 to vector<2x16x16xf32>
    %322 = arith.mulf %320, %321 : vector<2x16x16xf32>
    %323 = arith.addf %317, %322 : vector<2x16x16xf32>
    %324 = vector.extract_strided_slice %257 {offsets = [0, 0, 6], sizes = [2, 16, 16], strides = [1, 1, 1]} : vector<2x16x22xf32> to vector<2x16x16xf32>
    %325 = vector.broadcast %319 : f32 to vector<2x16x16xf32>
    %326 = arith.mulf %324, %325 : vector<2x16x16xf32>
    %327 = arith.addf %323, %326 : vector<2x16x16xf32>
    %c0_55 = arith.constant 0 : index
    %c4_56 = arith.constant 4 : index
    %c0_57 = arith.constant 0 : index
    %328 = vector.load %arg9[%c0_55, %c4_56, %c0_57] : memref<4x22x22xf32, #tpu.memory_space<vmem>>, vector<2x16x22xf32>
    %c2_58 = arith.constant 2 : index
    %c4_59 = arith.constant 4 : index
    %c0_60 = arith.constant 0 : index
    %329 = vector.load %arg9[%c2_58, %c4_59, %c0_60] : memref<4x22x22xf32, #tpu.memory_space<vmem>>, vector<2x16x22xf32>
    %c28 = arith.constant 28 : index
    %330 = memref.load %arg6[%c28] : memref<98xf32, #tpu.memory_space<smem>>
    %c77 = arith.constant 77 : index
    %331 = memref.load %arg6[%c77] : memref<98xf32, #tpu.memory_space<smem>>
    %332 = vector.extract_strided_slice %328 {offsets = [0, 0, 0], sizes = [2, 16, 16], strides = [1, 1, 1]} : vector<2x16x22xf32> to vector<2x16x16xf32>
    %333 = vector.broadcast %330 : f32 to vector<2x16x16xf32>
    %334 = arith.mulf %332, %333 : vector<2x16x16xf32>
    %335 = arith.addf %327, %334 : vector<2x16x16xf32>
    %336 = vector.extract_strided_slice %329 {offsets = [0, 0, 0], sizes = [2, 16, 16], strides = [1, 1, 1]} : vector<2x16x22xf32> to vector<2x16x16xf32>
    %337 = vector.broadcast %331 : f32 to vector<2x16x16xf32>
    %338 = arith.mulf %336, %337 : vector<2x16x16xf32>
    %339 = arith.addf %335, %338 : vector<2x16x16xf32>
    %c29 = arith.constant 29 : index
    %340 = memref.load %arg6[%c29] : memref<98xf32, #tpu.memory_space<smem>>
    %c78 = arith.constant 78 : index
    %341 = memref.load %arg6[%c78] : memref<98xf32, #tpu.memory_space<smem>>
    %342 = vector.extract_strided_slice %328 {offsets = [0, 0, 1], sizes = [2, 16, 16], strides = [1, 1, 1]} : vector<2x16x22xf32> to vector<2x16x16xf32>
    %343 = vector.broadcast %340 : f32 to vector<2x16x16xf32>
    %344 = arith.mulf %342, %343 : vector<2x16x16xf32>
    %345 = arith.addf %339, %344 : vector<2x16x16xf32>
    %346 = vector.extract_strided_slice %329 {offsets = [0, 0, 1], sizes = [2, 16, 16], strides = [1, 1, 1]} : vector<2x16x22xf32> to vector<2x16x16xf32>
    %347 = vector.broadcast %341 : f32 to vector<2x16x16xf32>
    %348 = arith.mulf %346, %347 : vector<2x16x16xf32>
    %349 = arith.addf %345, %348 : vector<2x16x16xf32>
    %c30 = arith.constant 30 : index
    %350 = memref.load %arg6[%c30] : memref<98xf32, #tpu.memory_space<smem>>
    %c79 = arith.constant 79 : index
    %351 = memref.load %arg6[%c79] : memref<98xf32, #tpu.memory_space<smem>>
    %352 = vector.extract_strided_slice %328 {offsets = [0, 0, 2], sizes = [2, 16, 16], strides = [1, 1, 1]} : vector<2x16x22xf32> to vector<2x16x16xf32>
    %353 = vector.broadcast %350 : f32 to vector<2x16x16xf32>
    %354 = arith.mulf %352, %353 : vector<2x16x16xf32>
    %355 = arith.addf %349, %354 : vector<2x16x16xf32>
    %356 = vector.extract_strided_slice %329 {offsets = [0, 0, 2], sizes = [2, 16, 16], strides = [1, 1, 1]} : vector<2x16x22xf32> to vector<2x16x16xf32>
    %357 = vector.broadcast %351 : f32 to vector<2x16x16xf32>
    %358 = arith.mulf %356, %357 : vector<2x16x16xf32>
    %359 = arith.addf %355, %358 : vector<2x16x16xf32>
    %c31 = arith.constant 31 : index
    %360 = memref.load %arg6[%c31] : memref<98xf32, #tpu.memory_space<smem>>
    %c80 = arith.constant 80 : index
    %361 = memref.load %arg6[%c80] : memref<98xf32, #tpu.memory_space<smem>>
    %362 = vector.extract_strided_slice %328 {offsets = [0, 0, 3], sizes = [2, 16, 16], strides = [1, 1, 1]} : vector<2x16x22xf32> to vector<2x16x16xf32>
    %363 = vector.broadcast %360 : f32 to vector<2x16x16xf32>
    %364 = arith.mulf %362, %363 : vector<2x16x16xf32>
    %365 = arith.addf %359, %364 : vector<2x16x16xf32>
    %366 = vector.extract_strided_slice %329 {offsets = [0, 0, 3], sizes = [2, 16, 16], strides = [1, 1, 1]} : vector<2x16x22xf32> to vector<2x16x16xf32>
    %367 = vector.broadcast %361 : f32 to vector<2x16x16xf32>
    %368 = arith.mulf %366, %367 : vector<2x16x16xf32>
    %369 = arith.addf %365, %368 : vector<2x16x16xf32>
    %c32 = arith.constant 32 : index
    %370 = memref.load %arg6[%c32] : memref<98xf32, #tpu.memory_space<smem>>
    %c81 = arith.constant 81 : index
    %371 = memref.load %arg6[%c81] : memref<98xf32, #tpu.memory_space<smem>>
    %372 = vector.extract_strided_slice %328 {offsets = [0, 0, 4], sizes = [2, 16, 16], strides = [1, 1, 1]} : vector<2x16x22xf32> to vector<2x16x16xf32>
    %373 = vector.broadcast %370 : f32 to vector<2x16x16xf32>
    %374 = arith.mulf %372, %373 : vector<2x16x16xf32>
    %375 = arith.addf %369, %374 : vector<2x16x16xf32>
    %376 = vector.extract_strided_slice %329 {offsets = [0, 0, 4], sizes = [2, 16, 16], strides = [1, 1, 1]} : vector<2x16x22xf32> to vector<2x16x16xf32>
    %377 = vector.broadcast %371 : f32 to vector<2x16x16xf32>
    %378 = arith.mulf %376, %377 : vector<2x16x16xf32>
    %379 = arith.addf %375, %378 : vector<2x16x16xf32>
    %c33 = arith.constant 33 : index
    %380 = memref.load %arg6[%c33] : memref<98xf32, #tpu.memory_space<smem>>
    %c82 = arith.constant 82 : index
    %381 = memref.load %arg6[%c82] : memref<98xf32, #tpu.memory_space<smem>>
    %382 = vector.extract_strided_slice %328 {offsets = [0, 0, 5], sizes = [2, 16, 16], strides = [1, 1, 1]} : vector<2x16x22xf32> to vector<2x16x16xf32>
    %383 = vector.broadcast %380 : f32 to vector<2x16x16xf32>
    %384 = arith.mulf %382, %383 : vector<2x16x16xf32>
    %385 = arith.addf %379, %384 : vector<2x16x16xf32>
    %386 = vector.extract_strided_slice %329 {offsets = [0, 0, 5], sizes = [2, 16, 16], strides = [1, 1, 1]} : vector<2x16x22xf32> to vector<2x16x16xf32>
    %387 = vector.broadcast %381 : f32 to vector<2x16x16xf32>
    %388 = arith.mulf %386, %387 : vector<2x16x16xf32>
    %389 = arith.addf %385, %388 : vector<2x16x16xf32>
    %c34 = arith.constant 34 : index
    %390 = memref.load %arg6[%c34] : memref<98xf32, #tpu.memory_space<smem>>
    %c83 = arith.constant 83 : index
    %391 = memref.load %arg6[%c83] : memref<98xf32, #tpu.memory_space<smem>>
    %392 = vector.extract_strided_slice %328 {offsets = [0, 0, 6], sizes = [2, 16, 16], strides = [1, 1, 1]} : vector<2x16x22xf32> to vector<2x16x16xf32>
    %393 = vector.broadcast %390 : f32 to vector<2x16x16xf32>
    %394 = arith.mulf %392, %393 : vector<2x16x16xf32>
    %395 = arith.addf %389, %394 : vector<2x16x16xf32>
    %396 = vector.extract_strided_slice %329 {offsets = [0, 0, 6], sizes = [2, 16, 16], strides = [1, 1, 1]} : vector<2x16x22xf32> to vector<2x16x16xf32>
    %397 = vector.broadcast %391 : f32 to vector<2x16x16xf32>
    %398 = arith.mulf %396, %397 : vector<2x16x16xf32>
    %399 = arith.addf %395, %398 : vector<2x16x16xf32>
    %c0_61 = arith.constant 0 : index
    %c5_62 = arith.constant 5 : index
    %c0_63 = arith.constant 0 : index
    %400 = vector.load %arg9[%c0_61, %c5_62, %c0_63] : memref<4x22x22xf32, #tpu.memory_space<vmem>>, vector<2x16x22xf32>
    %c2_64 = arith.constant 2 : index
    %c5_65 = arith.constant 5 : index
    %c0_66 = arith.constant 0 : index
    %401 = vector.load %arg9[%c2_64, %c5_65, %c0_66] : memref<4x22x22xf32, #tpu.memory_space<vmem>>, vector<2x16x22xf32>
    %c35 = arith.constant 35 : index
    %402 = memref.load %arg6[%c35] : memref<98xf32, #tpu.memory_space<smem>>
    %c84 = arith.constant 84 : index
    %403 = memref.load %arg6[%c84] : memref<98xf32, #tpu.memory_space<smem>>
    %404 = vector.extract_strided_slice %400 {offsets = [0, 0, 0], sizes = [2, 16, 16], strides = [1, 1, 1]} : vector<2x16x22xf32> to vector<2x16x16xf32>
    %405 = vector.broadcast %402 : f32 to vector<2x16x16xf32>
    %406 = arith.mulf %404, %405 : vector<2x16x16xf32>
    %407 = arith.addf %399, %406 : vector<2x16x16xf32>
    %408 = vector.extract_strided_slice %401 {offsets = [0, 0, 0], sizes = [2, 16, 16], strides = [1, 1, 1]} : vector<2x16x22xf32> to vector<2x16x16xf32>
    %409 = vector.broadcast %403 : f32 to vector<2x16x16xf32>
    %410 = arith.mulf %408, %409 : vector<2x16x16xf32>
    %411 = arith.addf %407, %410 : vector<2x16x16xf32>
    %c36 = arith.constant 36 : index
    %412 = memref.load %arg6[%c36] : memref<98xf32, #tpu.memory_space<smem>>
    %c85 = arith.constant 85 : index
    %413 = memref.load %arg6[%c85] : memref<98xf32, #tpu.memory_space<smem>>
    %414 = vector.extract_strided_slice %400 {offsets = [0, 0, 1], sizes = [2, 16, 16], strides = [1, 1, 1]} : vector<2x16x22xf32> to vector<2x16x16xf32>
    %415 = vector.broadcast %412 : f32 to vector<2x16x16xf32>
    %416 = arith.mulf %414, %415 : vector<2x16x16xf32>
    %417 = arith.addf %411, %416 : vector<2x16x16xf32>
    %418 = vector.extract_strided_slice %401 {offsets = [0, 0, 1], sizes = [2, 16, 16], strides = [1, 1, 1]} : vector<2x16x22xf32> to vector<2x16x16xf32>
    %419 = vector.broadcast %413 : f32 to vector<2x16x16xf32>
    %420 = arith.mulf %418, %419 : vector<2x16x16xf32>
    %421 = arith.addf %417, %420 : vector<2x16x16xf32>
    %c37 = arith.constant 37 : index
    %422 = memref.load %arg6[%c37] : memref<98xf32, #tpu.memory_space<smem>>
    %c86 = arith.constant 86 : index
    %423 = memref.load %arg6[%c86] : memref<98xf32, #tpu.memory_space<smem>>
    %424 = vector.extract_strided_slice %400 {offsets = [0, 0, 2], sizes = [2, 16, 16], strides = [1, 1, 1]} : vector<2x16x22xf32> to vector<2x16x16xf32>
    %425 = vector.broadcast %422 : f32 to vector<2x16x16xf32>
    %426 = arith.mulf %424, %425 : vector<2x16x16xf32>
    %427 = arith.addf %421, %426 : vector<2x16x16xf32>
    %428 = vector.extract_strided_slice %401 {offsets = [0, 0, 2], sizes = [2, 16, 16], strides = [1, 1, 1]} : vector<2x16x22xf32> to vector<2x16x16xf32>
    %429 = vector.broadcast %423 : f32 to vector<2x16x16xf32>
    %430 = arith.mulf %428, %429 : vector<2x16x16xf32>
    %431 = arith.addf %427, %430 : vector<2x16x16xf32>
    %c38 = arith.constant 38 : index
    %432 = memref.load %arg6[%c38] : memref<98xf32, #tpu.memory_space<smem>>
    %c87 = arith.constant 87 : index
    %433 = memref.load %arg6[%c87] : memref<98xf32, #tpu.memory_space<smem>>
    %434 = vector.extract_strided_slice %400 {offsets = [0, 0, 3], sizes = [2, 16, 16], strides = [1, 1, 1]} : vector<2x16x22xf32> to vector<2x16x16xf32>
    %435 = vector.broadcast %432 : f32 to vector<2x16x16xf32>
    %436 = arith.mulf %434, %435 : vector<2x16x16xf32>
    %437 = arith.addf %431, %436 : vector<2x16x16xf32>
    %438 = vector.extract_strided_slice %401 {offsets = [0, 0, 3], sizes = [2, 16, 16], strides = [1, 1, 1]} : vector<2x16x22xf32> to vector<2x16x16xf32>
    %439 = vector.broadcast %433 : f32 to vector<2x16x16xf32>
    %440 = arith.mulf %438, %439 : vector<2x16x16xf32>
    %441 = arith.addf %437, %440 : vector<2x16x16xf32>
    %c39 = arith.constant 39 : index
    %442 = memref.load %arg6[%c39] : memref<98xf32, #tpu.memory_space<smem>>
    %c88 = arith.constant 88 : index
    %443 = memref.load %arg6[%c88] : memref<98xf32, #tpu.memory_space<smem>>
    %444 = vector.extract_strided_slice %400 {offsets = [0, 0, 4], sizes = [2, 16, 16], strides = [1, 1, 1]} : vector<2x16x22xf32> to vector<2x16x16xf32>
    %445 = vector.broadcast %442 : f32 to vector<2x16x16xf32>
    %446 = arith.mulf %444, %445 : vector<2x16x16xf32>
    %447 = arith.addf %441, %446 : vector<2x16x16xf32>
    %448 = vector.extract_strided_slice %401 {offsets = [0, 0, 4], sizes = [2, 16, 16], strides = [1, 1, 1]} : vector<2x16x22xf32> to vector<2x16x16xf32>
    %449 = vector.broadcast %443 : f32 to vector<2x16x16xf32>
    %450 = arith.mulf %448, %449 : vector<2x16x16xf32>
    %451 = arith.addf %447, %450 : vector<2x16x16xf32>
    %c40 = arith.constant 40 : index
    %452 = memref.load %arg6[%c40] : memref<98xf32, #tpu.memory_space<smem>>
    %c89 = arith.constant 89 : index
    %453 = memref.load %arg6[%c89] : memref<98xf32, #tpu.memory_space<smem>>
    %454 = vector.extract_strided_slice %400 {offsets = [0, 0, 5], sizes = [2, 16, 16], strides = [1, 1, 1]} : vector<2x16x22xf32> to vector<2x16x16xf32>
    %455 = vector.broadcast %452 : f32 to vector<2x16x16xf32>
    %456 = arith.mulf %454, %455 : vector<2x16x16xf32>
    %457 = arith.addf %451, %456 : vector<2x16x16xf32>
    %458 = vector.extract_strided_slice %401 {offsets = [0, 0, 5], sizes = [2, 16, 16], strides = [1, 1, 1]} : vector<2x16x22xf32> to vector<2x16x16xf32>
    %459 = vector.broadcast %453 : f32 to vector<2x16x16xf32>
    %460 = arith.mulf %458, %459 : vector<2x16x16xf32>
    %461 = arith.addf %457, %460 : vector<2x16x16xf32>
    %c41 = arith.constant 41 : index
    %462 = memref.load %arg6[%c41] : memref<98xf32, #tpu.memory_space<smem>>
    %c90 = arith.constant 90 : index
    %463 = memref.load %arg6[%c90] : memref<98xf32, #tpu.memory_space<smem>>
    %464 = vector.extract_strided_slice %400 {offsets = [0, 0, 6], sizes = [2, 16, 16], strides = [1, 1, 1]} : vector<2x16x22xf32> to vector<2x16x16xf32>
    %465 = vector.broadcast %462 : f32 to vector<2x16x16xf32>
    %466 = arith.mulf %464, %465 : vector<2x16x16xf32>
    %467 = arith.addf %461, %466 : vector<2x16x16xf32>
    %468 = vector.extract_strided_slice %401 {offsets = [0, 0, 6], sizes = [2, 16, 16], strides = [1, 1, 1]} : vector<2x16x22xf32> to vector<2x16x16xf32>
    %469 = vector.broadcast %463 : f32 to vector<2x16x16xf32>
    %470 = arith.mulf %468, %469 : vector<2x16x16xf32>
    %471 = arith.addf %467, %470 : vector<2x16x16xf32>
    %c0_67 = arith.constant 0 : index
    %c6_68 = arith.constant 6 : index
    %c0_69 = arith.constant 0 : index
    %472 = vector.load %arg9[%c0_67, %c6_68, %c0_69] : memref<4x22x22xf32, #tpu.memory_space<vmem>>, vector<2x16x22xf32>
    %c2_70 = arith.constant 2 : index
    %c6_71 = arith.constant 6 : index
    %c0_72 = arith.constant 0 : index
    %473 = vector.load %arg9[%c2_70, %c6_71, %c0_72] : memref<4x22x22xf32, #tpu.memory_space<vmem>>, vector<2x16x22xf32>
    %c42 = arith.constant 42 : index
    %474 = memref.load %arg6[%c42] : memref<98xf32, #tpu.memory_space<smem>>
    %c91 = arith.constant 91 : index
    %475 = memref.load %arg6[%c91] : memref<98xf32, #tpu.memory_space<smem>>
    %476 = vector.extract_strided_slice %472 {offsets = [0, 0, 0], sizes = [2, 16, 16], strides = [1, 1, 1]} : vector<2x16x22xf32> to vector<2x16x16xf32>
    %477 = vector.broadcast %474 : f32 to vector<2x16x16xf32>
    %478 = arith.mulf %476, %477 : vector<2x16x16xf32>
    %479 = arith.addf %471, %478 : vector<2x16x16xf32>
    %480 = vector.extract_strided_slice %473 {offsets = [0, 0, 0], sizes = [2, 16, 16], strides = [1, 1, 1]} : vector<2x16x22xf32> to vector<2x16x16xf32>
    %481 = vector.broadcast %475 : f32 to vector<2x16x16xf32>
    %482 = arith.mulf %480, %481 : vector<2x16x16xf32>
    %483 = arith.addf %479, %482 : vector<2x16x16xf32>
    %c43 = arith.constant 43 : index
    %484 = memref.load %arg6[%c43] : memref<98xf32, #tpu.memory_space<smem>>
    %c92 = arith.constant 92 : index
    %485 = memref.load %arg6[%c92] : memref<98xf32, #tpu.memory_space<smem>>
    %486 = vector.extract_strided_slice %472 {offsets = [0, 0, 1], sizes = [2, 16, 16], strides = [1, 1, 1]} : vector<2x16x22xf32> to vector<2x16x16xf32>
    %487 = vector.broadcast %484 : f32 to vector<2x16x16xf32>
    %488 = arith.mulf %486, %487 : vector<2x16x16xf32>
    %489 = arith.addf %483, %488 : vector<2x16x16xf32>
    %490 = vector.extract_strided_slice %473 {offsets = [0, 0, 1], sizes = [2, 16, 16], strides = [1, 1, 1]} : vector<2x16x22xf32> to vector<2x16x16xf32>
    %491 = vector.broadcast %485 : f32 to vector<2x16x16xf32>
    %492 = arith.mulf %490, %491 : vector<2x16x16xf32>
    %493 = arith.addf %489, %492 : vector<2x16x16xf32>
    %c44 = arith.constant 44 : index
    %494 = memref.load %arg6[%c44] : memref<98xf32, #tpu.memory_space<smem>>
    %c93 = arith.constant 93 : index
    %495 = memref.load %arg6[%c93] : memref<98xf32, #tpu.memory_space<smem>>
    %496 = vector.extract_strided_slice %472 {offsets = [0, 0, 2], sizes = [2, 16, 16], strides = [1, 1, 1]} : vector<2x16x22xf32> to vector<2x16x16xf32>
    %497 = vector.broadcast %494 : f32 to vector<2x16x16xf32>
    %498 = arith.mulf %496, %497 : vector<2x16x16xf32>
    %499 = arith.addf %493, %498 : vector<2x16x16xf32>
    %500 = vector.extract_strided_slice %473 {offsets = [0, 0, 2], sizes = [2, 16, 16], strides = [1, 1, 1]} : vector<2x16x22xf32> to vector<2x16x16xf32>
    %501 = vector.broadcast %495 : f32 to vector<2x16x16xf32>
    %502 = arith.mulf %500, %501 : vector<2x16x16xf32>
    %503 = arith.addf %499, %502 : vector<2x16x16xf32>
    %c45 = arith.constant 45 : index
    %504 = memref.load %arg6[%c45] : memref<98xf32, #tpu.memory_space<smem>>
    %c94 = arith.constant 94 : index
    %505 = memref.load %arg6[%c94] : memref<98xf32, #tpu.memory_space<smem>>
    %506 = vector.extract_strided_slice %472 {offsets = [0, 0, 3], sizes = [2, 16, 16], strides = [1, 1, 1]} : vector<2x16x22xf32> to vector<2x16x16xf32>
    %507 = vector.broadcast %504 : f32 to vector<2x16x16xf32>
    %508 = arith.mulf %506, %507 : vector<2x16x16xf32>
    %509 = arith.addf %503, %508 : vector<2x16x16xf32>
    %510 = vector.extract_strided_slice %473 {offsets = [0, 0, 3], sizes = [2, 16, 16], strides = [1, 1, 1]} : vector<2x16x22xf32> to vector<2x16x16xf32>
    %511 = vector.broadcast %505 : f32 to vector<2x16x16xf32>
    %512 = arith.mulf %510, %511 : vector<2x16x16xf32>
    %513 = arith.addf %509, %512 : vector<2x16x16xf32>
    %c46 = arith.constant 46 : index
    %514 = memref.load %arg6[%c46] : memref<98xf32, #tpu.memory_space<smem>>
    %c95 = arith.constant 95 : index
    %515 = memref.load %arg6[%c95] : memref<98xf32, #tpu.memory_space<smem>>
    %516 = vector.extract_strided_slice %472 {offsets = [0, 0, 4], sizes = [2, 16, 16], strides = [1, 1, 1]} : vector<2x16x22xf32> to vector<2x16x16xf32>
    %517 = vector.broadcast %514 : f32 to vector<2x16x16xf32>
    %518 = arith.mulf %516, %517 : vector<2x16x16xf32>
    %519 = arith.addf %513, %518 : vector<2x16x16xf32>
    %520 = vector.extract_strided_slice %473 {offsets = [0, 0, 4], sizes = [2, 16, 16], strides = [1, 1, 1]} : vector<2x16x22xf32> to vector<2x16x16xf32>
    %521 = vector.broadcast %515 : f32 to vector<2x16x16xf32>
    %522 = arith.mulf %520, %521 : vector<2x16x16xf32>
    %523 = arith.addf %519, %522 : vector<2x16x16xf32>
    %c47 = arith.constant 47 : index
    %524 = memref.load %arg6[%c47] : memref<98xf32, #tpu.memory_space<smem>>
    %c96 = arith.constant 96 : index
    %525 = memref.load %arg6[%c96] : memref<98xf32, #tpu.memory_space<smem>>
    %526 = vector.extract_strided_slice %472 {offsets = [0, 0, 5], sizes = [2, 16, 16], strides = [1, 1, 1]} : vector<2x16x22xf32> to vector<2x16x16xf32>
    %527 = vector.broadcast %524 : f32 to vector<2x16x16xf32>
    %528 = arith.mulf %526, %527 : vector<2x16x16xf32>
    %529 = arith.addf %523, %528 : vector<2x16x16xf32>
    %530 = vector.extract_strided_slice %473 {offsets = [0, 0, 5], sizes = [2, 16, 16], strides = [1, 1, 1]} : vector<2x16x22xf32> to vector<2x16x16xf32>
    %531 = vector.broadcast %525 : f32 to vector<2x16x16xf32>
    %532 = arith.mulf %530, %531 : vector<2x16x16xf32>
    %533 = arith.addf %529, %532 : vector<2x16x16xf32>
    %c48 = arith.constant 48 : index
    %534 = memref.load %arg6[%c48] : memref<98xf32, #tpu.memory_space<smem>>
    %c97 = arith.constant 97 : index
    %535 = memref.load %arg6[%c97] : memref<98xf32, #tpu.memory_space<smem>>
    %536 = vector.extract_strided_slice %472 {offsets = [0, 0, 6], sizes = [2, 16, 16], strides = [1, 1, 1]} : vector<2x16x22xf32> to vector<2x16x16xf32>
    %537 = vector.broadcast %534 : f32 to vector<2x16x16xf32>
    %538 = arith.mulf %536, %537 : vector<2x16x16xf32>
    %539 = arith.addf %533, %538 : vector<2x16x16xf32>
    %540 = vector.extract_strided_slice %473 {offsets = [0, 0, 6], sizes = [2, 16, 16], strides = [1, 1, 1]} : vector<2x16x22xf32> to vector<2x16x16xf32>
    %541 = vector.broadcast %535 : f32 to vector<2x16x16xf32>
    %542 = arith.mulf %540, %541 : vector<2x16x16xf32>
    %543 = arith.addf %539, %542 : vector<2x16x16xf32>
    %c0_73 = arith.constant 0 : index
    %544 = memref.load %arg7[%c0_73] : memref<3xf32, #tpu.memory_space<smem>>
    %c1_74 = arith.constant 1 : index
    %545 = memref.load %arg7[%c1_74] : memref<3xf32, #tpu.memory_space<smem>>
    %c2_75 = arith.constant 2 : index
    %546 = memref.load %arg7[%c2_75] : memref<3xf32, #tpu.memory_space<smem>>
    %547 = vector.shape_cast %543 : vector<2x16x16xf32> to vector<1x2x16x16xf32>
    %cst_76 = arith.constant dense<0.000000e+00> : vector<1xf32>
    %548 = vector.multi_reduction <add>, %547, %cst_76 [1, 2, 3] : vector<1x2x16x16xf32> to vector<1xf32>
    %549 = vector.shape_cast %548 : vector<1xf32> to vector<1x1x1x1xf32>
    %550 = vector.extract %549[0, 0, 0, 0] : f32 from vector<1x1x1x1xf32>
    %cst_77 = arith.constant 5.120000e+02 : f32
    %551 = arith.divf %550, %cst_77 : f32
    %552 = vector.broadcast %551 : f32 to vector<2x16x16xf32>
    %553 = arith.subf %543, %552 : vector<2x16x16xf32>
    %554 = arith.mulf %553, %553 : vector<2x16x16xf32>
    %555 = vector.shape_cast %554 : vector<2x16x16xf32> to vector<1x2x16x16xf32>
    %cst_78 = arith.constant dense<0.000000e+00> : vector<1xf32>
    %556 = vector.multi_reduction <add>, %555, %cst_78 [1, 2, 3] : vector<1x2x16x16xf32> to vector<1xf32>
    %557 = vector.shape_cast %556 : vector<1xf32> to vector<1x1x1x1xf32>
    %558 = vector.extract %557[0, 0, 0, 0] : f32 from vector<1x1x1x1xf32>
    %cst_79 = arith.constant 5.120000e+02 : f32
    %559 = arith.divf %558, %cst_79 : f32
    %560 = arith.addf %559, %546 : f32
    %561 = math.rsqrt %560 : f32
    %562 = arith.mulf %561, %544 : f32
    %563 = vector.broadcast %551 : f32 to vector<2x16x16xf32>
    %564 = arith.subf %543, %563 : vector<2x16x16xf32>
    %565 = vector.broadcast %562 : f32 to vector<2x16x16xf32>
    %566 = arith.mulf %564, %565 : vector<2x16x16xf32>
    %567 = vector.broadcast %545 : f32 to vector<2x16x16xf32>
    %568 = arith.addf %566, %567 : vector<2x16x16xf32>
    %569 = arith.negf %568 : vector<2x16x16xf32>
    %570 = math.exp %569 : vector<2x16x16xf32>
    %cst_80 = arith.constant 1.000000e+00 : f32
    %571 = vector.broadcast %cst_80 : f32 to vector<2x16x16xf32>
    %572 = arith.addf %571, %570 : vector<2x16x16xf32>
    %573 = arith.divf %571, %572 : vector<2x16x16xf32>
    %574 = vector.shape_cast %573 : vector<2x16x16xf32> to vector<2x1x256xf32>
    %575 = vector.broadcast %574 : vector<2x1x256xf32> to vector<2x32x256xf32>
    %576 = arith.mulf %28, %575 : vector<2x32x256xf32>
    %c0_81 = arith.constant 0 : index
    %c0_82 = arith.constant 0 : index
    %c0_83 = arith.constant 0 : index
    %577 = vector.load %arg8[%c0_81, %c0_82, %c0_83] : memref<2x32x256xf32, #tpu.memory_space<vmem>>, vector<2x32x256xf32>
    tpu.vector_store %arg8[%c0_81, %c0_82, %c0_83], %576 {strides = array<i32>} : memref<2x32x256xf32, #tpu.memory_space<vmem>>, vector<2x32x256xf32>,
    return
  }
  func.func @transform_0(%arg0: i32) -> (i32, i32, i32) {
    %c0_i32 = arith.constant 0 : i32
    %c0_i32_0 = arith.constant 0 : i32
    %c0_i32_1 = arith.constant 0 : i32
    %c0_i32_2 = arith.constant 0 : i32
    return %c0_i32, %c0_i32_0, %c0_i32_1 : i32, i32, i32
  }
  func.func @transform_1(%arg0: i32) -> (i32, i32) {
    %c0_i32 = arith.constant 0 : i32
    %c0_i32_0 = arith.constant 0 : i32
    %c0_i32_1 = arith.constant 0 : i32
    return %c0_i32, %c0_i32_0 : i32, i32
  }
  func.func @transform_2(%arg0: i32) -> (i32, i32) {
    %c0_i32 = arith.constant 0 : i32
    %c0_i32_0 = arith.constant 0 : i32
    %c0_i32_1 = arith.constant 0 : i32
    return %c0_i32, %c0_i32_0 : i32, i32
  }
  func.func @transform_3(%arg0: i32) -> (i32, i32) {
    %c0_i32 = arith.constant 0 : i32
    %c0_i32_0 = arith.constant 0 : i32
    %c0_i32_1 = arith.constant 0 : i32
    return %c0_i32, %c0_i32_0 : i32, i32
  }
  func.func @transform_4(%arg0: i32) -> (i32, i32) {
    %c0_i32 = arith.constant 0 : i32
    %c0_i32_0 = arith.constant 0 : i32
    %c0_i32_1 = arith.constant 0 : i32
    return %c0_i32, %c0_i32_0 : i32, i32
  }
  func.func @transform_5(%arg0: i32) -> i32 {
    %c0_i32 = arith.constant 0 : i32
    %c0_i32_0 = arith.constant 0 : i32
    return %c0_i32 : i32
  }
  func.func @transform_6(%arg0: i32) -> i32 {
    %c0_i32 = arith.constant 0 : i32
    %c0_i32_0 = arith.constant 0 : i32
    return %c0_i32 : i32
  }
  func.func @transform_7(%arg0: i32) -> (i32, i32, i32) {
    %c0_i32 = arith.constant 0 : i32
    %c0_i32_0 = arith.constant 0 : i32
    %c0_i32_1 = arith.constant 0 : i32
    %c0_i32_2 = arith.constant 0 : i32
    return %c0_i32, %c0_i32_0, %c0_i32_1 : i32, i32, i32
  }
}

</mosaic_0001>

<llo_original>
// kernel: tpu_custom_call.1
$region0: #{tpu_custom_call.1}
  #allocation0 [shape = 'u32[]', space=smem, size = 0x4, offset = 0x4, fixed_abs, tag = 'smem constant byte address 0x4 - core index']
  #allocation1 [shape = 'u32[144,128]{1,0:T(1,128)}', space=vmem, size = 0x12000, scoped, tag = 'internal scratch']
  #allocation2 [shape = 'f32[4,22,22]{2,1,0:T(8,128)}', space=vmem, size = 0xc000, scoped, tag = 'scratch operand']
  %s0 = inlined_call_operand.hbm [shape: f32[2,32,256], index: 0, kind: input, shape index: {}]
  %s1 = inlined_call_operand.vmem [shape: f32[32,2], index: 1, kind: input, shape index: {}]
  %s2 = inlined_call_operand.vmem [shape: f32[1,2], index: 2, kind: input, shape index: {}]
  %s3 = inlined_call_operand.vmem [shape: f32[2,32], index: 3, kind: input, shape index: {}]
  %s4 = inlined_call_operand.vmem [shape: f32[1,32], index: 4, kind: input, shape index: {}]
  %s5 = inlined_call_operand.vmem [shape: f32[98], index: 5, kind: input, shape index: {}]
  %s6 = inlined_call_operand.vmem [shape: f32[3], index: 6, kind: input, shape index: {}]
  %s7 = inlined_call_operand.hbm [shape: f32[2,32,256], index: 7, kind: output, shape index: {}]
  %s8 = sld [smem:[#allocation0]]
  $region50: #{tpu_custom_call.1} parent=0
    _
  %s10 = ssub.s32 1, %s8
  %s11 = scalar_select 0, %s10, %s8
  $region1: #{tpu_custom_call.1} parent=0
    #allocation3 [shape = 'u8[65536]{0}', space=vmem, size = 0x10000, scoped, tag = 'input window, operand 0, single buffered']
    #allocation4 [shape = 's32[1]{0}', space=sflag, size = 0x4, scoped, tag = 'scoped memory for tpu_custom_call.1']
    #allocation5 [shape = 's32[1]{0}', space=sflag, size = 0x4, scoped, tag = 'scoped memory for tpu_custom_call.1']
    #allocation6 [shape = 's32[1]{0}', space=sflag, size = 0x4, scoped, tag = 'scoped memory for tpu_custom_call.1']
    #allocation7 [shape = 'u8[512]{0}', space=smem, size = 0x200, scoped, tag = 'input window, operand 5, single buffered']
    #allocation8 [shape = 'u8[512]{0}', space=smem, size = 0x200, scoped, tag = 'input window, operand 6, single buffered']
    #allocation9 [shape = 's32[1]{0}', space=sflag, size = 0x4, scoped, tag = 'scoped memory for tpu_custom_call.1']
    #allocation10 [shape = 'u8[65536]{0}', space=vmem, size = 0x10000, scoped, tag = 'output window, operand 0, single buffered']
    %12 = vsyncpa [#allocation4], 0
    %13 = vsyncpa [#allocation6], 0
    %14 = vsyncpa [#allocation9], 0
    %15 = vsyncpa [#allocation5], 0
    // Predicated region
    $region2: #{tpu_custom_call.1} parent=1 // pred_check
      _
    $region3: #{tpu_custom_call.1} parent=1 // pred_check_branch
      %17 = sbr.rel (0) target = $region5
    $region4: #{tpu_custom_call.1} parent=1 // pred_region
      %s19 = ssub.s32 2048, 2048
      %20 = vsyncadd [#allocation4], %s19
      %s21 = sshll.u32 [#allocation3], 4
      %s22 = int_to_ptr.vmem [resolvable:$true] %s21
      %27 = dma.hbm_to_vmem [thread:$0]  %s0, 2048, %s22, [#allocation4], 256, 256, 16
    $region5: #{tpu_custom_call.1} parent=1 // pred_fallthru
      _
    // Predicated region
    $region6: #{tpu_custom_call.1} parent=1 // pred_check
      _
    $region7: #{tpu_custom_call.1} parent=1 // pred_check_branch
      %29 = sbr.rel (0) target = $region9
    $region8: #{tpu_custom_call.1} parent=1 // pred_region
      _
    $region9: #{tpu_custom_call.1} parent=1 // pred_fallthru
      _
    // Predicated region
    $region10: #{tpu_custom_call.1} parent=1 // pred_check
      _
    $region11: #{tpu_custom_call.1} parent=1 // pred_check_branch
      %31 = sbr.rel (0) target = $region13
    $region12: #{tpu_custom_call.1} parent=1 // pred_region
      _
    $region13: #{tpu_custom_call.1} parent=1 // pred_fallthru
      _
    // Predicated region
    $region14: #{tpu_custom_call.1} parent=1 // pred_check
      _
    $region15: #{tpu_custom_call.1} parent=1 // pred_check_branch
      %33 = sbr.rel (0) target = $region17
    $region16: #{tpu_custom_call.1} parent=1 // pred_region
      _
    $region17: #{tpu_custom_call.1} parent=1 // pred_fallthru
      _
    // Predicated region
    $region18: #{tpu_custom_call.1} parent=1 // pred_check
      _
    $region19: #{tpu_custom_call.1} parent=1 // pred_check_branch
      %35 = sbr.rel (0) target = $region21
    $region20: #{tpu_custom_call.1} parent=1 // pred_region
      _
    $region21: #{tpu_custom_call.1} parent=1 // pred_fallthru
      _
    // Predicated region
    $region22: #{tpu_custom_call.1} parent=1 // pred_check
      _
    $region23: #{tpu_custom_call.1} parent=1 // pred_check_branch
      %37 = sbr.rel (0) target = $region25
    $region24: #{tpu_custom_call.1} parent=1 // pred_region
      %s39 = ssub.s32 16, 16
      %40 = vsyncadd [#allocation6], %s39
      %s42 = sshll.u32 %s5, 4
      %s43 = int_to_ptr.vmem [resolvable:$true] %s42
      %45 = dma.vmem_to_smem %s43, 16, [#allocation7], [#allocation6]
    $region25: #{tpu_custom_call.1} parent=1 // pred_fallthru
      _
    // Predicated region
    $region26: #{tpu_custom_call.1} parent=1 // pred_check
      _
    $region27: #{tpu_custom_call.1} parent=1 // pred_check_branch
      %47 = sbr.rel (0) target = $region29
    $region28: #{tpu_custom_call.1} parent=1 // pred_region
      %s49 = ssub.s32 16, 16
      %50 = vsyncadd [#allocation9], %s49
      %s52 = sshll.u32 %s6, 4
      %s53 = int_to_ptr.vmem [resolvable:$true] %s52
      %55 = dma.vmem_to_smem %s53, 16, [#allocation8], [#allocation9]
    $region29: #{tpu_custom_call.1} parent=1 // pred_fallthru
      _
    // Predicated region
    $region30: #{tpu_custom_call.1} parent=1 // pred_check
      _
    $region31: #{tpu_custom_call.1} parent=1 // pred_check_branch
      %57 = sbr.rel (0) target = $region33
    $region32: #{tpu_custom_call.1} parent=1 // pred_region
      %58 = dma.done [#allocation4], 2048
    $region33: #{tpu_custom_call.1} parent=1 // pred_fallthru
      _
    // Predicated region
    $region34: #{tpu_custom_call.1} parent=1 // pred_check
      _
    $region35: #{tpu_custom_call.1} parent=1 // pred_check_branch
      %60 = sbr.rel (0) target = $region37
    $region36: #{tpu_custom_call.1} parent=1 // pred_region
      %61 = dma.done [#allocation6], 16
    $region37: #{tpu_custom_call.1} parent=1 // pred_fallthru
      _
    // Predicated region
    $region38: #{tpu_custom_call.1} parent=1 // pred_check
      _
    $region39: #{tpu_custom_call.1} parent=1 // pred_check_branch
      %63 = sbr.rel (0) target = $region41
    $region40: #{tpu_custom_call.1} parent=1 // pred_region
      %64 = dma.done [#allocation9], 16
    $region41: #{tpu_custom_call.1} parent=1 // pred_fallthru
      _
    %65 = sfence
    %v66 = vld [vmem:[#allocation3] sm:$0xff]
    %v67 = vld [vmem:[#allocation3 + $0x8] sm:$0xff]
    %v68 = vld [vmem:[#allocation3 + $0x10] sm:$0xff]
    %v69 = vld [vmem:[#allocation3 + $0x18] sm:$0xff]
    %v70 = vld [vmem:[#allocation3 + $0x20] sm:$0xff]
    %v71 = vld [vmem:[#allocation3 + $0x28] sm:$0xff]
    %v72 = vld [vmem:[#allocation3 + $0x30] sm:$0xff]
    %v73 = vld [vmem:[#allocation3 + $0x38] sm:$0xff]
    %v74 = vld [vmem:[#allocation3 + $0x40] sm:$0xff]
    %v75 = vld [vmem:[#allocation3 + $0x48] sm:$0xff]
    %v76 = vld [vmem:[#allocation3 + $0x50] sm:$0xff]
    %v77 = vld [vmem:[#allocation3 + $0x58] sm:$0xff]
    %v78 = vld [vmem:[#allocation3 + $0x60] sm:$0xff]
    %v79 = vld [vmem:[#allocation3 + $0x68] sm:$0xff]
    %v80 = vld [vmem:[#allocation3 + $0x70] sm:$0xff]
    %v81 = vld [vmem:[#allocation3 + $0x78] sm:$0xff]
    %v82 = vadd.f32 %v66, %v67
    %83 = vadd.xlane.f32.xlu0 %v82
    %v84 = vpop.xlane.xlu0 %83
    %v85 = vadd.f32 %v68, %v69
    %86 = vadd.xlane.f32.xlu0 %v85
    %v87 = vpop.xlane.xlu0 %86
    %v88 = vadd.f32 %v70, %v71
    %89 = vadd.xlane.f32.xlu0 %v88
    %v90 = vpop.xlane.xlu0 %89
    %v91 = vadd.f32 %v72, %v73
    %92 = vadd.xlane.f32.xlu0 %v91
    %v93 = vpop.xlane.xlu0 %92
    %v94 = vadd.f32 %v74, %v75
    %95 = vadd.xlane.f32.xlu0 %v94
    %v96 = vpop.xlane.xlu0 %95
    %v97 = vadd.f32 %v76, %v77
    %98 = vadd.xlane.f32.xlu0 %v97
    %v99 = vpop.xlane.xlu0 %98
    %v100 = vadd.f32 %v78, %v79
    %101 = vadd.xlane.f32.xlu0 %v100
    %v102 = vpop.xlane.xlu0 %101
    %v103 = vadd.f32 %v80, %v81
    %104 = vadd.xlane.f32.xlu0 %v103
    %v105 = vpop.xlane.xlu0 %104
    %v106 = vrcp.pop 256.0
    %v107 = vmul.f32 %v84, %v106
    %v108 = vmul.f32 %v87, %v106
    %v109 = vmul.f32 %v90, %v106
    %v110 = vmul.f32 %v93, %v106
    %v111 = vmul.f32 %v96, %v106
    %v112 = vmul.f32 %v99, %v106
    %v113 = vmul.f32 %v102, %v106
    %v114 = vmul.f32 %v105, %v106
    %v115 = vmax.f32 %v66, %v67
    %116 = vmax.xlane.f32.xlu0 %v115
    %v117 = vpop.xlane.xlu0 %116
    %v118 = vmax.f32 %v68, %v69
    %119 = vmax.xlane.f32.xlu0 %v118
    %v120 = vpop.xlane.xlu0 %119
    %v121 = vmax.f32 %v70, %v71
    %122 = vmax.xlane.f32.xlu0 %v121
    %v123 = vpop.xlane.xlu0 %122
    %v124 = vmax.f32 %v72, %v73
    %125 = vmax.xlane.f32.xlu0 %v124
    %v126 = vpop.xlane.xlu0 %125
    %v127 = vmax.f32 %v74, %v75
    %128 = vmax.xlane.f32.xlu0 %v127
    %v129 = vpop.xlane.xlu0 %128
    %v130 = vmax.f32 %v76, %v77
    %131 = vmax.xlane.f32.xlu0 %v130
    %v132 = vpop.xlane.xlu0 %131
    %v133 = vmax.f32 %v78, %v79
    %134 = vmax.xlane.f32.xlu0 %v133
    %v135 = vpop.xlane.xlu0 %134
    %v136 = vmax.f32 %v80, %v81
    %137 = vmax.xlane.f32.xlu0 %v136
    %v138 = vpop.xlane.xlu0 %137
    %v147 = vlaneseq
    %v148 = vand.u32 %v147, 127
    %v149 = vlaneseq
    %v150 = vshrl.u32 %v149, 7
    %v151 = vsub.s32 %v148, %v150
    %v152 = vrot.slane %v107, %v151
    %v153 = vadd.s32 %v148, 4294967288
    %v154 = vlaneseq
    %v155 = vshrl.u32 %v154, 7
    %v156 = vsub.s32 %v153, %v155
    %v157 = vrot.slane %v108, %v156
    %vm158 = vcmask 130112
    %v159 = vsel %vm158, %v157, %v152
    %v160 = vadd.s32 %v148, 4294967280
    %v161 = vlaneseq
    %v162 = vshrl.u32 %v161, 7
    %v163 = vsub.s32 %v160, %v162
    %v164 = vrot.slane %v109, %v163
    %vm165 = vcmask 195712
    %v166 = vsel %vm165, %v164, %v159
    %v167 = vadd.s32 %v148, 4294967272
    %v168 = vlaneseq
    %v169 = vshrl.u32 %v168, 7
    %v170 = vsub.s32 %v167, %v169
    %v171 = vrot.slane %v110, %v170
    %vm172 = vcmask 261312
    %v173 = vsel %vm172, %v171, %v166
    %v174 = vlaneseq
    %v175 = vshrl.u32 %v174, 7
    %v176 = vsub.s32 %v148, %v175
    %v177 = vrot.slane %v111, %v176
    %v178 = vlaneseq
    %v179 = vshrl.u32 %v178, 7
    %v180 = vsub.s32 %v153, %v179
    %v181 = vrot.slane %v112, %v180
    %v182 = vsel %vm158, %v181, %v177
    %v183 = vlaneseq
    %v184 = vshrl.u32 %v183, 7
    %v185 = vsub.s32 %v160, %v184
    %v186 = vrot.slane %v113, %v185
    %v187 = vsel %vm165, %v186, %v182
    %v188 = vlaneseq
    %v189 = vshrl.u32 %v188, 7
    %v190 = vsub.s32 %v167, %v189
    %v191 = vrot.slane %v114, %v190
    %v192 = vsel %vm172, %v191, %v187
    %vm193 = vcmask 1041409
    %v194 = vsel %vm193, %v192, %v173
    %v204 = vlaneseq
    %v205 = vshrl.u32 %v204, 7
    %v206 = vsub.s32 %v148, %v205
    %v207 = vrot.slane %v117, %v206
    %v208 = vlaneseq
    %v209 = vshrl.u32 %v208, 7
    %v210 = vsub.s32 %v153, %v209
    %v211 = vrot.slane %v120, %v210
    %v212 = vsel %vm158, %v211, %v207
    %v213 = vlaneseq
    %v214 = vshrl.u32 %v213, 7
    %v215 = vsub.s32 %v160, %v214
    %v216 = vrot.slane %v123, %v215
    %v217 = vsel %vm165, %v216, %v212
    %v218 = vlaneseq
    %v219 = vshrl.u32 %v218, 7
    %v220 = vsub.s32 %v167, %v219
    %v221 = vrot.slane %v126, %v220
    %v222 = vsel %vm172, %v221, %v217
    %v223 = vlaneseq
    %v224 = vshrl.u32 %v223, 7
    %v225 = vsub.s32 %v148, %v224
    %v226 = vrot.slane %v129, %v225
    %v227 = vlaneseq
    %v228 = vshrl.u32 %v227, 7
    %v229 = vsub.s32 %v153, %v228
    %v230 = vrot.slane %v132, %v229
    %v231 = vsel %vm158, %v230, %v226
    %v232 = vlaneseq
    %v233 = vshrl.u32 %v232, 7
    %v234 = vsub.s32 %v160, %v233
    %v235 = vrot.slane %v135, %v234
    %v236 = vsel %vm165, %v235, %v231
    %v237 = vlaneseq
    %v238 = vshrl.u32 %v237, 7
    %v239 = vsub.s32 %v167, %v238
    %v240 = vrot.slane %v138, %v239
    %v241 = vsel %vm172, %v240, %v236
    %vm242 = vcmask 1043459
    %v243 = vsel %vm242, %v241, %v222
    %vm245 = vcmask 1041408
    %v246 = vsel %vm245, %v194, %v243
    %v247 = vld [vmem:[%s1] sm:$0xff]
    %v248 = vld [vmem:[%s1 + $0x8] sm:$0xff]
    %v249 = vld [vmem:[%s1 + $0x10] sm:$0xff]
    %v250 = vld [vmem:[%s1 + $0x18] sm:$0xff]
    %v251 = vld [vmem:[%s2] sm:$0x1]
    %v253 = vlaneseq
    %v254 = vshrl.u32 %v253, 7
    %v255 = vsub.s32 0, %v254
    %v256 = vrot.slane %v251, %v255
    %vm258 = vcmask 261120
    %v260 = vsel %vm258, %v246, 0
    %262 = vmatprep.subr.mxu0 0.0
    %263 = vmatpush1.msra.mxu0 %v247
    %264 = vmatprep.subr.mxu0 0.0
    %265 = vmatpush1.msra.mxu0 %v248
    %266 = vmatprep.subr.mxu0 0.0
    %267 = vmatpush1.msra.mxu0 %v249
    %268 = vmatprep.subr.mxu0 0.0
    %269 = vmatpush1.msra.mxu0 %v250
    %270 = vmatprep.subr.mxu0 0.0
    %271 = vmatpush1.msra.mxu0 0.0
    %272 = vmatprep.subr.mxu0 0.0
    %273 = vmatpush1.msra.mxu0 0.0
    %274 = vmatprep.subr.mxu0 0.0
    %275 = vmatpush1.msra.mxu0 0.0
    %276 = vmatprep.subr.mxu0 0.0
    %277 = vmatpush1.msra.mxu0 0.0
    %278 = vmatprep.subr.mxu0 0.0
    %279 = vmatpush1.msra.mxu0 0.0
    %280 = vmatprep.subr.mxu0 0.0
    %281 = vmatpush1.msra.mxu0 0.0
    %282 = vmatprep.subr.mxu0 0.0
    %283 = vmatpush1.msra.mxu0 0.0
    %284 = vmatprep.subr.mxu0 0.0
    %285 = vmatpush1.msra.mxu0 0.0
    %286 = vmatprep.subr.mxu0 0.0
    %287 = vmatpush1.msra.mxu0 0.0
    %288 = vmatprep.subr.mxu0 0.0
    %289 = vmatpush1.msra.mxu0 0.0
    %290 = vmatprep.subr.mxu0 0.0
    %291 = vmatpush1.msra.mxu0 0.0
    %292 = vmatprep.subr.mxu0 0.0
    %293 = vmatpush1.msra.mxu0 0.0
    %294 = vmatprep.subr.mxu0 0.0
    %295 = vmatpush1.msra.mxu0 0.0
    %296 = vmatprep.subr.mxu0 0.0
    %297 = vmatpush1.msra.mxu0 0.0
    %298 = vmatprep.subr.mxu0 0.0
    %299 = vmatpush1.msra.mxu0 0.0
    %300 = vmatprep.subr.mxu0 0.0
    %301 = vmatpush1.msra.mxu0 0.0
    %302 = vmatprep.subr.mxu0 0.0
    %303 = vmatpush1.msra.mxu0 0.0
    %304 = vmatprep.subr.mxu0 0.0
    %305 = vmatpush1.msra.mxu0 0.0
    %306 = vmatprep.subr.mxu0 0.0
    %307 = vmatpush1.msra.mxu0 0.0
    %308 = vmatprep.subr.mxu0 0.0
    %309 = vmatpush1.msra.mxu0 0.0
    %310 = vmatprep.subr.mxu0 0.0
    %311 = vmatpush1.msra.mxu0 0.0
    %312 = vmatprep.subr.mxu0 0.0
    %313 = vmatpush1.msra.mxu0 0.0
    %314 = vmatprep.subr.mxu0 0.0
    %315 = vmatpush1.msra.mxu0 0.0
    %316 = vmatprep.subr.mxu0 0.0
    %317 = vmatpush1.msra.mxu0 0.0
    %318 = vmatprep.subr.mxu0 0.0
    %319 = vmatpush1.msra.mxu0 0.0
    %320 = vmatprep.subr.mxu0 0.0
    %321 = vmatpush1.msra.mxu0 0.0
    %322 = vmatprep.subr.mxu0 0.0
    %323 = vmatpush1.msra.mxu0 0.0
    %324 = vmatprep.subr.mxu0 0.0
    %325 = vmatpush1.msra.mxu0 0.0
    %326 = vmatprep.mubr.f32.mxu0 0.0
    %327 = vmatmul.mubr.f32.gmra.mrb[0].mxu0 %v260
    %v328 = vpop.f32.mrb[0].mxu0
    %v329 = vadd.f32 %v256, %v328
    %v330 = vpop.f32.mrb[0].mxu0
    %331 = vdwg.mxu0
    %v332 = vmax.f32 %v329, 0.0
    %v333 = vld [vmem:[%s3] sm:$0x3]
    %v334 = vld [vmem:[%s4] sm:$0x1]
    %v336 = vlaneseq
    %v337 = vshrl.u32 %v336, 7
    %v338 = vsub.s32 0, %v337
    %v339 = vrot.slane %v334, %v338
    %vm341 = vcmask 15360
    %v343 = vsel %vm341, %v332, 0
    %v346 = vsel %vm245, %v333, 0
    %348 = vmatprep.subr.mxu0 0.0
    %349 = vmatpush1.msra.mxu0 %v346
    %350 = vmatprep.subr.mxu0 0.0
    %351 = vmatpush1.msra.mxu0 0.0
    %352 = vmatprep.subr.mxu0 0.0
    %353 = vmatpush1.msra.mxu0 0.0
    %354 = vmatprep.subr.mxu0 0.0
    %355 = vmatpush1.msra.mxu0 0.0
    %356 = vmatprep.subr.mxu0 0.0
    %357 = vmatpush1.msra.mxu0 0.0
    %358 = vmatprep.subr.mxu0 0.0
    %359 = vmatpush1.msra.mxu0 0.0
    %360 = vmatprep.subr.mxu0 0.0
    %361 = vmatpush1.msra.mxu0 0.0
    %362 = vmatprep.subr.mxu0 0.0
    %363 = vmatpush1.msra.mxu0 0.0
    %364 = vmatprep.subr.mxu0 0.0
    %365 = vmatpush1.msra.mxu0 0.0
    %366 = vmatprep.subr.mxu0 0.0
    %367 = vmatpush1.msra.mxu0 0.0
    %368 = vmatprep.subr.mxu0 0.0
    %369 = vmatpush1.msra.mxu0 0.0
    %370 = vmatprep.subr.mxu0 0.0
    %371 = vmatpush1.msra.mxu0 0.0
    %372 = vmatprep.subr.mxu0 0.0
    %373 = vmatpush1.msra.mxu0 0.0
    %374 = vmatprep.subr.mxu0 0.0
    %375 = vmatpush1.msra.mxu0 0.0
    %376 = vmatprep.subr.mxu0 0.0
    %377 = vmatpush1.msra.mxu0 0.0
    %378 = vmatprep.subr.mxu0 0.0
    %379 = vmatpush1.msra.mxu0 0.0
    %380 = vmatprep.subr.mxu0 0.0
    %381 = vmatpush1.msra.mxu0 0.0
    %382 = vmatprep.subr.mxu0 0.0
    %383 = vmatpush1.msra.mxu0 0.0
    %384 = vmatprep.subr.mxu0 0.0
    %385 = vmatpush1.msra.mxu0 0.0
    %386 = vmatprep.subr.mxu0 0.0
    %387 = vmatpush1.msra.mxu0 0.0
    %388 = vmatprep.subr.mxu0 0.0
    %389 = vmatpush1.msra.mxu0 0.0
    %390 = vmatprep.subr.mxu0 0.0
    %391 = vmatpush1.msra.mxu0 0.0
    %392 = vmatprep.subr.mxu0 0.0
    %393 = vmatpush1.msra.mxu0 0.0
    %394 = vmatprep.subr.mxu0 0.0
    %395 = vmatpush1.msra.mxu0 0.0
    %396 = vmatprep.subr.mxu0 0.0
    %397 = vmatpush1.msra.mxu0 0.0
    %398 = vmatprep.subr.mxu0 0.0
    %399 = vmatpush1.msra.mxu0 0.0
    %400 = vmatprep.subr.mxu0 0.0
    %401 = vmatpush1.msra.mxu0 0.0
    %402 = vmatprep.subr.mxu0 0.0
    %403 = vmatpush1.msra.mxu0 0.0
    %404 = vmatprep.subr.mxu0 0.0
    %405 = vmatpush1.msra.mxu0 0.0
    %406 = vmatprep.subr.mxu0 0.0
    %407 = vmatpush1.msra.mxu0 0.0
    %408 = vmatprep.subr.mxu0 0.0
    %409 = vmatpush1.msra.mxu0 0.0
    %410 = vmatprep.subr.mxu0 0.0
    %411 = vmatpush1.msra.mxu0 0.0
    %412 = vmatprep.mubr.f32.mxu0 0.0
    %413 = vmatmul.mubr.f32.gmra.mrb[0].mxu0 %v343
    %v414 = vpop.f32.mrb[0].mxu0
    %v415 = vadd.f32 %v339, %v414
    %v416 = vpop.f32.mrb[0].mxu0
    %417 = vdwg.mxu0
    %v419 = vrot.slane %v415, 2
    %v421 = vadd.f32 %v415, %v419
    %v422 = vxor.u32 %v421, 2147483648
    %v423 = vmul.f32 %v422, 1.442695
    %v424 = vpow.pop %v423
    %v425 = vadd.f32 %v424, 1.0
    %v426 = vrcp.pop %v425
    %v427 = vmul.f32 1.0, %v426
    %v428 = vlaneseq
    %v429 = vshrl.u32 %v428, 7
    %v430 = vsub.s32 0, %v429
    %v431 = vrot.slane %v427, %v430
    %433 = vbcast.lane.b32.xlu0 %v431, 256
    %v434 = vpop.permute.xlu0 %433
    %s436 = sor.u32 256, 8
    %437 = vbcast.lane.b32.xlu0 %v431, %s436
    %v438 = vpop.permute.xlu0 %437
    %s440 = sor.u32 256, 16
    %441 = vbcast.lane.b32.xlu0 %v431, %s440
    %v442 = vpop.permute.xlu0 %441
    %s444 = sor.u32 256, 24
    %445 = vbcast.lane.b32.xlu0 %v431, %s444
    %v446 = vpop.permute.xlu0 %445
    %v447 = vlaneseq
    %v448 = vshrl.u32 %v447, 7
    %v449 = vsub.s32 1, %v448
    %v450 = vrot.slane %v427, %v449
    %452 = vbcast.lane.b32.xlu0 %v450, 256
    %v453 = vpop.permute.xlu0 %452
    %s455 = sor.u32 256, 8
    %456 = vbcast.lane.b32.xlu0 %v450, %s455
    %v457 = vpop.permute.xlu0 %456
    %s459 = sor.u32 256, 16
    %460 = vbcast.lane.b32.xlu0 %v450, %s459
    %v461 = vpop.permute.xlu0 %460
    %s463 = sor.u32 256, 24
    %464 = vbcast.lane.b32.xlu0 %v450, %s463
    %v465 = vpop.permute.xlu0 %464
    %v466 = vmul.f32 %v66, %v434
    %v467 = vmul.f32 %v67, %v434
    %v468 = vmul.f32 %v68, %v438
    %v469 = vmul.f32 %v69, %v438
    %v470 = vmul.f32 %v70, %v442
    %v471 = vmul.f32 %v71, %v442
    %v472 = vmul.f32 %v72, %v446
    %v473 = vmul.f32 %v73, %v446
    %v474 = vmul.f32 %v74, %v453
    %v475 = vmul.f32 %v75, %v453
    %v476 = vmul.f32 %v76, %v457
    %v477 = vmul.f32 %v77, %v457
    %v478 = vmul.f32 %v78, %v461
    %v479 = vmul.f32 %v79, %v461
    %v480 = vmul.f32 %v80, %v465
    %v481 = vmul.f32 %v81, %v465
    %v482 = vmax.f32 %v466, %v468
    %v483 = vmax.f32 %v482, %v470
    %v484 = vmax.f32 %v483, %v472
    %v485 = vrot.slane %v484, 4
    %v486 = vmax.f32 %v484, %v485
    %v487 = vrot.slane %v486, 2
    %v488 = vmax.f32 %v486, %v487
    %v489 = vrot.slane %v488, 1
    %v490 = vmax.f32 %v488, %v489
    %v491 = vmax.f32 %v467, %v469
    %v492 = vmax.f32 %v491, %v471
    %v493 = vmax.f32 %v492, %v473
    %v494 = vrot.slane %v493, 4
    %v495 = vmax.f32 %v493, %v494
    %v496 = vrot.slane %v495, 2
    %v497 = vmax.f32 %v495, %v496
    %v498 = vrot.slane %v497, 1
    %v499 = vmax.f32 %v497, %v498
    %v500 = vmax.f32 %v474, %v476
    %v501 = vmax.f32 %v500, %v478
    %v502 = vmax.f32 %v501, %v480
    %v503 = vrot.slane %v502, 4
    %v504 = vmax.f32 %v502, %v503
    %v505 = vrot.slane %v504, 2
    %v506 = vmax.f32 %v504, %v505
    %v507 = vrot.slane %v506, 1
    %v508 = vmax.f32 %v506, %v507
    %v509 = vmax.f32 %v475, %v477
    %v510 = vmax.f32 %v509, %v479
    %v511 = vmax.f32 %v510, %v481
    %v512 = vrot.slane %v511, 4
    %v513 = vmax.f32 %v511, %v512
    %v514 = vrot.slane %v513, 2
    %v515 = vmax.f32 %v513, %v514
    %v516 = vrot.slane %v515, 1
    %v517 = vmax.f32 %v515, %v516
    %520 = vrot.lane.b32.xlu0 %v490, 112
    %v521 = vpop.permute.xlu0 %520
    %522 = vrot.lane.b32.xlu0 %v508, 112
    %v523 = vpop.permute.xlu0 %522
    %524 = vrot.lane.b32.xlu0 %v490, 96
    %v525 = vpop.permute.xlu0 %524
    %526 = vrot.lane.b32.xlu0 %v508, 96
    %v527 = vpop.permute.xlu0 %526
    %528 = vrot.lane.b32.xlu0 %v490, 80
    %v529 = vpop.permute.xlu0 %528
    %530 = vrot.lane.b32.xlu0 %v508, 80
    %v531 = vpop.permute.xlu0 %530
    %532 = vrot.lane.b32.xlu0 %v490, 64
    %v533 = vpop.permute.xlu0 %532
    %534 = vrot.lane.b32.xlu0 %v508, 64
    %v535 = vpop.permute.xlu0 %534
    %536 = vrot.lane.b32.xlu0 %v490, 48
    %v537 = vpop.permute.xlu0 %536
    %538 = vrot.lane.b32.xlu0 %v508, 48
    %v539 = vpop.permute.xlu0 %538
    %540 = vrot.lane.b32.xlu0 %v490, 32
    %v541 = vpop.permute.xlu0 %540
    %542 = vrot.lane.b32.xlu0 %v508, 32
    %v543 = vpop.permute.xlu0 %542
    %544 = vrot.lane.b32.xlu0 %v490, 16
    %v545 = vpop.permute.xlu0 %544
    %546 = vrot.lane.b32.xlu0 %v508, 16
    %v547 = vpop.permute.xlu0 %546
    %550 = vrot.lane.b32.xlu0 %v499, 112
    %v551 = vpop.permute.xlu0 %550
    %552 = vrot.lane.b32.xlu0 %v517, 112
    %v553 = vpop.permute.xlu0 %552
    %554 = vrot.lane.b32.xlu0 %v499, 96
    %v555 = vpop.permute.xlu0 %554
    %556 = vrot.lane.b32.xlu0 %v517, 96
    %v557 = vpop.permute.xlu0 %556
    %558 = vrot.lane.b32.xlu0 %v499, 80
    %v559 = vpop.permute.xlu0 %558
    %560 = vrot.lane.b32.xlu0 %v517, 80
    %v561 = vpop.permute.xlu0 %560
    %562 = vrot.lane.b32.xlu0 %v499, 64
    %v563 = vpop.permute.xlu0 %562
    %564 = vrot.lane.b32.xlu0 %v517, 64
    %v565 = vpop.permute.xlu0 %564
    %566 = vrot.lane.b32.xlu0 %v499, 48
    %v567 = vpop.permute.xlu0 %566
    %568 = vrot.lane.b32.xlu0 %v517, 48
    %v569 = vpop.permute.xlu0 %568
    %570 = vrot.lane.b32.xlu0 %v499, 32
    %v571 = vpop.permute.xlu0 %570
    %572 = vrot.lane.b32.xlu0 %v517, 32
    %v573 = vpop.permute.xlu0 %572
    %574 = vrot.lane.b32.xlu0 %v499, 16
    %v575 = vpop.permute.xlu0 %574
    %576 = vrot.lane.b32.xlu0 %v517, 16
    %v577 = vpop.permute.xlu0 %576
    %v578 = vrot.slane %v508, 7
    %v579 = vsel %vm193, %v578, %v490
    %v580 = vrot.slane %v523, 7
    %v581 = vsel %vm193, %v580, %v521
    %v582 = vrot.slane %v527, 7
    %v583 = vsel %vm193, %v582, %v525
    %v584 = vrot.slane %v531, 7
    %v585 = vsel %vm193, %v584, %v529
    %v586 = vrot.slane %v535, 7
    %v587 = vsel %vm193, %v586, %v533
    %v588 = vrot.slane %v539, 7
    %v589 = vsel %vm193, %v588, %v537
    %v590 = vrot.slane %v543, 7
    %v591 = vsel %vm193, %v590, %v541
    %v592 = vrot.slane %v547, 7
    %v593 = vsel %vm193, %v592, %v545
    %v594 = vrot.slane %v517, 7
    %v595 = vsel %vm193, %v594, %v499
    %v596 = vrot.slane %v553, 7
    %v597 = vsel %vm193, %v596, %v551
    %v598 = vrot.slane %v557, 7
    %v599 = vsel %vm193, %v598, %v555
    %v600 = vrot.slane %v561, 7
    %v601 = vsel %vm193, %v600, %v559
    %v602 = vrot.slane %v565, 7
    %v603 = vsel %vm193, %v602, %v563
    %v604 = vrot.slane %v569, 7
    %v605 = vsel %vm193, %v604, %v567
    %v606 = vrot.slane %v573, 7
    %v607 = vsel %vm193, %v606, %v571
    %v608 = vrot.slane %v577, 7
    %v609 = vsel %vm193, %v608, %v575
    %v626 = vcombine.low %v579, %v583
    %v628 = vunpack.c.l.s4 1983009808
    %v629 = vunpack.c.0.s8 %v628
    %v630 = vlaneseq
    %v631 = vshrl.u32 %v630, 7
    %v632 = vsub.s32 %v629, %v631
    %v633 = vrot.slane %v626, %v632
    %v634 = vcombine.low %v581, %v585
    %v636 = vunpack.c.l.s4 1983009808
    %v637 = vunpack.c.0.s8 %v636
    %v638 = vlaneseq
    %v639 = vshrl.u32 %v638, 7
    %v640 = vsub.s32 %v637, %v639
    %v641 = vrot.slane %v634, %v640
    %v642 = vcombine.low %v587, %v591
    %v644 = vunpack.c.l.s4 1983009808
    %v645 = vunpack.c.0.s8 %v644
    %v646 = vlaneseq
    %v647 = vshrl.u32 %v646, 7
    %v648 = vsub.s32 %v645, %v647
    %v649 = vrot.slane %v642, %v648
    %v650 = vcombine.low %v589, %v593
    %v652 = vunpack.c.l.s4 1983009808
    %v653 = vunpack.c.0.s8 %v652
    %v654 = vlaneseq
    %v655 = vshrl.u32 %v654, 7
    %v656 = vsub.s32 %v653, %v655
    %v657 = vrot.slane %v650, %v656
    %v658 = vcombine.low %v633, %v641
    %v660 = vunpack.c.l.s4 1934713408
    %v661 = vunpack.c.0.s8 %v660
    %v662 = vlaneseq
    %v663 = vshrl.u32 %v662, 7
    %v664 = vsub.s32 %v661, %v663
    %v665 = vrot.slane %v658, %v664
    %v666 = vcombine.low %v649, %v657
    %v668 = vunpack.c.l.s4 1934713408
    %v669 = vunpack.c.0.s8 %v668
    %v670 = vlaneseq
    %v671 = vshrl.u32 %v670, 7
    %v672 = vsub.s32 %v669, %v671
    %v673 = vrot.slane %v666, %v672
    %v674 = vcombine.low %v665, %v673
    %v675 = vcombine.high %v665, %v673
    %v676 = vcombine.low %v595, %v599
    %v678 = vunpack.c.l.s4 1983009808
    %v679 = vunpack.c.0.s8 %v678
    %v680 = vlaneseq
    %v681 = vshrl.u32 %v680, 7
    %v682 = vsub.s32 %v679, %v681
    %v683 = vrot.slane %v676, %v682
    %v684 = vcombine.low %v597, %v601
    %v686 = vunpack.c.l.s4 1983009808
    %v687 = vunpack.c.0.s8 %v686
    %v688 = vlaneseq
    %v689 = vshrl.u32 %v688, 7
    %v690 = vsub.s32 %v687, %v689
    %v691 = vrot.slane %v684, %v690
    %v692 = vcombine.low %v603, %v607
    %v694 = vunpack.c.l.s4 1983009808
    %v695 = vunpack.c.0.s8 %v694
    %v696 = vlaneseq
    %v697 = vshrl.u32 %v696, 7
    %v698 = vsub.s32 %v695, %v697
    %v699 = vrot.slane %v692, %v698
    %v700 = vcombine.low %v605, %v609
    %v702 = vunpack.c.l.s4 1983009808
    %v703 = vunpack.c.0.s8 %v702
    %v704 = vlaneseq
    %v705 = vshrl.u32 %v704, 7
    %v706 = vsub.s32 %v703, %v705
    %v707 = vrot.slane %v700, %v706
    %v708 = vcombine.low %v683, %v691
    %v710 = vunpack.c.l.s4 1934713408
    %v711 = vunpack.c.0.s8 %v710
    %v712 = vlaneseq
    %v713 = vshrl.u32 %v712, 7
    %v714 = vsub.s32 %v711, %v713
    %v715 = vrot.slane %v708, %v714
    %v716 = vcombine.low %v699, %v707
    %v718 = vunpack.c.l.s4 1934713408
    %v719 = vunpack.c.0.s8 %v718
    %v720 = vlaneseq
    %v721 = vshrl.u32 %v720, 7
    %v722 = vsub.s32 %v719, %v721
    %v723 = vrot.slane %v716, %v722
    %v724 = vcombine.low %v715, %v723
    %v725 = vcombine.high %v715, %v723
    %v726 = vadd.f32 %v466, %v468
    %v727 = vadd.f32 %v726, %v470
    %v728 = vadd.f32 %v727, %v472
    %v729 = vrot.slane %v728, 4
    %v730 = vadd.f32 %v728, %v729
    %v731 = vrot.slane %v730, 2
    %v732 = vadd.f32 %v730, %v731
    %v733 = vrot.slane %v732, 1
    %v734 = vadd.f32 %v732, %v733
    %v735 = vadd.f32 %v467, %v469
    %v736 = vadd.f32 %v735, %v471
    %v737 = vadd.f32 %v736, %v473
    %v738 = vrot.slane %v737, 4
    %v739 = vadd.f32 %v737, %v738
    %v740 = vrot.slane %v739, 2
    %v741 = vadd.f32 %v739, %v740
    %v742 = vrot.slane %v741, 1
    %v743 = vadd.f32 %v741, %v742
    %v744 = vadd.f32 %v474, %v476
    %v745 = vadd.f32 %v744, %v478
    %v746 = vadd.f32 %v745, %v480
    %v747 = vrot.slane %v746, 4
    %v748 = vadd.f32 %v746, %v747
    %v749 = vrot.slane %v748, 2
    %v750 = vadd.f32 %v748, %v749
    %v751 = vrot.slane %v750, 1
    %v752 = vadd.f32 %v750, %v751
    %v753 = vadd.f32 %v475, %v477
    %v754 = vadd.f32 %v753, %v479
    %v755 = vadd.f32 %v754, %v481
    %v756 = vrot.slane %v755, 4
    %v757 = vadd.f32 %v755, %v756
    %v758 = vrot.slane %v757, 2
    %v759 = vadd.f32 %v757, %v758
    %v760 = vrot.slane %v759, 1
    %v761 = vadd.f32 %v759, %v760
    %v762 = vrcp.pop 32.0
    %v763 = vmul.f32 %v734, %v762
    %v764 = vmul.f32 %v743, %v762
    %v765 = vmul.f32 %v752, %v762
    %v766 = vmul.f32 %v761, %v762
    %769 = vrot.lane.b32.xlu0 %v763, 112
    %v770 = vpop.permute.xlu0 %769
    %771 = vrot.lane.b32.xlu0 %v765, 112
    %v772 = vpop.permute.xlu0 %771
    %773 = vrot.lane.b32.xlu0 %v763, 96
    %v774 = vpop.permute.xlu0 %773
    %775 = vrot.lane.b32.xlu0 %v765, 96
    %v776 = vpop.permute.xlu0 %775
    %777 = vrot.lane.b32.xlu0 %v763, 80
    %v778 = vpop.permute.xlu0 %777
    %779 = vrot.lane.b32.xlu0 %v765, 80
    %v780 = vpop.permute.xlu0 %779
    %781 = vrot.lane.b32.xlu0 %v763, 64
    %v782 = vpop.permute.xlu0 %781
    %783 = vrot.lane.b32.xlu0 %v765, 64
    %v784 = vpop.permute.xlu0 %783
    %785 = vrot.lane.b32.xlu0 %v763, 48
    %v786 = vpop.permute.xlu0 %785
    %787 = vrot.lane.b32.xlu0 %v765, 48
    %v788 = vpop.permute.xlu0 %787
    %789 = vrot.lane.b32.xlu0 %v763, 32
    %v790 = vpop.permute.xlu0 %789
    %791 = vrot.lane.b32.xlu0 %v765, 32
    %v792 = vpop.permute.xlu0 %791
    %793 = vrot.lane.b32.xlu0 %v763, 16
    %v794 = vpop.permute.xlu0 %793
    %795 = vrot.lane.b32.xlu0 %v765, 16
    %v796 = vpop.permute.xlu0 %795
    %799 = vrot.lane.b32.xlu0 %v764, 112
    %v800 = vpop.permute.xlu0 %799
    %801 = vrot.lane.b32.xlu0 %v766, 112
    %v802 = vpop.permute.xlu0 %801
    %803 = vrot.lane.b32.xlu0 %v764, 96
    %v804 = vpop.permute.xlu0 %803
    %805 = vrot.lane.b32.xlu0 %v766, 96
    %v806 = vpop.permute.xlu0 %805
    %807 = vrot.lane.b32.xlu0 %v764, 80
    %v808 = vpop.permute.xlu0 %807
    %809 = vrot.lane.b32.xlu0 %v766, 80
    %v810 = vpop.permute.xlu0 %809
    %811 = vrot.lane.b32.xlu0 %v764, 64
    %v812 = vpop.permute.xlu0 %811
    %813 = vrot.lane.b32.xlu0 %v766, 64
    %v814 = vpop.permute.xlu0 %813
    %815 = vrot.lane.b32.xlu0 %v764, 48
    %v816 = vpop.permute.xlu0 %815
    %817 = vrot.lane.b32.xlu0 %v766, 48
    %v818 = vpop.permute.xlu0 %817
    %819 = vrot.lane.b32.xlu0 %v764, 32
    %v820 = vpop.permute.xlu0 %819
    %821 = vrot.lane.b32.xlu0 %v766, 32
    %v822 = vpop.permute.xlu0 %821
    %823 = vrot.lane.b32.xlu0 %v764, 16
    %v824 = vpop.permute.xlu0 %823
    %825 = vrot.lane.b32.xlu0 %v766, 16
    %v826 = vpop.permute.xlu0 %825
    %v827 = vrot.slane %v765, 7
    %v828 = vsel %vm193, %v827, %v763
    %v829 = vrot.slane %v772, 7
    %v830 = vsel %vm193, %v829, %v770
    %v831 = vrot.slane %v776, 7
    %v832 = vsel %vm193, %v831, %v774
    %v833 = vrot.slane %v780, 7
    %v834 = vsel %vm193, %v833, %v778
    %v835 = vrot.slane %v784, 7
    %v836 = vsel %vm193, %v835, %v782
    %v837 = vrot.slane %v788, 7
    %v838 = vsel %vm193, %v837, %v786
    %v839 = vrot.slane %v792, 7
    %v840 = vsel %vm193, %v839, %v790
    %v841 = vrot.slane %v796, 7
    %v842 = vsel %vm193, %v841, %v794
    %v843 = vrot.slane %v766, 7
    %v844 = vsel %vm193, %v843, %v764
    %v845 = vrot.slane %v802, 7
    %v846 = vsel %vm193, %v845, %v800
    %v847 = vrot.slane %v806, 7
    %v848 = vsel %vm193, %v847, %v804
    %v849 = vrot.slane %v810, 7
    %v850 = vsel %vm193, %v849, %v808
    %v851 = vrot.slane %v814, 7
    %v852 = vsel %vm193, %v851, %v812
    %v853 = vrot.slane %v818, 7
    %v854 = vsel %vm193, %v853, %v816
    %v855 = vrot.slane %v822, 7
    %v856 = vsel %vm193, %v855, %v820
    %v857 = vrot.slane %v826, 7
    %v858 = vsel %vm193, %v857, %v824
    %v875 = vcombine.low %v828, %v832
    %v877 = vunpack.c.l.s4 1983009808
    %v878 = vunpack.c.0.s8 %v877
    %v879 = vlaneseq
    %v880 = vshrl.u32 %v879, 7
    %v881 = vsub.s32 %v878, %v880
    %v882 = vrot.slane %v875, %v881
    %v883 = vcombine.low %v830, %v834
    %v885 = vunpack.c.l.s4 1983009808
    %v886 = vunpack.c.0.s8 %v885
    %v887 = vlaneseq
    %v888 = vshrl.u32 %v887, 7
    %v889 = vsub.s32 %v886, %v888
    %v890 = vrot.slane %v883, %v889
    %v891 = vcombine.low %v836, %v840
    %v893 = vunpack.c.l.s4 1983009808
    %v894 = vunpack.c.0.s8 %v893
    %v895 = vlaneseq
    %v896 = vshrl.u32 %v895, 7
    %v897 = vsub.s32 %v894, %v896
    %v898 = vrot.slane %v891, %v897
    %v899 = vcombine.low %v838, %v842
    %v901 = vunpack.c.l.s4 1983009808
    %v902 = vunpack.c.0.s8 %v901
    %v903 = vlaneseq
    %v904 = vshrl.u32 %v903, 7
    %v905 = vsub.s32 %v902, %v904
    %v906 = vrot.slane %v899, %v905
    %v907 = vcombine.low %v882, %v890
    %v909 = vunpack.c.l.s4 1934713408
    %v910 = vunpack.c.0.s8 %v909
    %v911 = vlaneseq
    %v912 = vshrl.u32 %v911, 7
    %v913 = vsub.s32 %v910, %v912
    %v914 = vrot.slane %v907, %v913
    %v915 = vcombine.low %v898, %v906
    %v917 = vunpack.c.l.s4 1934713408
    %v918 = vunpack.c.0.s8 %v917
    %v919 = vlaneseq
    %v920 = vshrl.u32 %v919, 7
    %v921 = vsub.s32 %v918, %v920
    %v922 = vrot.slane %v915, %v921
    %v923 = vcombine.low %v914, %v922
    %v924 = vcombine.high %v914, %v922
    %v925 = vcombine.low %v844, %v848
    %v927 = vunpack.c.l.s4 1983009808
    %v928 = vunpack.c.0.s8 %v927
    %v929 = vlaneseq
    %v930 = vshrl.u32 %v929, 7
    %v931 = vsub.s32 %v928, %v930
    %v932 = vrot.slane %v925, %v931
    %v933 = vcombine.low %v846, %v850
    %v935 = vunpack.c.l.s4 1983009808
    %v936 = vunpack.c.0.s8 %v935
    %v937 = vlaneseq
    %v938 = vshrl.u32 %v937, 7
    %v939 = vsub.s32 %v936, %v938
    %v940 = vrot.slane %v933, %v939
    %v941 = vcombine.low %v852, %v856
    %v943 = vunpack.c.l.s4 1983009808
    %v944 = vunpack.c.0.s8 %v943
    %v945 = vlaneseq
    %v946 = vshrl.u32 %v945, 7
    %v947 = vsub.s32 %v944, %v946
    %v948 = vrot.slane %v941, %v947
    %v949 = vcombine.low %v854, %v858
    %v951 = vunpack.c.l.s4 1983009808
    %v952 = vunpack.c.0.s8 %v951
    %v953 = vlaneseq
    %v954 = vshrl.u32 %v953, 7
    %v955 = vsub.s32 %v952, %v954
    %v956 = vrot.slane %v949, %v955
    %v957 = vcombine.low %v932, %v940
    %v959 = vunpack.c.l.s4 1934713408
    %v960 = vunpack.c.0.s8 %v959
    %v961 = vlaneseq
    %v962 = vshrl.u32 %v961, 7
    %v963 = vsub.s32 %v960, %v962
    %v964 = vrot.slane %v957, %v963
    %v965 = vcombine.low %v948, %v956
    %v967 = vunpack.c.l.s4 1934713408
    %v968 = vunpack.c.0.s8 %v967
    %v969 = vlaneseq
    %v970 = vshrl.u32 %v969, 7
    %v971 = vsub.s32 %v968, %v970
    %v972 = vrot.slane %v965, %v971
    %v973 = vcombine.low %v964, %v972
    %v974 = vcombine.high %v964, %v972
    %vm975 = vcmask 179200
    %976 = vst.msk [vmem:[#allocation2] sm:$0xff] %vm975, 0.0
    %977 = vst.msk [vmem:[#allocation2 + $0x8] sm:$0xff] %vm975, 0.0
    %vm978 = vcmask 177152
    %979 = vst.msk [vmem:[#allocation2 + $0x10] sm:$0x3f] %vm978, 0.0
    %980 = vst.msk [vmem:[#allocation2 + $0x18] sm:$0xff] %vm975, 0.0
    %981 = vst.msk [vmem:[#allocation2 + $0x20] sm:$0xff] %vm975, 0.0
    %982 = vst.msk [vmem:[#allocation2 + $0x28] sm:$0x3f] %vm978, 0.0
    %983 = vst.msk [vmem:[#allocation2 + $0x30] sm:$0xff] %vm975, 0.0
    %984 = vst.msk [vmem:[#allocation2 + $0x38] sm:$0xff] %vm975, 0.0
    %985 = vst.msk [vmem:[#allocation2 + $0x40] sm:$0x3f] %vm978, 0.0
    %986 = vst.msk [vmem:[#allocation2 + $0x48] sm:$0xff] %vm975, 0.0
    %987 = vst.msk [vmem:[#allocation2 + $0x50] sm:$0xff] %vm975, 0.0
    %988 = vst.msk [vmem:[#allocation2 + $0x58] sm:$0x3f] %vm978, 0.0
    %993 = vrot.lane.b32.xlu0 %v674, 3
    %v994 = vpop.permute.xlu0 %993
    %995 = vrot.lane.b32.xlu0 %v724, 3
    %v996 = vpop.permute.xlu0 %995
    %997 = vrot.lane.b32.xlu0 %v675, 3
    %v998 = vpop.permute.xlu0 %997
    %999 = vrot.lane.b32.xlu0 %v725, 3
    %v1000 = vpop.permute.xlu0 %999
    %vm1005 = vcmask 154648
    %1006 = vst.msk [vmem:[#allocation2 + $0x3] sm:$0xff] %vm1005, %v994
    %1007 = vst.msk [vmem:[#allocation2 + $0xb] sm:$0xff] %vm1005, %v996
    %1008 = vst.msk [vmem:[#allocation2 + $0x1b] sm:$0xff] %vm1005, %v998
    %1009 = vst.msk [vmem:[#allocation2 + $0x23] sm:$0xff] %vm1005, %v1000
    %1014 = vrot.lane.b32.xlu0 %v923, 3
    %v1015 = vpop.permute.xlu0 %1014
    %1016 = vrot.lane.b32.xlu0 %v973, 3
    %v1017 = vpop.permute.xlu0 %1016
    %1018 = vrot.lane.b32.xlu0 %v924, 3
    %v1019 = vpop.permute.xlu0 %1018
    %1020 = vrot.lane.b32.xlu0 %v974, 3
    %v1021 = vpop.permute.xlu0 %1020
    %s1026 = scalar_lea.vmem [#allocation2], 48
    %1027 = vst.msk [vmem:[%s1026 + $0x3] sm:$0xff] %vm1005, %v1015
    %1028 = vst.msk [vmem:[%s1026 + $0xb] sm:$0xff] %vm1005, %v1017
    %1029 = vst.msk [vmem:[%s1026 + $0x1b] sm:$0xff] %vm1005, %v1019
    %1030 = vst.msk [vmem:[%s1026 + $0x23] sm:$0xff] %vm1005, %v1021
    %v1031 = vld [vmem:[#allocation2] sm:$0xff]
    %v1032 = vld [vmem:[#allocation2 + $0x8] sm:$0xff]
    %v1033 = vld [vmem:[#allocation2 + $0x18] sm:$0xff]
    %v1034 = vld [vmem:[#allocation2 + $0x20] sm:$0xff]
    %v1035 = vld [vmem:[%s1026] sm:$0xff]
    %v1036 = vld [vmem:[%s1026 + $0x8] sm:$0xff]
    %v1037 = vld [vmem:[%s1026 + $0x18] sm:$0xff]
    %v1038 = vld [vmem:[%s1026 + $0x20] sm:$0xff]
    %s1039 = sld [smem:[#allocation7]]
    %s1040 = sld [smem:[#allocation7 + $0x31]]
    %v1041 = vstv %s1039
    %v1042 = vmul.f32 %v1031, %v1041
    %v1043 = vmul.f32 %v1032, %v1041
    %v1044 = vmul.f32 %v1033, %v1041
    %v1045 = vmul.f32 %v1034, %v1041
    %v1046 = vadd.f32 %v1042, 0.0
    %v1047 = vadd.f32 %v1043, 0.0
    %v1048 = vadd.f32 %v1044, 0.0
    %v1049 = vadd.f32 %v1045, 0.0
    %v1050 = vstv %s1040
    %v1051 = vmul.f32 %v1035, %v1050
    %v1052 = vmul.f32 %v1036, %v1050
    %v1053 = vmul.f32 %v1037, %v1050
    %v1054 = vmul.f32 %v1038, %v1050
    %v1055 = vadd.f32 %v1046, %v1051
    %v1056 = vadd.f32 %v1047, %v1052
    %v1057 = vadd.f32 %v1048, %v1053
    %v1058 = vadd.f32 %v1049, %v1054
    %s1059 = sld [smem:[#allocation7 + $0x1]]
    %s1060 = sld [smem:[#allocation7 + $0x32]]
    %v1061 = vstv %s1059
    %v1062 = vmul.f32 %v1031, %v1061
    %v1063 = vmul.f32 %v1032, %v1061
    %v1064 = vmul.f32 %v1033, %v1061
    %v1065 = vmul.f32 %v1034, %v1061
    %1070 = vrot.lane.b32.xlu0 %v1062, 127
    %v1071 = vpop.permute.xlu0 %1070
    %1072 = vrot.lane.b32.xlu0 %v1063, 127
    %v1073 = vpop.permute.xlu0 %1072
    %1074 = vrot.lane.b32.xlu0 %v1064, 127
    %v1075 = vpop.permute.xlu0 %1074
    %1076 = vrot.lane.b32.xlu0 %v1065, 127
    %v1077 = vpop.permute.xlu0 %1076
    %v1082 = vadd.f32 %v1055, %v1071
    %v1083 = vadd.f32 %v1056, %v1073
    %v1084 = vadd.f32 %v1057, %v1075
    %v1085 = vadd.f32 %v1058, %v1077
    %v1086 = vstv %s1060
    %v1087 = vmul.f32 %v1035, %v1086
    %v1088 = vmul.f32 %v1036, %v1086
    %v1089 = vmul.f32 %v1037, %v1086
    %v1090 = vmul.f32 %v1038, %v1086
    %1095 = vrot.lane.b32.xlu0 %v1087, 127
    %v1096 = vpop.permute.xlu0 %1095
    %1097 = vrot.lane.b32.xlu0 %v1088, 127
    %v1098 = vpop.permute.xlu0 %1097
    %1099 = vrot.lane.b32.xlu0 %v1089, 127
    %v1100 = vpop.permute.xlu0 %1099
    %1101 = vrot.lane.b32.xlu0 %v1090, 127
    %v1102 = vpop.permute.xlu0 %1101
    %v1107 = vadd.f32 %v1082, %v1096
    %v1108 = vadd.f32 %v1083, %v1098
    %v1109 = vadd.f32 %v1084, %v1100
    %v1110 = vadd.f32 %v1085, %v1102
    %s1111 = sld [smem:[#allocation7 + $0x2]]
    %s1112 = sld [smem:[#allocation7 + $0x33]]
    %v1113 = vstv %s1111
    %v1114 = vmul.f32 %v1031, %v1113
    %v1115 = vmul.f32 %v1032, %v1113
    %v1116 = vmul.f32 %v1033, %v1113
    %v1117 = vmul.f32 %v1034, %v1113
    %1122 = vrot.lane.b32.xlu0 %v1114, 126
    %v1123 = vpop.permute.xlu0 %1122
    %1124 = vrot.lane.b32.xlu0 %v1115, 126
    %v1125 = vpop.permute.xlu0 %1124
    %1126 = vrot.lane.b32.xlu0 %v1116, 126
    %v1127 = vpop.permute.xlu0 %1126
    %1128 = vrot.lane.b32.xlu0 %v1117, 126
    %v1129 = vpop.permute.xlu0 %1128
    %v1134 = vadd.f32 %v1107, %v1123
    %v1135 = vadd.f32 %v1108, %v1125
    %v1136 = vadd.f32 %v1109, %v1127
    %v1137 = vadd.f32 %v1110, %v1129
    %v1138 = vstv %s1112
    %v1139 = vmul.f32 %v1035, %v1138
    %v1140 = vmul.f32 %v1036, %v1138
    %v1141 = vmul.f32 %v1037, %v1138
    %v1142 = vmul.f32 %v1038, %v1138
    %1147 = vrot.lane.b32.xlu0 %v1139, 126
    %v1148 = vpop.permute.xlu0 %1147
    %1149 = vrot.lane.b32.xlu0 %v1140, 126
    %v1150 = vpop.permute.xlu0 %1149
    %1151 = vrot.lane.b32.xlu0 %v1141, 126
    %v1152 = vpop.permute.xlu0 %1151
    %1153 = vrot.lane.b32.xlu0 %v1142, 126
    %v1154 = vpop.permute.xlu0 %1153
    %v1159 = vadd.f32 %v1134, %v1148
    %v1160 = vadd.f32 %v1135, %v1150
    %v1161 = vadd.f32 %v1136, %v1152
    %v1162 = vadd.f32 %v1137, %v1154
    %s1163 = sld [smem:[#allocation7 + $0x3]]
    %s1164 = sld [smem:[#allocation7 + $0x34]]
    %v1165 = vstv %s1163
    %v1166 = vmul.f32 %v1031, %v1165
    %v1167 = vmul.f32 %v1032, %v1165
    %v1168 = vmul.f32 %v1033, %v1165
    %v1169 = vmul.f32 %v1034, %v1165
    %1174 = vrot.lane.b32.xlu0 %v1166, 125
    %v1175 = vpop.permute.xlu0 %1174
    %1176 = vrot.lane.b32.xlu0 %v1167, 125
    %v1177 = vpop.permute.xlu0 %1176
    %1178 = vrot.lane.b32.xlu0 %v1168, 125
    %v1179 = vpop.permute.xlu0 %1178
    %1180 = vrot.lane.b32.xlu0 %v1169, 125
    %v1181 = vpop.permute.xlu0 %1180
    %v1186 = vadd.f32 %v1159, %v1175
    %v1187 = vadd.f32 %v1160, %v1177
    %v1188 = vadd.f32 %v1161, %v1179
    %v1189 = vadd.f32 %v1162, %v1181
    %v1190 = vstv %s1164
    %v1191 = vmul.f32 %v1035, %v1190
    %v1192 = vmul.f32 %v1036, %v1190
    %v1193 = vmul.f32 %v1037, %v1190
    %v1194 = vmul.f32 %v1038, %v1190
    %1199 = vrot.lane.b32.xlu0 %v1191, 125
    %v1200 = vpop.permute.xlu0 %1199
    %1201 = vrot.lane.b32.xlu0 %v1192, 125
    %v1202 = vpop.permute.xlu0 %1201
    %1203 = vrot.lane.b32.xlu0 %v1193, 125
    %v1204 = vpop.permute.xlu0 %1203
    %1205 = vrot.lane.b32.xlu0 %v1194, 125
    %v1206 = vpop.permute.xlu0 %1205
    %v1211 = vadd.f32 %v1186, %v1200
    %v1212 = vadd.f32 %v1187, %v1202
    %v1213 = vadd.f32 %v1188, %v1204
    %v1214 = vadd.f32 %v1189, %v1206
    %s1215 = sld [smem:[#allocation7 + $0x4]]
    %s1216 = sld [smem:[#allocation7 + $0x35]]
    %v1217 = vstv %s1215
    %v1218 = vmul.f32 %v1031, %v1217
    %v1219 = vmul.f32 %v1032, %v1217
    %v1220 = vmul.f32 %v1033, %v1217
    %v1221 = vmul.f32 %v1034, %v1217
    %1226 = vrot.lane.b32.xlu0 %v1218, 124
    %v1227 = vpop.permute.xlu0 %1226
    %1228 = vrot.lane.b32.xlu0 %v1219, 124
    %v1229 = vpop.permute.xlu0 %1228
    %1230 = vrot.lane.b32.xlu0 %v1220, 124
    %v1231 = vpop.permute.xlu0 %1230
    %1232 = vrot.lane.b32.xlu0 %v1221, 124
    %v1233 = vpop.permute.xlu0 %1232
    %v1238 = vadd.f32 %v1211, %v1227
    %v1239 = vadd.f32 %v1212, %v1229
    %v1240 = vadd.f32 %v1213, %v1231
    %v1241 = vadd.f32 %v1214, %v1233
    %v1242 = vstv %s1216
    %v1243 = vmul.f32 %v1035, %v1242
    %v1244 = vmul.f32 %v1036, %v1242
    %v1245 = vmul.f32 %v1037, %v1242
    %v1246 = vmul.f32 %v1038, %v1242
    %1251 = vrot.lane.b32.xlu0 %v1243, 124
    %v1252 = vpop.permute.xlu0 %1251
    %1253 = vrot.lane.b32.xlu0 %v1244, 124
    %v1254 = vpop.permute.xlu0 %1253
    %1255 = vrot.lane.b32.xlu0 %v1245, 124
    %v1256 = vpop.permute.xlu0 %1255
    %1257 = vrot.lane.b32.xlu0 %v1246, 124
    %v1258 = vpop.permute.xlu0 %1257
    %v1263 = vadd.f32 %v1238, %v1252
    %v1264 = vadd.f32 %v1239, %v1254
    %v1265 = vadd.f32 %v1240, %v1256
    %v1266 = vadd.f32 %v1241, %v1258
    %s1267 = sld [smem:[#allocation7 + $0x5]]
    %s1268 = sld [smem:[#allocation7 + $0x36]]
    %v1269 = vstv %s1267
    %v1270 = vmul.f32 %v1031, %v1269
    %v1271 = vmul.f32 %v1032, %v1269
    %v1272 = vmul.f32 %v1033, %v1269
    %v1273 = vmul.f32 %v1034, %v1269
    %1278 = vrot.lane.b32.xlu0 %v1270, 123
    %v1279 = vpop.permute.xlu0 %1278
    %1280 = vrot.lane.b32.xlu0 %v1271, 123
    %v1281 = vpop.permute.xlu0 %1280
    %1282 = vrot.lane.b32.xlu0 %v1272, 123
    %v1283 = vpop.permute.xlu0 %1282
    %1284 = vrot.lane.b32.xlu0 %v1273, 123
    %v1285 = vpop.permute.xlu0 %1284
    %v1290 = vadd.f32 %v1263, %v1279
    %v1291 = vadd.f32 %v1264, %v1281
    %v1292 = vadd.f32 %v1265, %v1283
    %v1293 = vadd.f32 %v1266, %v1285
    %v1294 = vstv %s1268
    %v1295 = vmul.f32 %v1035, %v1294
    %v1296 = vmul.f32 %v1036, %v1294
    %v1297 = vmul.f32 %v1037, %v1294
    %v1298 = vmul.f32 %v1038, %v1294
    %1303 = vrot.lane.b32.xlu0 %v1295, 123
    %v1304 = vpop.permute.xlu0 %1303
    %1305 = vrot.lane.b32.xlu0 %v1296, 123
    %v1306 = vpop.permute.xlu0 %1305
    %1307 = vrot.lane.b32.xlu0 %v1297, 123
    %v1308 = vpop.permute.xlu0 %1307
    %1309 = vrot.lane.b32.xlu0 %v1298, 123
    %v1310 = vpop.permute.xlu0 %1309
    %v1315 = vadd.f32 %v1290, %v1304
    %v1316 = vadd.f32 %v1291, %v1306
    %v1317 = vadd.f32 %v1292, %v1308
    %v1318 = vadd.f32 %v1293, %v1310
    %s1319 = sld [smem:[#allocation7 + $0x6]]
    %s1320 = sld [smem:[#allocation7 + $0x37]]
    %v1321 = vstv %s1319
    %v1322 = vmul.f32 %v1031, %v1321
    %v1323 = vmul.f32 %v1032, %v1321
    %v1324 = vmul.f32 %v1033, %v1321
    %v1325 = vmul.f32 %v1034, %v1321
    %1330 = vrot.lane.b32.xlu0 %v1322, 122
    %v1331 = vpop.permute.xlu0 %1330
    %1332 = vrot.lane.b32.xlu0 %v1323, 122
    %v1333 = vpop.permute.xlu0 %1332
    %1334 = vrot.lane.b32.xlu0 %v1324, 122
    %v1335 = vpop.permute.xlu0 %1334
    %1336 = vrot.lane.b32.xlu0 %v1325, 122
    %v1337 = vpop.permute.xlu0 %1336
    %v1342 = vadd.f32 %v1315, %v1331
    %v1343 = vadd.f32 %v1316, %v1333
    %v1344 = vadd.f32 %v1317, %v1335
    %v1345 = vadd.f32 %v1318, %v1337
    %v1346 = vstv %s1320
    %v1347 = vmul.f32 %v1035, %v1346
    %v1348 = vmul.f32 %v1036, %v1346
    %v1349 = vmul.f32 %v1037, %v1346
    %v1350 = vmul.f32 %v1038, %v1346
    %1355 = vrot.lane.b32.xlu0 %v1347, 122
    %v1356 = vpop.permute.xlu0 %1355
    %1357 = vrot.lane.b32.xlu0 %v1348, 122
    %v1358 = vpop.permute.xlu0 %1357
    %1359 = vrot.lane.b32.xlu0 %v1349, 122
    %v1360 = vpop.permute.xlu0 %1359
    %1361 = vrot.lane.b32.xlu0 %v1350, 122
    %v1362 = vpop.permute.xlu0 %1361
    %v1367 = vadd.f32 %v1342, %v1356
    %v1368 = vadd.f32 %v1343, %v1358
    %v1369 = vadd.f32 %v1344, %v1360
    %v1370 = vadd.f32 %v1345, %v1362
    %v1371 = vld [vmem:[#allocation2 + $0x1] sm:$0xff]
    %v1372 = vld [vmem:[#allocation2 + $0x9] sm:$0xff]
    %v1373 = vld [vmem:[#allocation2 + $0x19] sm:$0xff]
    %v1374 = vld [vmem:[#allocation2 + $0x21] sm:$0xff]
    %v1375 = vld [vmem:[%s1026 + $0x1] sm:$0xff]
    %v1376 = vld [vmem:[%s1026 + $0x9] sm:$0xff]
    %v1377 = vld [vmem:[%s1026 + $0x19] sm:$0xff]
    %v1378 = vld [vmem:[%s1026 + $0x21] sm:$0xff]
    %s1379 = sld [smem:[#allocation7 + $0x7]]
    %s1380 = sld [smem:[#allocation7 + $0x38]]
    %v1381 = vstv %s1379
    %v1382 = vmul.f32 %v1371, %v1381
    %v1383 = vmul.f32 %v1372, %v1381
    %v1384 = vmul.f32 %v1373, %v1381
    %v1385 = vmul.f32 %v1374, %v1381
    %v1386 = vadd.f32 %v1367, %v1382
    %v1387 = vadd.f32 %v1368, %v1383
    %v1388 = vadd.f32 %v1369, %v1384
    %v1389 = vadd.f32 %v1370, %v1385
    %v1390 = vstv %s1380
    %v1391 = vmul.f32 %v1375, %v1390
    %v1392 = vmul.f32 %v1376, %v1390
    %v1393 = vmul.f32 %v1377, %v1390
    %v1394 = vmul.f32 %v1378, %v1390
    %v1395 = vadd.f32 %v1386, %v1391
    %v1396 = vadd.f32 %v1387, %v1392
    %v1397 = vadd.f32 %v1388, %v1393
    %v1398 = vadd.f32 %v1389, %v1394
    %s1399 = sld [smem:[#allocation7 + $0x8]]
    %s1400 = sld [smem:[#allocation7 + $0x39]]
    %v1401 = vstv %s1399
    %v1402 = vmul.f32 %v1371, %v1401
    %v1403 = vmul.f32 %v1372, %v1401
    %v1404 = vmul.f32 %v1373, %v1401
    %v1405 = vmul.f32 %v1374, %v1401
    %1410 = vrot.lane.b32.xlu0 %v1402, 127
    %v1411 = vpop.permute.xlu0 %1410
    %1412 = vrot.lane.b32.xlu0 %v1403, 127
    %v1413 = vpop.permute.xlu0 %1412
    %1414 = vrot.lane.b32.xlu0 %v1404, 127
    %v1415 = vpop.permute.xlu0 %1414
    %1416 = vrot.lane.b32.xlu0 %v1405, 127
    %v1417 = vpop.permute.xlu0 %1416
    %v1422 = vadd.f32 %v1395, %v1411
    %v1423 = vadd.f32 %v1396, %v1413
    %v1424 = vadd.f32 %v1397, %v1415
    %v1425 = vadd.f32 %v1398, %v1417
    %v1426 = vstv %s1400
    %v1427 = vmul.f32 %v1375, %v1426
    %v1428 = vmul.f32 %v1376, %v1426
    %v1429 = vmul.f32 %v1377, %v1426
    %v1430 = vmul.f32 %v1378, %v1426
    %1435 = vrot.lane.b32.xlu0 %v1427, 127
    %v1436 = vpop.permute.xlu0 %1435
    %1437 = vrot.lane.b32.xlu0 %v1428, 127
    %v1438 = vpop.permute.xlu0 %1437
    %1439 = vrot.lane.b32.xlu0 %v1429, 127
    %v1440 = vpop.permute.xlu0 %1439
    %1441 = vrot.lane.b32.xlu0 %v1430, 127
    %v1442 = vpop.permute.xlu0 %1441
    %v1447 = vadd.f32 %v1422, %v1436
    %v1448 = vadd.f32 %v1423, %v1438
    %v1449 = vadd.f32 %v1424, %v1440
    %v1450 = vadd.f32 %v1425, %v1442
    %s1451 = sld [smem:[#allocation7 + $0x9]]
    %s1452 = sld [smem:[#allocation7 + $0x3a]]
    %v1453 = vstv %s1451
    %v1454 = vmul.f32 %v1371, %v1453
    %v1455 = vmul.f32 %v1372, %v1453
    %v1456 = vmul.f32 %v1373, %v1453
    %v1457 = vmul.f32 %v1374, %v1453
    %1462 = vrot.lane.b32.xlu0 %v1454, 126
    %v1463 = vpop.permute.xlu0 %1462
    %1464 = vrot.lane.b32.xlu0 %v1455, 126
    %v1465 = vpop.permute.xlu0 %1464
    %1466 = vrot.lane.b32.xlu0 %v1456, 126
    %v1467 = vpop.permute.xlu0 %1466
    %1468 = vrot.lane.b32.xlu0 %v1457, 126
    %v1469 = vpop.permute.xlu0 %1468
    %v1474 = vadd.f32 %v1447, %v1463
    %v1475 = vadd.f32 %v1448, %v1465
    %v1476 = vadd.f32 %v1449, %v1467
    %v1477 = vadd.f32 %v1450, %v1469
    %v1478 = vstv %s1452
    %v1479 = vmul.f32 %v1375, %v1478
    %v1480 = vmul.f32 %v1376, %v1478
    %v1481 = vmul.f32 %v1377, %v1478
    %v1482 = vmul.f32 %v1378, %v1478
    %1487 = vrot.lane.b32.xlu0 %v1479, 126
    %v1488 = vpop.permute.xlu0 %1487
    %1489 = vrot.lane.b32.xlu0 %v1480, 126
    %v1490 = vpop.permute.xlu0 %1489
    %1491 = vrot.lane.b32.xlu0 %v1481, 126
    %v1492 = vpop.permute.xlu0 %1491
    %1493 = vrot.lane.b32.xlu0 %v1482, 126
    %v1494 = vpop.permute.xlu0 %1493
    %v1499 = vadd.f32 %v1474, %v1488
    %v1500 = vadd.f32 %v1475, %v1490
    %v1501 = vadd.f32 %v1476, %v1492
    %v1502 = vadd.f32 %v1477, %v1494
    %s1503 = sld [smem:[#allocation7 + $0xa]]
    %s1504 = sld [smem:[#allocation7 + $0x3b]]
    %v1505 = vstv %s1503
    %v1506 = vmul.f32 %v1371, %v1505
    %v1507 = vmul.f32 %v1372, %v1505
    %v1508 = vmul.f32 %v1373, %v1505
    %v1509 = vmul.f32 %v1374, %v1505
    %1514 = vrot.lane.b32.xlu0 %v1506, 125
    %v1515 = vpop.permute.xlu0 %1514
    %1516 = vrot.lane.b32.xlu0 %v1507, 125
    %v1517 = vpop.permute.xlu0 %1516
    %1518 = vrot.lane.b32.xlu0 %v1508, 125
    %v1519 = vpop.permute.xlu0 %1518
    %1520 = vrot.lane.b32.xlu0 %v1509, 125
    %v1521 = vpop.permute.xlu0 %1520
    %v1526 = vadd.f32 %v1499, %v1515
    %v1527 = vadd.f32 %v1500, %v1517
    %v1528 = vadd.f32 %v1501, %v1519
    %v1529 = vadd.f32 %v1502, %v1521
    %v1530 = vstv %s1504
    %v1531 = vmul.f32 %v1375, %v1530
    %v1532 = vmul.f32 %v1376, %v1530
    %v1533 = vmul.f32 %v1377, %v1530
    %v1534 = vmul.f32 %v1378, %v1530
    %1539 = vrot.lane.b32.xlu0 %v1531, 125
    %v1540 = vpop.permute.xlu0 %1539
    %1541 = vrot.lane.b32.xlu0 %v1532, 125
    %v1542 = vpop.permute.xlu0 %1541
    %1543 = vrot.lane.b32.xlu0 %v1533, 125
    %v1544 = vpop.permute.xlu0 %1543
    %1545 = vrot.lane.b32.xlu0 %v1534, 125
    %v1546 = vpop.permute.xlu0 %1545
    %v1551 = vadd.f32 %v1526, %v1540
    %v1552 = vadd.f32 %v1527, %v1542
    %v1553 = vadd.f32 %v1528, %v1544
    %v1554 = vadd.f32 %v1529, %v1546
    %s1555 = sld [smem:[#allocation7 + $0xb]]
    %s1556 = sld [smem:[#allocation7 + $0x3c]]
    %v1557 = vstv %s1555
    %v1558 = vmul.f32 %v1371, %v1557
    %v1559 = vmul.f32 %v1372, %v1557
    %v1560 = vmul.f32 %v1373, %v1557
    %v1561 = vmul.f32 %v1374, %v1557
    %1566 = vrot.lane.b32.xlu0 %v1558, 124
    %v1567 = vpop.permute.xlu0 %1566
    %1568 = vrot.lane.b32.xlu0 %v1559, 124
    %v1569 = vpop.permute.xlu0 %1568
    %1570 = vrot.lane.b32.xlu0 %v1560, 124
    %v1571 = vpop.permute.xlu0 %1570
    %1572 = vrot.lane.b32.xlu0 %v1561, 124
    %v1573 = vpop.permute.xlu0 %1572
    %v1578 = vadd.f32 %v1551, %v1567
    %v1579 = vadd.f32 %v1552, %v1569
    %v1580 = vadd.f32 %v1553, %v1571
    %v1581 = vadd.f32 %v1554, %v1573
    %v1582 = vstv %s1556
    %v1583 = vmul.f32 %v1375, %v1582
    %v1584 = vmul.f32 %v1376, %v1582
    %v1585 = vmul.f32 %v1377, %v1582
    %v1586 = vmul.f32 %v1378, %v1582
    %1591 = vrot.lane.b32.xlu0 %v1583, 124
    %v1592 = vpop.permute.xlu0 %1591
    %1593 = vrot.lane.b32.xlu0 %v1584, 124
    %v1594 = vpop.permute.xlu0 %1593
    %1595 = vrot.lane.b32.xlu0 %v1585, 124
    %v1596 = vpop.permute.xlu0 %1595
    %1597 = vrot.lane.b32.xlu0 %v1586, 124
    %v1598 = vpop.permute.xlu0 %1597
    %v1603 = vadd.f32 %v1578, %v1592
    %v1604 = vadd.f32 %v1579, %v1594
    %v1605 = vadd.f32 %v1580, %v1596
    %v1606 = vadd.f32 %v1581, %v1598
    %s1607 = sld [smem:[#allocation7 + $0xc]]
    %s1608 = sld [smem:[#allocation7 + $0x3d]]
    %v1609 = vstv %s1607
    %v1610 = vmul.f32 %v1371, %v1609
    %v1611 = vmul.f32 %v1372, %v1609
    %v1612 = vmul.f32 %v1373, %v1609
    %v1613 = vmul.f32 %v1374, %v1609
    %1618 = vrot.lane.b32.xlu0 %v1610, 123
    %v1619 = vpop.permute.xlu0 %1618
    %1620 = vrot.lane.b32.xlu0 %v1611, 123
    %v1621 = vpop.permute.xlu0 %1620
    %1622 = vrot.lane.b32.xlu0 %v1612, 123
    %v1623 = vpop.permute.xlu0 %1622
    %1624 = vrot.lane.b32.xlu0 %v1613, 123
    %v1625 = vpop.permute.xlu0 %1624
    %v1630 = vadd.f32 %v1603, %v1619
    %v1631 = vadd.f32 %v1604, %v1621
    %v1632 = vadd.f32 %v1605, %v1623
    %v1633 = vadd.f32 %v1606, %v1625
    %v1634 = vstv %s1608
    %v1635 = vmul.f32 %v1375, %v1634
    %v1636 = vmul.f32 %v1376, %v1634
    %v1637 = vmul.f32 %v1377, %v1634
    %v1638 = vmul.f32 %v1378, %v1634
    %1643 = vrot.lane.b32.xlu0 %v1635, 123
    %v1644 = vpop.permute.xlu0 %1643
    %1645 = vrot.lane.b32.xlu0 %v1636, 123
    %v1646 = vpop.permute.xlu0 %1645
    %1647 = vrot.lane.b32.xlu0 %v1637, 123
    %v1648 = vpop.permute.xlu0 %1647
    %1649 = vrot.lane.b32.xlu0 %v1638, 123
    %v1650 = vpop.permute.xlu0 %1649
    %v1655 = vadd.f32 %v1630, %v1644
    %v1656 = vadd.f32 %v1631, %v1646
    %v1657 = vadd.f32 %v1632, %v1648
    %v1658 = vadd.f32 %v1633, %v1650
    %s1659 = sld [smem:[#allocation7 + $0xd]]
    %s1660 = sld [smem:[#allocation7 + $0x3e]]
    %v1661 = vstv %s1659
    %v1662 = vmul.f32 %v1371, %v1661
    %v1663 = vmul.f32 %v1372, %v1661
    %v1664 = vmul.f32 %v1373, %v1661
    %v1665 = vmul.f32 %v1374, %v1661
    %1670 = vrot.lane.b32.xlu0 %v1662, 122
    %v1671 = vpop.permute.xlu0 %1670
    %1672 = vrot.lane.b32.xlu0 %v1663, 122
    %v1673 = vpop.permute.xlu0 %1672
    %1674 = vrot.lane.b32.xlu0 %v1664, 122
    %v1675 = vpop.permute.xlu0 %1674
    %1676 = vrot.lane.b32.xlu0 %v1665, 122
    %v1677 = vpop.permute.xlu0 %1676
    %v1682 = vadd.f32 %v1655, %v1671
    %v1683 = vadd.f32 %v1656, %v1673
    %v1684 = vadd.f32 %v1657, %v1675
    %v1685 = vadd.f32 %v1658, %v1677
    %v1686 = vstv %s1660
    %v1687 = vmul.f32 %v1375, %v1686
    %v1688 = vmul.f32 %v1376, %v1686
    %v1689 = vmul.f32 %v1377, %v1686
    %v1690 = vmul.f32 %v1378, %v1686
    %1695 = vrot.lane.b32.xlu0 %v1687, 122
    %v1696 = vpop.permute.xlu0 %1695
    %1697 = vrot.lane.b32.xlu0 %v1688, 122
    %v1698 = vpop.permute.xlu0 %1697
    %1699 = vrot.lane.b32.xlu0 %v1689, 122
    %v1700 = vpop.permute.xlu0 %1699
    %1701 = vrot.lane.b32.xlu0 %v1690, 122
    %v1702 = vpop.permute.xlu0 %1701
    %v1707 = vadd.f32 %v1682, %v1696
    %v1708 = vadd.f32 %v1683, %v1698
    %v1709 = vadd.f32 %v1684, %v1700
    %v1710 = vadd.f32 %v1685, %v1702
    %v1711 = vld [vmem:[#allocation2 + $0x2] sm:$0xff]
    %v1712 = vld [vmem:[#allocation2 + $0xa] sm:$0xff]
    %v1713 = vld [vmem:[#allocation2 + $0x1a] sm:$0xff]
    %v1714 = vld [vmem:[#allocation2 + $0x22] sm:$0xff]
    %v1715 = vld [vmem:[%s1026 + $0x2] sm:$0xff]
    %v1716 = vld [vmem:[%s1026 + $0xa] sm:$0xff]
    %v1717 = vld [vmem:[%s1026 + $0x1a] sm:$0xff]
    %v1718 = vld [vmem:[%s1026 + $0x22] sm:$0xff]
    %s1719 = sld [smem:[#allocation7 + $0xe]]
    %s1720 = sld [smem:[#allocation7 + $0x3f]]
    %v1721 = vstv %s1719
    %v1722 = vmul.f32 %v1711, %v1721
    %v1723 = vmul.f32 %v1712, %v1721
    %v1724 = vmul.f32 %v1713, %v1721
    %v1725 = vmul.f32 %v1714, %v1721
    %v1726 = vadd.f32 %v1707, %v1722
    %v1727 = vadd.f32 %v1708, %v1723
    %v1728 = vadd.f32 %v1709, %v1724
    %v1729 = vadd.f32 %v1710, %v1725
    %v1730 = vstv %s1720
    %v1731 = vmul.f32 %v1715, %v1730
    %v1732 = vmul.f32 %v1716, %v1730
    %v1733 = vmul.f32 %v1717, %v1730
    %v1734 = vmul.f32 %v1718, %v1730
    %v1735 = vadd.f32 %v1726, %v1731
    %v1736 = vadd.f32 %v1727, %v1732
    %v1737 = vadd.f32 %v1728, %v1733
    %v1738 = vadd.f32 %v1729, %v1734
    %s1739 = sld [smem:[#allocation7 + $0xf]]
    %s1740 = sld [smem:[#allocation7 + $0x40]]
    %v1741 = vstv %s1739
    %v1742 = vmul.f32 %v1711, %v1741
    %v1743 = vmul.f32 %v1712, %v1741
    %v1744 = vmul.f32 %v1713, %v1741
    %v1745 = vmul.f32 %v1714, %v1741
    %1750 = vrot.lane.b32.xlu0 %v1742, 127
    %v1751 = vpop.permute.xlu0 %1750
    %1752 = vrot.lane.b32.xlu0 %v1743, 127
    %v1753 = vpop.permute.xlu0 %1752
    %1754 = vrot.lane.b32.xlu0 %v1744, 127
    %v1755 = vpop.permute.xlu0 %1754
    %1756 = vrot.lane.b32.xlu0 %v1745, 127
    %v1757 = vpop.permute.xlu0 %1756
    %v1762 = vadd.f32 %v1735, %v1751
    %v1763 = vadd.f32 %v1736, %v1753
    %v1764 = vadd.f32 %v1737, %v1755
    %v1765 = vadd.f32 %v1738, %v1757
    %v1766 = vstv %s1740
    %v1767 = vmul.f32 %v1715, %v1766
    %v1768 = vmul.f32 %v1716, %v1766
    %v1769 = vmul.f32 %v1717, %v1766
    %v1770 = vmul.f32 %v1718, %v1766
    %1775 = vrot.lane.b32.xlu0 %v1767, 127
    %v1776 = vpop.permute.xlu0 %1775
    %1777 = vrot.lane.b32.xlu0 %v1768, 127
    %v1778 = vpop.permute.xlu0 %1777
    %1779 = vrot.lane.b32.xlu0 %v1769, 127
    %v1780 = vpop.permute.xlu0 %1779
    %1781 = vrot.lane.b32.xlu0 %v1770, 127
    %v1782 = vpop.permute.xlu0 %1781
    %v1787 = vadd.f32 %v1762, %v1776
    %v1788 = vadd.f32 %v1763, %v1778
    %v1789 = vadd.f32 %v1764, %v1780
    %v1790 = vadd.f32 %v1765, %v1782
    %s1791 = sld [smem:[#allocation7 + $0x10]]
    %s1792 = sld [smem:[#allocation7 + $0x41]]
    %v1793 = vstv %s1791
    %v1794 = vmul.f32 %v1711, %v1793
    %v1795 = vmul.f32 %v1712, %v1793
    %v1796 = vmul.f32 %v1713, %v1793
    %v1797 = vmul.f32 %v1714, %v1793
    %1802 = vrot.lane.b32.xlu0 %v1794, 126
    %v1803 = vpop.permute.xlu0 %1802
    %1804 = vrot.lane.b32.xlu0 %v1795, 126
    %v1805 = vpop.permute.xlu0 %1804
    %1806 = vrot.lane.b32.xlu0 %v1796, 126
    %v1807 = vpop.permute.xlu0 %1806
    %1808 = vrot.lane.b32.xlu0 %v1797, 126
    %v1809 = vpop.permute.xlu0 %1808
    %v1814 = vadd.f32 %v1787, %v1803
    %v1815 = vadd.f32 %v1788, %v1805
    %v1816 = vadd.f32 %v1789, %v1807
    %v1817 = vadd.f32 %v1790, %v1809
    %v1818 = vstv %s1792
    %v1819 = vmul.f32 %v1715, %v1818
    %v1820 = vmul.f32 %v1716, %v1818
    %v1821 = vmul.f32 %v1717, %v1818
    %v1822 = vmul.f32 %v1718, %v1818
    %1827 = vrot.lane.b32.xlu0 %v1819, 126
    %v1828 = vpop.permute.xlu0 %1827
    %1829 = vrot.lane.b32.xlu0 %v1820, 126
    %v1830 = vpop.permute.xlu0 %1829
    %1831 = vrot.lane.b32.xlu0 %v1821, 126
    %v1832 = vpop.permute.xlu0 %1831
    %1833 = vrot.lane.b32.xlu0 %v1822, 126
    %v1834 = vpop.permute.xlu0 %1833
    %v1839 = vadd.f32 %v1814, %v1828
    %v1840 = vadd.f32 %v1815, %v1830
    %v1841 = vadd.f32 %v1816, %v1832
    %v1842 = vadd.f32 %v1817, %v1834
    %s1843 = sld [smem:[#allocation7 + $0x11]]
    %s1844 = sld [smem:[#allocation7 + $0x42]]
    %v1845 = vstv %s1843
    %v1846 = vmul.f32 %v1711, %v1845
    %v1847 = vmul.f32 %v1712, %v1845
    %v1848 = vmul.f32 %v1713, %v1845
    %v1849 = vmul.f32 %v1714, %v1845
    %1854 = vrot.lane.b32.xlu0 %v1846, 125
    %v1855 = vpop.permute.xlu0 %1854
    %1856 = vrot.lane.b32.xlu0 %v1847, 125
    %v1857 = vpop.permute.xlu0 %1856
    %1858 = vrot.lane.b32.xlu0 %v1848, 125
    %v1859 = vpop.permute.xlu0 %1858
    %1860 = vrot.lane.b32.xlu0 %v1849, 125
    %v1861 = vpop.permute.xlu0 %1860
    %v1866 = vadd.f32 %v1839, %v1855
    %v1867 = vadd.f32 %v1840, %v1857
    %v1868 = vadd.f32 %v1841, %v1859
    %v1869 = vadd.f32 %v1842, %v1861
    %v1870 = vstv %s1844
    %v1871 = vmul.f32 %v1715, %v1870
    %v1872 = vmul.f32 %v1716, %v1870
    %v1873 = vmul.f32 %v1717, %v1870
    %v1874 = vmul.f32 %v1718, %v1870
    %1879 = vrot.lane.b32.xlu0 %v1871, 125
    %v1880 = vpop.permute.xlu0 %1879
    %1881 = vrot.lane.b32.xlu0 %v1872, 125
    %v1882 = vpop.permute.xlu0 %1881
    %1883 = vrot.lane.b32.xlu0 %v1873, 125
    %v1884 = vpop.permute.xlu0 %1883
    %1885 = vrot.lane.b32.xlu0 %v1874, 125
    %v1886 = vpop.permute.xlu0 %1885
    %v1891 = vadd.f32 %v1866, %v1880
    %v1892 = vadd.f32 %v1867, %v1882
    %v1893 = vadd.f32 %v1868, %v1884
    %v1894 = vadd.f32 %v1869, %v1886
    %s1895 = sld [smem:[#allocation7 + $0x12]]
    %s1896 = sld [smem:[#allocation7 + $0x43]]
    %v1897 = vstv %s1895
    %v1898 = vmul.f32 %v1711, %v1897
    %v1899 = vmul.f32 %v1712, %v1897
    %v1900 = vmul.f32 %v1713, %v1897
    %v1901 = vmul.f32 %v1714, %v1897
    %1906 = vrot.lane.b32.xlu0 %v1898, 124
    %v1907 = vpop.permute.xlu0 %1906
    %1908 = vrot.lane.b32.xlu0 %v1899, 124
    %v1909 = vpop.permute.xlu0 %1908
    %1910 = vrot.lane.b32.xlu0 %v1900, 124
    %v1911 = vpop.permute.xlu0 %1910
    %1912 = vrot.lane.b32.xlu0 %v1901, 124
    %v1913 = vpop.permute.xlu0 %1912
    %v1918 = vadd.f32 %v1891, %v1907
    %v1919 = vadd.f32 %v1892, %v1909
    %v1920 = vadd.f32 %v1893, %v1911
    %v1921 = vadd.f32 %v1894, %v1913
    %v1922 = vstv %s1896
    %v1923 = vmul.f32 %v1715, %v1922
    %v1924 = vmul.f32 %v1716, %v1922
    %v1925 = vmul.f32 %v1717, %v1922
    %v1926 = vmul.f32 %v1718, %v1922
    %1931 = vrot.lane.b32.xlu0 %v1923, 124
    %v1932 = vpop.permute.xlu0 %1931
    %1933 = vrot.lane.b32.xlu0 %v1924, 124
    %v1934 = vpop.permute.xlu0 %1933
    %1935 = vrot.lane.b32.xlu0 %v1925, 124
    %v1936 = vpop.permute.xlu0 %1935
    %1937 = vrot.lane.b32.xlu0 %v1926, 124
    %v1938 = vpop.permute.xlu0 %1937
    %v1943 = vadd.f32 %v1918, %v1932
    %v1944 = vadd.f32 %v1919, %v1934
    %v1945 = vadd.f32 %v1920, %v1936
    %v1946 = vadd.f32 %v1921, %v1938
    %s1947 = sld [smem:[#allocation7 + $0x13]]
    %s1948 = sld [smem:[#allocation7 + $0x44]]
    %v1949 = vstv %s1947
    %v1950 = vmul.f32 %v1711, %v1949
    %v1951 = vmul.f32 %v1712, %v1949
    %v1952 = vmul.f32 %v1713, %v1949
    %v1953 = vmul.f32 %v1714, %v1949
    %1958 = vrot.lane.b32.xlu0 %v1950, 123
    %v1959 = vpop.permute.xlu0 %1958
    %1960 = vrot.lane.b32.xlu0 %v1951, 123
    %v1961 = vpop.permute.xlu0 %1960
    %1962 = vrot.lane.b32.xlu0 %v1952, 123
    %v1963 = vpop.permute.xlu0 %1962
    %1964 = vrot.lane.b32.xlu0 %v1953, 123
    %v1965 = vpop.permute.xlu0 %1964
    %v1970 = vadd.f32 %v1943, %v1959
    %v1971 = vadd.f32 %v1944, %v1961
    %v1972 = vadd.f32 %v1945, %v1963
    %v1973 = vadd.f32 %v1946, %v1965
    %v1974 = vstv %s1948
    %v1975 = vmul.f32 %v1715, %v1974
    %v1976 = vmul.f32 %v1716, %v1974
    %v1977 = vmul.f32 %v1717, %v1974
    %v1978 = vmul.f32 %v1718, %v1974
    %1983 = vrot.lane.b32.xlu0 %v1975, 123
    %v1984 = vpop.permute.xlu0 %1983
    %1985 = vrot.lane.b32.xlu0 %v1976, 123
    %v1986 = vpop.permute.xlu0 %1985
    %1987 = vrot.lane.b32.xlu0 %v1977, 123
    %v1988 = vpop.permute.xlu0 %1987
    %1989 = vrot.lane.b32.xlu0 %v1978, 123
    %v1990 = vpop.permute.xlu0 %1989
    %v1995 = vadd.f32 %v1970, %v1984
    %v1996 = vadd.f32 %v1971, %v1986
    %v1997 = vadd.f32 %v1972, %v1988
    %v1998 = vadd.f32 %v1973, %v1990
    %s1999 = sld [smem:[#allocation7 + $0x14]]
    %s2000 = sld [smem:[#allocation7 + $0x45]]
    %v2001 = vstv %s1999
    %v2002 = vmul.f32 %v1711, %v2001
    %v2003 = vmul.f32 %v1712, %v2001
    %v2004 = vmul.f32 %v1713, %v2001
    %v2005 = vmul.f32 %v1714, %v2001
    %2010 = vrot.lane.b32.xlu0 %v2002, 122
    %v2011 = vpop.permute.xlu0 %2010
    %2012 = vrot.lane.b32.xlu0 %v2003, 122
    %v2013 = vpop.permute.xlu0 %2012
    %2014 = vrot.lane.b32.xlu0 %v2004, 122
    %v2015 = vpop.permute.xlu0 %2014
    %2016 = vrot.lane.b32.xlu0 %v2005, 122
    %v2017 = vpop.permute.xlu0 %2016
    %v2022 = vadd.f32 %v1995, %v2011
    %v2023 = vadd.f32 %v1996, %v2013
    %v2024 = vadd.f32 %v1997, %v2015
    %v2025 = vadd.f32 %v1998, %v2017
    %v2026 = vstv %s2000
    %v2027 = vmul.f32 %v1715, %v2026
    %v2028 = vmul.f32 %v1716, %v2026
    %v2029 = vmul.f32 %v1717, %v2026
    %v2030 = vmul.f32 %v1718, %v2026
    %2035 = vrot.lane.b32.xlu0 %v2027, 122
    %v2036 = vpop.permute.xlu0 %2035
    %2037 = vrot.lane.b32.xlu0 %v2028, 122
    %v2038 = vpop.permute.xlu0 %2037
    %2039 = vrot.lane.b32.xlu0 %v2029, 122
    %v2040 = vpop.permute.xlu0 %2039
    %2041 = vrot.lane.b32.xlu0 %v2030, 122
    %v2042 = vpop.permute.xlu0 %2041
    %v2047 = vadd.f32 %v2022, %v2036
    %v2048 = vadd.f32 %v2023, %v2038
    %v2049 = vadd.f32 %v2024, %v2040
    %v2050 = vadd.f32 %v2025, %v2042
    %v2051 = vld [vmem:[#allocation2 + $0x3] sm:$0xff]
    %v2052 = vld [vmem:[#allocation2 + $0xb] sm:$0xff]
    %v2053 = vld [vmem:[#allocation2 + $0x1b] sm:$0xff]
    %v2054 = vld [vmem:[#allocation2 + $0x23] sm:$0xff]
    %v2055 = vld [vmem:[%s1026 + $0x3] sm:$0xff]
    %v2056 = vld [vmem:[%s1026 + $0xb] sm:$0xff]
    %v2057 = vld [vmem:[%s1026 + $0x1b] sm:$0xff]
    %v2058 = vld [vmem:[%s1026 + $0x23] sm:$0xff]
    %s2059 = sld [smem:[#allocation7 + $0x15]]
    %s2060 = sld [smem:[#allocation7 + $0x46]]
    %v2061 = vstv %s2059
    %v2062 = vmul.f32 %v2051, %v2061
    %v2063 = vmul.f32 %v2052, %v2061
    %v2064 = vmul.f32 %v2053, %v2061
    %v2065 = vmul.f32 %v2054, %v2061
    %v2066 = vadd.f32 %v2047, %v2062
    %v2067 = vadd.f32 %v2048, %v2063
    %v2068 = vadd.f32 %v2049, %v2064
    %v2069 = vadd.f32 %v2050, %v2065
    %v2070 = vstv %s2060
    %v2071 = vmul.f32 %v2055, %v2070
    %v2072 = vmul.f32 %v2056, %v2070
    %v2073 = vmul.f32 %v2057, %v2070
    %v2074 = vmul.f32 %v2058, %v2070
    %v2075 = vadd.f32 %v2066, %v2071
    %v2076 = vadd.f32 %v2067, %v2072
    %v2077 = vadd.f32 %v2068, %v2073
    %v2078 = vadd.f32 %v2069, %v2074
    %s2079 = sld [smem:[#allocation7 + $0x16]]
    %s2080 = sld [smem:[#allocation7 + $0x47]]
    %v2081 = vstv %s2079
    %v2082 = vmul.f32 %v2051, %v2081
    %v2083 = vmul.f32 %v2052, %v2081
    %v2084 = vmul.f32 %v2053, %v2081
    %v2085 = vmul.f32 %v2054, %v2081
    %2090 = vrot.lane.b32.xlu0 %v2082, 127
    %v2091 = vpop.permute.xlu0 %2090
    %2092 = vrot.lane.b32.xlu0 %v2083, 127
    %v2093 = vpop.permute.xlu0 %2092
    %2094 = vrot.lane.b32.xlu0 %v2084, 127
    %v2095 = vpop.permute.xlu0 %2094
    %2096 = vrot.lane.b32.xlu0 %v2085, 127
    %v2097 = vpop.permute.xlu0 %2096
    %v2102 = vadd.f32 %v2075, %v2091
    %v2103 = vadd.f32 %v2076, %v2093
    %v2104 = vadd.f32 %v2077, %v2095
    %v2105 = vadd.f32 %v2078, %v2097
    %v2106 = vstv %s2080
    %v2107 = vmul.f32 %v2055, %v2106
    %v2108 = vmul.f32 %v2056, %v2106
    %v2109 = vmul.f32 %v2057, %v2106
    %v2110 = vmul.f32 %v2058, %v2106
    %2115 = vrot.lane.b32.xlu0 %v2107, 127
    %v2116 = vpop.permute.xlu0 %2115
    %2117 = vrot.lane.b32.xlu0 %v2108, 127
    %v2118 = vpop.permute.xlu0 %2117
    %2119 = vrot.lane.b32.xlu0 %v2109, 127
    %v2120 = vpop.permute.xlu0 %2119
    %2121 = vrot.lane.b32.xlu0 %v2110, 127
    %v2122 = vpop.permute.xlu0 %2121
    %v2127 = vadd.f32 %v2102, %v2116
    %v2128 = vadd.f32 %v2103, %v2118
    %v2129 = vadd.f32 %v2104, %v2120
    %v2130 = vadd.f32 %v2105, %v2122
    %s2131 = sld [smem:[#allocation7 + $0x17]]
    %s2132 = sld [smem:[#allocation7 + $0x48]]
    %v2133 = vstv %s2131
    %v2134 = vmul.f32 %v2051, %v2133
    %v2135 = vmul.f32 %v2052, %v2133
    %v2136 = vmul.f32 %v2053, %v2133
    %v2137 = vmul.f32 %v2054, %v2133
    %2142 = vrot.lane.b32.xlu0 %v2134, 126
    %v2143 = vpop.permute.xlu0 %2142
    %2144 = vrot.lane.b32.xlu0 %v2135, 126
    %v2145 = vpop.permute.xlu0 %2144
    %2146 = vrot.lane.b32.xlu0 %v2136, 126
    %v2147 = vpop.permute.xlu0 %2146
    %2148 = vrot.lane.b32.xlu0 %v2137, 126
    %v2149 = vpop.permute.xlu0 %2148
    %v2154 = vadd.f32 %v2127, %v2143
    %v2155 = vadd.f32 %v2128, %v2145
    %v2156 = vadd.f32 %v2129, %v2147
    %v2157 = vadd.f32 %v2130, %v2149
    %v2158 = vstv %s2132
    %v2159 = vmul.f32 %v2055, %v2158
    %v2160 = vmul.f32 %v2056, %v2158
    %v2161 = vmul.f32 %v2057, %v2158
    %v2162 = vmul.f32 %v2058, %v2158
    %2167 = vrot.lane.b32.xlu0 %v2159, 126
    %v2168 = vpop.permute.xlu0 %2167
    %2169 = vrot.lane.b32.xlu0 %v2160, 126
    %v2170 = vpop.permute.xlu0 %2169
    %2171 = vrot.lane.b32.xlu0 %v2161, 126
    %v2172 = vpop.permute.xlu0 %2171
    %2173 = vrot.lane.b32.xlu0 %v2162, 126
    %v2174 = vpop.permute.xlu0 %2173
    %v2179 = vadd.f32 %v2154, %v2168
    %v2180 = vadd.f32 %v2155, %v2170
    %v2181 = vadd.f32 %v2156, %v2172
    %v2182 = vadd.f32 %v2157, %v2174
    %s2183 = sld [smem:[#allocation7 + $0x18]]
    %s2184 = sld [smem:[#allocation7 + $0x49]]
    %v2185 = vstv %s2183
    %v2186 = vmul.f32 %v2051, %v2185
    %v2187 = vmul.f32 %v2052, %v2185
    %v2188 = vmul.f32 %v2053, %v2185
    %v2189 = vmul.f32 %v2054, %v2185
    %2194 = vrot.lane.b32.xlu0 %v2186, 125
    %v2195 = vpop.permute.xlu0 %2194
    %2196 = vrot.lane.b32.xlu0 %v2187, 125
    %v2197 = vpop.permute.xlu0 %2196
    %2198 = vrot.lane.b32.xlu0 %v2188, 125
    %v2199 = vpop.permute.xlu0 %2198
    %2200 = vrot.lane.b32.xlu0 %v2189, 125
    %v2201 = vpop.permute.xlu0 %2200
    %v2206 = vadd.f32 %v2179, %v2195
    %v2207 = vadd.f32 %v2180, %v2197
    %v2208 = vadd.f32 %v2181, %v2199
    %v2209 = vadd.f32 %v2182, %v2201
    %v2210 = vstv %s2184
    %v2211 = vmul.f32 %v2055, %v2210
    %v2212 = vmul.f32 %v2056, %v2210
    %v2213 = vmul.f32 %v2057, %v2210
    %v2214 = vmul.f32 %v2058, %v2210
    %2219 = vrot.lane.b32.xlu0 %v2211, 125
    %v2220 = vpop.permute.xlu0 %2219
    %2221 = vrot.lane.b32.xlu0 %v2212, 125
    %v2222 = vpop.permute.xlu0 %2221
    %2223 = vrot.lane.b32.xlu0 %v2213, 125
    %v2224 = vpop.permute.xlu0 %2223
    %2225 = vrot.lane.b32.xlu0 %v2214, 125
    %v2226 = vpop.permute.xlu0 %2225
    %v2231 = vadd.f32 %v2206, %v2220
    %v2232 = vadd.f32 %v2207, %v2222
    %v2233 = vadd.f32 %v2208, %v2224
    %v2234 = vadd.f32 %v2209, %v2226
    %s2235 = sld [smem:[#allocation7 + $0x19]]
    %s2236 = sld [smem:[#allocation7 + $0x4a]]
    %v2237 = vstv %s2235
    %v2238 = vmul.f32 %v2051, %v2237
    %v2239 = vmul.f32 %v2052, %v2237
    %v2240 = vmul.f32 %v2053, %v2237
    %v2241 = vmul.f32 %v2054, %v2237
    %2246 = vrot.lane.b32.xlu0 %v2238, 124
    %v2247 = vpop.permute.xlu0 %2246
    %2248 = vrot.lane.b32.xlu0 %v2239, 124
    %v2249 = vpop.permute.xlu0 %2248
    %2250 = vrot.lane.b32.xlu0 %v2240, 124
    %v2251 = vpop.permute.xlu0 %2250
    %2252 = vrot.lane.b32.xlu0 %v2241, 124
    %v2253 = vpop.permute.xlu0 %2252
    %v2258 = vadd.f32 %v2231, %v2247
    %v2259 = vadd.f32 %v2232, %v2249
    %v2260 = vadd.f32 %v2233, %v2251
    %v2261 = vadd.f32 %v2234, %v2253
    %v2262 = vstv %s2236
    %v2263 = vmul.f32 %v2055, %v2262
    %v2264 = vmul.f32 %v2056, %v2262
    %v2265 = vmul.f32 %v2057, %v2262
    %v2266 = vmul.f32 %v2058, %v2262
    %2271 = vrot.lane.b32.xlu0 %v2263, 124
    %v2272 = vpop.permute.xlu0 %2271
    %2273 = vrot.lane.b32.xlu0 %v2264, 124
    %v2274 = vpop.permute.xlu0 %2273
    %2275 = vrot.lane.b32.xlu0 %v2265, 124
    %v2276 = vpop.permute.xlu0 %2275
    %2277 = vrot.lane.b32.xlu0 %v2266, 124
    %v2278 = vpop.permute.xlu0 %2277
    %v2283 = vadd.f32 %v2258, %v2272
    %v2284 = vadd.f32 %v2259, %v2274
    %v2285 = vadd.f32 %v2260, %v2276
    %v2286 = vadd.f32 %v2261, %v2278
    %s2287 = sld [smem:[#allocation7 + $0x1a]]
    %s2288 = sld [smem:[#allocation7 + $0x4b]]
    %v2289 = vstv %s2287
    %v2290 = vmul.f32 %v2051, %v2289
    %v2291 = vmul.f32 %v2052, %v2289
    %v2292 = vmul.f32 %v2053, %v2289
    %v2293 = vmul.f32 %v2054, %v2289
    %2298 = vrot.lane.b32.xlu0 %v2290, 123
    %v2299 = vpop.permute.xlu0 %2298
    %2300 = vrot.lane.b32.xlu0 %v2291, 123
    %v2301 = vpop.permute.xlu0 %2300
    %2302 = vrot.lane.b32.xlu0 %v2292, 123
    %v2303 = vpop.permute.xlu0 %2302
    %2304 = vrot.lane.b32.xlu0 %v2293, 123
    %v2305 = vpop.permute.xlu0 %2304
    %v2310 = vadd.f32 %v2283, %v2299
    %v2311 = vadd.f32 %v2284, %v2301
    %v2312 = vadd.f32 %v2285, %v2303
    %v2313 = vadd.f32 %v2286, %v2305
    %v2314 = vstv %s2288
    %v2315 = vmul.f32 %v2055, %v2314
    %v2316 = vmul.f32 %v2056, %v2314
    %v2317 = vmul.f32 %v2057, %v2314
    %v2318 = vmul.f32 %v2058, %v2314
    %2323 = vrot.lane.b32.xlu0 %v2315, 123
    %v2324 = vpop.permute.xlu0 %2323
    %2325 = vrot.lane.b32.xlu0 %v2316, 123
    %v2326 = vpop.permute.xlu0 %2325
    %2327 = vrot.lane.b32.xlu0 %v2317, 123
    %v2328 = vpop.permute.xlu0 %2327
    %2329 = vrot.lane.b32.xlu0 %v2318, 123
    %v2330 = vpop.permute.xlu0 %2329
    %v2335 = vadd.f32 %v2310, %v2324
    %v2336 = vadd.f32 %v2311, %v2326
    %v2337 = vadd.f32 %v2312, %v2328
    %v2338 = vadd.f32 %v2313, %v2330
    %s2339 = sld [smem:[#allocation7 + $0x1b]]
    %s2340 = sld [smem:[#allocation7 + $0x4c]]
    %v2341 = vstv %s2339
    %v2342 = vmul.f32 %v2051, %v2341
    %v2343 = vmul.f32 %v2052, %v2341
    %v2344 = vmul.f32 %v2053, %v2341
    %v2345 = vmul.f32 %v2054, %v2341
    %2350 = vrot.lane.b32.xlu0 %v2342, 122
    %v2351 = vpop.permute.xlu0 %2350
    %2352 = vrot.lane.b32.xlu0 %v2343, 122
    %v2353 = vpop.permute.xlu0 %2352
    %2354 = vrot.lane.b32.xlu0 %v2344, 122
    %v2355 = vpop.permute.xlu0 %2354
    %2356 = vrot.lane.b32.xlu0 %v2345, 122
    %v2357 = vpop.permute.xlu0 %2356
    %v2362 = vadd.f32 %v2335, %v2351
    %v2363 = vadd.f32 %v2336, %v2353
    %v2364 = vadd.f32 %v2337, %v2355
    %v2365 = vadd.f32 %v2338, %v2357
    %v2366 = vstv %s2340
    %v2367 = vmul.f32 %v2055, %v2366
    %v2368 = vmul.f32 %v2056, %v2366
    %v2369 = vmul.f32 %v2057, %v2366
    %v2370 = vmul.f32 %v2058, %v2366
    %2375 = vrot.lane.b32.xlu0 %v2367, 122
    %v2376 = vpop.permute.xlu0 %2375
    %2377 = vrot.lane.b32.xlu0 %v2368, 122
    %v2378 = vpop.permute.xlu0 %2377
    %2379 = vrot.lane.b32.xlu0 %v2369, 122
    %v2380 = vpop.permute.xlu0 %2379
    %2381 = vrot.lane.b32.xlu0 %v2370, 122
    %v2382 = vpop.permute.xlu0 %2381
    %v2387 = vadd.f32 %v2362, %v2376
    %v2388 = vadd.f32 %v2363, %v2378
    %v2389 = vadd.f32 %v2364, %v2380
    %v2390 = vadd.f32 %v2365, %v2382
    %v2391 = vld [vmem:[#allocation2 + $0x4] sm:$0xff]
    %v2392 = vld [vmem:[#allocation2 + $0xc] sm:$0xff]
    %v2393 = vld [vmem:[#allocation2 + $0x1c] sm:$0xff]
    %v2394 = vld [vmem:[#allocation2 + $0x24] sm:$0xff]
    %v2395 = vld [vmem:[%s1026 + $0x4] sm:$0xff]
    %v2396 = vld [vmem:[%s1026 + $0xc] sm:$0xff]
    %v2397 = vld [vmem:[%s1026 + $0x1c] sm:$0xff]
    %v2398 = vld [vmem:[%s1026 + $0x24] sm:$0xff]
    %s2399 = sld [smem:[#allocation7 + $0x1c]]
    %s2400 = sld [smem:[#allocation7 + $0x4d]]
    %v2401 = vstv %s2399
    %v2402 = vmul.f32 %v2391, %v2401
    %v2403 = vmul.f32 %v2392, %v2401
    %v2404 = vmul.f32 %v2393, %v2401
    %v2405 = vmul.f32 %v2394, %v2401
    %v2406 = vadd.f32 %v2387, %v2402
    %v2407 = vadd.f32 %v2388, %v2403
    %v2408 = vadd.f32 %v2389, %v2404
    %v2409 = vadd.f32 %v2390, %v2405
    %v2410 = vstv %s2400
    %v2411 = vmul.f32 %v2395, %v2410
    %v2412 = vmul.f32 %v2396, %v2410
    %v2413 = vmul.f32 %v2397, %v2410
    %v2414 = vmul.f32 %v2398, %v2410
    %v2415 = vadd.f32 %v2406, %v2411
    %v2416 = vadd.f32 %v2407, %v2412
    %v2417 = vadd.f32 %v2408, %v2413
    %v2418 = vadd.f32 %v2409, %v2414
    %s2419 = sld [smem:[#allocation7 + $0x1d]]
    %s2420 = sld [smem:[#allocation7 + $0x4e]]
    %v2421 = vstv %s2419
    %v2422 = vmul.f32 %v2391, %v2421
    %v2423 = vmul.f32 %v2392, %v2421
    %v2424 = vmul.f32 %v2393, %v2421
    %v2425 = vmul.f32 %v2394, %v2421
    %2430 = vrot.lane.b32.xlu0 %v2422, 127
    %v2431 = vpop.permute.xlu0 %2430
    %2432 = vrot.lane.b32.xlu0 %v2423, 127
    %v2433 = vpop.permute.xlu0 %2432
    %2434 = vrot.lane.b32.xlu0 %v2424, 127
    %v2435 = vpop.permute.xlu0 %2434
    %2436 = vrot.lane.b32.xlu0 %v2425, 127
    %v2437 = vpop.permute.xlu0 %2436
    %v2442 = vadd.f32 %v2415, %v2431
    %v2443 = vadd.f32 %v2416, %v2433
    %v2444 = vadd.f32 %v2417, %v2435
    %v2445 = vadd.f32 %v2418, %v2437
    %v2446 = vstv %s2420
    %v2447 = vmul.f32 %v2395, %v2446
    %v2448 = vmul.f32 %v2396, %v2446
    %v2449 = vmul.f32 %v2397, %v2446
    %v2450 = vmul.f32 %v2398, %v2446
    %2455 = vrot.lane.b32.xlu0 %v2447, 127
    %v2456 = vpop.permute.xlu0 %2455
    %2457 = vrot.lane.b32.xlu0 %v2448, 127
    %v2458 = vpop.permute.xlu0 %2457
    %2459 = vrot.lane.b32.xlu0 %v2449, 127
    %v2460 = vpop.permute.xlu0 %2459
    %2461 = vrot.lane.b32.xlu0 %v2450, 127
    %v2462 = vpop.permute.xlu0 %2461
    %v2467 = vadd.f32 %v2442, %v2456
    %v2468 = vadd.f32 %v2443, %v2458
    %v2469 = vadd.f32 %v2444, %v2460
    %v2470 = vadd.f32 %v2445, %v2462
    %s2471 = sld [smem:[#allocation7 + $0x1e]]
    %s2472 = sld [smem:[#allocation7 + $0x4f]]
    %v2473 = vstv %s2471
    %v2474 = vmul.f32 %v2391, %v2473
    %v2475 = vmul.f32 %v2392, %v2473
    %v2476 = vmul.f32 %v2393, %v2473
    %v2477 = vmul.f32 %v2394, %v2473
    %2482 = vrot.lane.b32.xlu0 %v2474, 126
    %v2483 = vpop.permute.xlu0 %2482
    %2484 = vrot.lane.b32.xlu0 %v2475, 126
    %v2485 = vpop.permute.xlu0 %2484
    %2486 = vrot.lane.b32.xlu0 %v2476, 126
    %v2487 = vpop.permute.xlu0 %2486
    %2488 = vrot.lane.b32.xlu0 %v2477, 126
    %v2489 = vpop.permute.xlu0 %2488
    %v2494 = vadd.f32 %v2467, %v2483
    %v2495 = vadd.f32 %v2468, %v2485
    %v2496 = vadd.f32 %v2469, %v2487
    %v2497 = vadd.f32 %v2470, %v2489
    %v2498 = vstv %s2472
    %v2499 = vmul.f32 %v2395, %v2498
    %v2500 = vmul.f32 %v2396, %v2498
    %v2501 = vmul.f32 %v2397, %v2498
    %v2502 = vmul.f32 %v2398, %v2498
    %2507 = vrot.lane.b32.xlu0 %v2499, 126
    %v2508 = vpop.permute.xlu0 %2507
    %2509 = vrot.lane.b32.xlu0 %v2500, 126
    %v2510 = vpop.permute.xlu0 %2509
    %2511 = vrot.lane.b32.xlu0 %v2501, 126
    %v2512 = vpop.permute.xlu0 %2511
    %2513 = vrot.lane.b32.xlu0 %v2502, 126
    %v2514 = vpop.permute.xlu0 %2513
    %v2519 = vadd.f32 %v2494, %v2508
    %v2520 = vadd.f32 %v2495, %v2510
    %v2521 = vadd.f32 %v2496, %v2512
    %v2522 = vadd.f32 %v2497, %v2514
    %s2523 = sld [smem:[#allocation7 + $0x1f]]
    %s2524 = sld [smem:[#allocation7 + $0x50]]
    %v2525 = vstv %s2523
    %v2526 = vmul.f32 %v2391, %v2525
    %v2527 = vmul.f32 %v2392, %v2525
    %v2528 = vmul.f32 %v2393, %v2525
    %v2529 = vmul.f32 %v2394, %v2525
    %2534 = vrot.lane.b32.xlu0 %v2526, 125
    %v2535 = vpop.permute.xlu0 %2534
    %2536 = vrot.lane.b32.xlu0 %v2527, 125
    %v2537 = vpop.permute.xlu0 %2536
    %2538 = vrot.lane.b32.xlu0 %v2528, 125
    %v2539 = vpop.permute.xlu0 %2538
    %2540 = vrot.lane.b32.xlu0 %v2529, 125
    %v2541 = vpop.permute.xlu0 %2540
    %v2546 = vadd.f32 %v2519, %v2535
    %v2547 = vadd.f32 %v2520, %v2537
    %v2548 = vadd.f32 %v2521, %v2539
    %v2549 = vadd.f32 %v2522, %v2541
    %v2550 = vstv %s2524
    %v2551 = vmul.f32 %v2395, %v2550
    %v2552 = vmul.f32 %v2396, %v2550
    %v2553 = vmul.f32 %v2397, %v2550
    %v2554 = vmul.f32 %v2398, %v2550
    %2559 = vrot.lane.b32.xlu0 %v2551, 125
    %v2560 = vpop.permute.xlu0 %2559
    %2561 = vrot.lane.b32.xlu0 %v2552, 125
    %v2562 = vpop.permute.xlu0 %2561
    %2563 = vrot.lane.b32.xlu0 %v2553, 125
    %v2564 = vpop.permute.xlu0 %2563
    %2565 = vrot.lane.b32.xlu0 %v2554, 125
    %v2566 = vpop.permute.xlu0 %2565
    %v2571 = vadd.f32 %v2546, %v2560
    %v2572 = vadd.f32 %v2547, %v2562
    %v2573 = vadd.f32 %v2548, %v2564
    %v2574 = vadd.f32 %v2549, %v2566
    %s2575 = sld [smem:[#allocation7 + $0x20]]
    %s2576 = sld [smem:[#allocation7 + $0x51]]
    %v2577 = vstv %s2575
    %v2578 = vmul.f32 %v2391, %v2577
    %v2579 = vmul.f32 %v2392, %v2577
    %v2580 = vmul.f32 %v2393, %v2577
    %v2581 = vmul.f32 %v2394, %v2577
    %2586 = vrot.lane.b32.xlu0 %v2578, 124
    %v2587 = vpop.permute.xlu0 %2586
    %2588 = vrot.lane.b32.xlu0 %v2579, 124
    %v2589 = vpop.permute.xlu0 %2588
    %2590 = vrot.lane.b32.xlu0 %v2580, 124
    %v2591 = vpop.permute.xlu0 %2590
    %2592 = vrot.lane.b32.xlu0 %v2581, 124
    %v2593 = vpop.permute.xlu0 %2592
    %v2598 = vadd.f32 %v2571, %v2587
    %v2599 = vadd.f32 %v2572, %v2589
    %v2600 = vadd.f32 %v2573, %v2591
    %v2601 = vadd.f32 %v2574, %v2593
    %v2602 = vstv %s2576
    %v2603 = vmul.f32 %v2395, %v2602
    %v2604 = vmul.f32 %v2396, %v2602
    %v2605 = vmul.f32 %v2397, %v2602
    %v2606 = vmul.f32 %v2398, %v2602
    %2611 = vrot.lane.b32.xlu0 %v2603, 124
    %v2612 = vpop.permute.xlu0 %2611
    %2613 = vrot.lane.b32.xlu0 %v2604, 124
    %v2614 = vpop.permute.xlu0 %2613
    %2615 = vrot.lane.b32.xlu0 %v2605, 124
    %v2616 = vpop.permute.xlu0 %2615
    %2617 = vrot.lane.b32.xlu0 %v2606, 124
    %v2618 = vpop.permute.xlu0 %2617
    %v2623 = vadd.f32 %v2598, %v2612
    %v2624 = vadd.f32 %v2599, %v2614
    %v2625 = vadd.f32 %v2600, %v2616
    %v2626 = vadd.f32 %v2601, %v2618
    %s2627 = sld [smem:[#allocation7 + $0x21]]
    %s2628 = sld [smem:[#allocation7 + $0x52]]
    %v2629 = vstv %s2627
    %v2630 = vmul.f32 %v2391, %v2629
    %v2631 = vmul.f32 %v2392, %v2629
    %v2632 = vmul.f32 %v2393, %v2629
    %v2633 = vmul.f32 %v2394, %v2629
    %2638 = vrot.lane.b32.xlu0 %v2630, 123
    %v2639 = vpop.permute.xlu0 %2638
    %2640 = vrot.lane.b32.xlu0 %v2631, 123
    %v2641 = vpop.permute.xlu0 %2640
    %2642 = vrot.lane.b32.xlu0 %v2632, 123
    %v2643 = vpop.permute.xlu0 %2642
    %2644 = vrot.lane.b32.xlu0 %v2633, 123
    %v2645 = vpop.permute.xlu0 %2644
    %v2650 = vadd.f32 %v2623, %v2639
    %v2651 = vadd.f32 %v2624, %v2641
    %v2652 = vadd.f32 %v2625, %v2643
    %v2653 = vadd.f32 %v2626, %v2645
    %v2654 = vstv %s2628
    %v2655 = vmul.f32 %v2395, %v2654
    %v2656 = vmul.f32 %v2396, %v2654
    %v2657 = vmul.f32 %v2397, %v2654
    %v2658 = vmul.f32 %v2398, %v2654
    %2663 = vrot.lane.b32.xlu0 %v2655, 123
    %v2664 = vpop.permute.xlu0 %2663
    %2665 = vrot.lane.b32.xlu0 %v2656, 123
    %v2666 = vpop.permute.xlu0 %2665
    %2667 = vrot.lane.b32.xlu0 %v2657, 123
    %v2668 = vpop.permute.xlu0 %2667
    %2669 = vrot.lane.b32.xlu0 %v2658, 123
    %v2670 = vpop.permute.xlu0 %2669
    %v2675 = vadd.f32 %v2650, %v2664
    %v2676 = vadd.f32 %v2651, %v2666
    %v2677 = vadd.f32 %v2652, %v2668
    %v2678 = vadd.f32 %v2653, %v2670
    %s2679 = sld [smem:[#allocation7 + $0x22]]
    %s2680 = sld [smem:[#allocation7 + $0x53]]
    %v2681 = vstv %s2679
    %v2682 = vmul.f32 %v2391, %v2681
    %v2683 = vmul.f32 %v2392, %v2681
    %v2684 = vmul.f32 %v2393, %v2681
    %v2685 = vmul.f32 %v2394, %v2681
    %2690 = vrot.lane.b32.xlu0 %v2682, 122
    %v2691 = vpop.permute.xlu0 %2690
    %2692 = vrot.lane.b32.xlu0 %v2683, 122
    %v2693 = vpop.permute.xlu0 %2692
    %2694 = vrot.lane.b32.xlu0 %v2684, 122
    %v2695 = vpop.permute.xlu0 %2694
    %2696 = vrot.lane.b32.xlu0 %v2685, 122
    %v2697 = vpop.permute.xlu0 %2696
    %v2702 = vadd.f32 %v2675, %v2691
    %v2703 = vadd.f32 %v2676, %v2693
    %v2704 = vadd.f32 %v2677, %v2695
    %v2705 = vadd.f32 %v2678, %v2697
    %v2706 = vstv %s2680
    %v2707 = vmul.f32 %v2395, %v2706
    %v2708 = vmul.f32 %v2396, %v2706
    %v2709 = vmul.f32 %v2397, %v2706
    %v2710 = vmul.f32 %v2398, %v2706
    %2715 = vrot.lane.b32.xlu0 %v2707, 122
    %v2716 = vpop.permute.xlu0 %2715
    %2717 = vrot.lane.b32.xlu0 %v2708, 122
    %v2718 = vpop.permute.xlu0 %2717
    %2719 = vrot.lane.b32.xlu0 %v2709, 122
    %v2720 = vpop.permute.xlu0 %2719
    %2721 = vrot.lane.b32.xlu0 %v2710, 122
    %v2722 = vpop.permute.xlu0 %2721
    %v2727 = vadd.f32 %v2702, %v2716
    %v2728 = vadd.f32 %v2703, %v2718
    %v2729 = vadd.f32 %v2704, %v2720
    %v2730 = vadd.f32 %v2705, %v2722
    %v2731 = vld [vmem:[#allocation2 + $0x5] sm:$0xff]
    %v2732 = vld [vmem:[#allocation2 + $0xd] sm:$0xff]
    %v2733 = vld [vmem:[#allocation2 + $0x1d] sm:$0xff]
    %v2734 = vld [vmem:[#allocation2 + $0x25] sm:$0xff]
    %v2735 = vld [vmem:[%s1026 + $0x5] sm:$0xff]
    %v2736 = vld [vmem:[%s1026 + $0xd] sm:$0xff]
    %v2737 = vld [vmem:[%s1026 + $0x1d] sm:$0xff]
    %v2738 = vld [vmem:[%s1026 + $0x25] sm:$0xff]
    %s2739 = sld [smem:[#allocation7 + $0x23]]
    %s2740 = sld [smem:[#allocation7 + $0x54]]
    %v2741 = vstv %s2739
    %v2742 = vmul.f32 %v2731, %v2741
    %v2743 = vmul.f32 %v2732, %v2741
    %v2744 = vmul.f32 %v2733, %v2741
    %v2745 = vmul.f32 %v2734, %v2741
    %v2746 = vadd.f32 %v2727, %v2742
    %v2747 = vadd.f32 %v2728, %v2743
    %v2748 = vadd.f32 %v2729, %v2744
    %v2749 = vadd.f32 %v2730, %v2745
    %v2750 = vstv %s2740
    %v2751 = vmul.f32 %v2735, %v2750
    %v2752 = vmul.f32 %v2736, %v2750
    %v2753 = vmul.f32 %v2737, %v2750
    %v2754 = vmul.f32 %v2738, %v2750
    %v2755 = vadd.f32 %v2746, %v2751
    %v2756 = vadd.f32 %v2747, %v2752
    %v2757 = vadd.f32 %v2748, %v2753
    %v2758 = vadd.f32 %v2749, %v2754
    %s2759 = sld [smem:[#allocation7 + $0x24]]
    %s2760 = sld [smem:[#allocation7 + $0x55]]
    %v2761 = vstv %s2759
    %v2762 = vmul.f32 %v2731, %v2761
    %v2763 = vmul.f32 %v2732, %v2761
    %v2764 = vmul.f32 %v2733, %v2761
    %v2765 = vmul.f32 %v2734, %v2761
    %2770 = vrot.lane.b32.xlu0 %v2762, 127
    %v2771 = vpop.permute.xlu0 %2770
    %2772 = vrot.lane.b32.xlu0 %v2763, 127
    %v2773 = vpop.permute.xlu0 %2772
    %2774 = vrot.lane.b32.xlu0 %v2764, 127
    %v2775 = vpop.permute.xlu0 %2774
    %2776 = vrot.lane.b32.xlu0 %v2765, 127
    %v2777 = vpop.permute.xlu0 %2776
    %v2782 = vadd.f32 %v2755, %v2771
    %v2783 = vadd.f32 %v2756, %v2773
    %v2784 = vadd.f32 %v2757, %v2775
    %v2785 = vadd.f32 %v2758, %v2777
    %v2786 = vstv %s2760
    %v2787 = vmul.f32 %v2735, %v2786
    %v2788 = vmul.f32 %v2736, %v2786
    %v2789 = vmul.f32 %v2737, %v2786
    %v2790 = vmul.f32 %v2738, %v2786
    %2795 = vrot.lane.b32.xlu0 %v2787, 127
    %v2796 = vpop.permute.xlu0 %2795
    %2797 = vrot.lane.b32.xlu0 %v2788, 127
    %v2798 = vpop.permute.xlu0 %2797
    %2799 = vrot.lane.b32.xlu0 %v2789, 127
    %v2800 = vpop.permute.xlu0 %2799
    %2801 = vrot.lane.b32.xlu0 %v2790, 127
    %v2802 = vpop.permute.xlu0 %2801
    %v2807 = vadd.f32 %v2782, %v2796
    %v2808 = vadd.f32 %v2783, %v2798
    %v2809 = vadd.f32 %v2784, %v2800
    %v2810 = vadd.f32 %v2785, %v2802
    %s2811 = sld [smem:[#allocation7 + $0x25]]
    %s2812 = sld [smem:[#allocation7 + $0x56]]
    %v2813 = vstv %s2811
    %v2814 = vmul.f32 %v2731, %v2813
    %v2815 = vmul.f32 %v2732, %v2813
    %v2816 = vmul.f32 %v2733, %v2813
    %v2817 = vmul.f32 %v2734, %v2813
    %2822 = vrot.lane.b32.xlu0 %v2814, 126
    %v2823 = vpop.permute.xlu0 %2822
    %2824 = vrot.lane.b32.xlu0 %v2815, 126
    %v2825 = vpop.permute.xlu0 %2824
    %2826 = vrot.lane.b32.xlu0 %v2816, 126
    %v2827 = vpop.permute.xlu0 %2826
    %2828 = vrot.lane.b32.xlu0 %v2817, 126
    %v2829 = vpop.permute.xlu0 %2828
    %v2834 = vadd.f32 %v2807, %v2823
    %v2835 = vadd.f32 %v2808, %v2825
    %v2836 = vadd.f32 %v2809, %v2827
    %v2837 = vadd.f32 %v2810, %v2829
    %v2838 = vstv %s2812
    %v2839 = vmul.f32 %v2735, %v2838
    %v2840 = vmul.f32 %v2736, %v2838
    %v2841 = vmul.f32 %v2737, %v2838
    %v2842 = vmul.f32 %v2738, %v2838
    %2847 = vrot.lane.b32.xlu0 %v2839, 126
    %v2848 = vpop.permute.xlu0 %2847
    %2849 = vrot.lane.b32.xlu0 %v2840, 126
    %v2850 = vpop.permute.xlu0 %2849
    %2851 = vrot.lane.b32.xlu0 %v2841, 126
    %v2852 = vpop.permute.xlu0 %2851
    %2853 = vrot.lane.b32.xlu0 %v2842, 126
    %v2854 = vpop.permute.xlu0 %2853
    %v2859 = vadd.f32 %v2834, %v2848
    %v2860 = vadd.f32 %v2835, %v2850
    %v2861 = vadd.f32 %v2836, %v2852
    %v2862 = vadd.f32 %v2837, %v2854
    %s2863 = sld [smem:[#allocation7 + $0x26]]
    %s2864 = sld [smem:[#allocation7 + $0x57]]
    %v2865 = vstv %s2863
    %v2866 = vmul.f32 %v2731, %v2865
    %v2867 = vmul.f32 %v2732, %v2865
    %v2868 = vmul.f32 %v2733, %v2865
    %v2869 = vmul.f32 %v2734, %v2865
    %2874 = vrot.lane.b32.xlu0 %v2866, 125
    %v2875 = vpop.permute.xlu0 %2874
    %2876 = vrot.lane.b32.xlu0 %v2867, 125
    %v2877 = vpop.permute.xlu0 %2876
    %2878 = vrot.lane.b32.xlu0 %v2868, 125
    %v2879 = vpop.permute.xlu0 %2878
    %2880 = vrot.lane.b32.xlu0 %v2869, 125
    %v2881 = vpop.permute.xlu0 %2880
    %v2886 = vadd.f32 %v2859, %v2875
    %v2887 = vadd.f32 %v2860, %v2877
    %v2888 = vadd.f32 %v2861, %v2879
    %v2889 = vadd.f32 %v2862, %v2881
    %v2890 = vstv %s2864
    %v2891 = vmul.f32 %v2735, %v2890
    %v2892 = vmul.f32 %v2736, %v2890
    %v2893 = vmul.f32 %v2737, %v2890
    %v2894 = vmul.f32 %v2738, %v2890
    %2899 = vrot.lane.b32.xlu0 %v2891, 125
    %v2900 = vpop.permute.xlu0 %2899
    %2901 = vrot.lane.b32.xlu0 %v2892, 125
    %v2902 = vpop.permute.xlu0 %2901
    %2903 = vrot.lane.b32.xlu0 %v2893, 125
    %v2904 = vpop.permute.xlu0 %2903
    %2905 = vrot.lane.b32.xlu0 %v2894, 125
    %v2906 = vpop.permute.xlu0 %2905
    %v2911 = vadd.f32 %v2886, %v2900
    %v2912 = vadd.f32 %v2887, %v2902
    %v2913 = vadd.f32 %v2888, %v2904
    %v2914 = vadd.f32 %v2889, %v2906
    %s2915 = sld [smem:[#allocation7 + $0x27]]
    %s2916 = sld [smem:[#allocation7 + $0x58]]
    %v2917 = vstv %s2915
    %v2918 = vmul.f32 %v2731, %v2917
    %v2919 = vmul.f32 %v2732, %v2917
    %v2920 = vmul.f32 %v2733, %v2917
    %v2921 = vmul.f32 %v2734, %v2917
    %2926 = vrot.lane.b32.xlu0 %v2918, 124
    %v2927 = vpop.permute.xlu0 %2926
    %2928 = vrot.lane.b32.xlu0 %v2919, 124
    %v2929 = vpop.permute.xlu0 %2928
    %2930 = vrot.lane.b32.xlu0 %v2920, 124
    %v2931 = vpop.permute.xlu0 %2930
    %2932 = vrot.lane.b32.xlu0 %v2921, 124
    %v2933 = vpop.permute.xlu0 %2932
    %v2938 = vadd.f32 %v2911, %v2927
    %v2939 = vadd.f32 %v2912, %v2929
    %v2940 = vadd.f32 %v2913, %v2931
    %v2941 = vadd.f32 %v2914, %v2933
    %v2942 = vstv %s2916
    %v2943 = vmul.f32 %v2735, %v2942
    %v2944 = vmul.f32 %v2736, %v2942
    %v2945 = vmul.f32 %v2737, %v2942
    %v2946 = vmul.f32 %v2738, %v2942
    %2951 = vrot.lane.b32.xlu0 %v2943, 124
    %v2952 = vpop.permute.xlu0 %2951
    %2953 = vrot.lane.b32.xlu0 %v2944, 124
    %v2954 = vpop.permute.xlu0 %2953
    %2955 = vrot.lane.b32.xlu0 %v2945, 124
    %v2956 = vpop.permute.xlu0 %2955
    %2957 = vrot.lane.b32.xlu0 %v2946, 124
    %v2958 = vpop.permute.xlu0 %2957
    %v2963 = vadd.f32 %v2938, %v2952
    %v2964 = vadd.f32 %v2939, %v2954
    %v2965 = vadd.f32 %v2940, %v2956
    %v2966 = vadd.f32 %v2941, %v2958
    %s2967 = sld [smem:[#allocation7 + $0x28]]
    %s2968 = sld [smem:[#allocation7 + $0x59]]
    %v2969 = vstv %s2967
    %v2970 = vmul.f32 %v2731, %v2969
    %v2971 = vmul.f32 %v2732, %v2969
    %v2972 = vmul.f32 %v2733, %v2969
    %v2973 = vmul.f32 %v2734, %v2969
    %2978 = vrot.lane.b32.xlu0 %v2970, 123
    %v2979 = vpop.permute.xlu0 %2978
    %2980 = vrot.lane.b32.xlu0 %v2971, 123
    %v2981 = vpop.permute.xlu0 %2980
    %2982 = vrot.lane.b32.xlu0 %v2972, 123
    %v2983 = vpop.permute.xlu0 %2982
    %2984 = vrot.lane.b32.xlu0 %v2973, 123
    %v2985 = vpop.permute.xlu0 %2984
    %v2990 = vadd.f32 %v2963, %v2979
    %v2991 = vadd.f32 %v2964, %v2981
    %v2992 = vadd.f32 %v2965, %v2983
    %v2993 = vadd.f32 %v2966, %v2985
    %v2994 = vstv %s2968
    %v2995 = vmul.f32 %v2735, %v2994
    %v2996 = vmul.f32 %v2736, %v2994
    %v2997 = vmul.f32 %v2737, %v2994
    %v2998 = vmul.f32 %v2738, %v2994
    %3003 = vrot.lane.b32.xlu0 %v2995, 123
    %v3004 = vpop.permute.xlu0 %3003
    %3005 = vrot.lane.b32.xlu0 %v2996, 123
    %v3006 = vpop.permute.xlu0 %3005
    %3007 = vrot.lane.b32.xlu0 %v2997, 123
    %v3008 = vpop.permute.xlu0 %3007
    %3009 = vrot.lane.b32.xlu0 %v2998, 123
    %v3010 = vpop.permute.xlu0 %3009
    %v3015 = vadd.f32 %v2990, %v3004
    %v3016 = vadd.f32 %v2991, %v3006
    %v3017 = vadd.f32 %v2992, %v3008
    %v3018 = vadd.f32 %v2993, %v3010
    %s3019 = sld [smem:[#allocation7 + $0x29]]
    %s3020 = sld [smem:[#allocation7 + $0x5a]]
    %v3021 = vstv %s3019
    %v3022 = vmul.f32 %v2731, %v3021
    %v3023 = vmul.f32 %v2732, %v3021
    %v3024 = vmul.f32 %v2733, %v3021
    %v3025 = vmul.f32 %v2734, %v3021
    %3030 = vrot.lane.b32.xlu0 %v3022, 122
    %v3031 = vpop.permute.xlu0 %3030
    %3032 = vrot.lane.b32.xlu0 %v3023, 122
    %v3033 = vpop.permute.xlu0 %3032
    %3034 = vrot.lane.b32.xlu0 %v3024, 122
    %v3035 = vpop.permute.xlu0 %3034
    %3036 = vrot.lane.b32.xlu0 %v3025, 122
    %v3037 = vpop.permute.xlu0 %3036
    %v3042 = vadd.f32 %v3015, %v3031
    %v3043 = vadd.f32 %v3016, %v3033
    %v3044 = vadd.f32 %v3017, %v3035
    %v3045 = vadd.f32 %v3018, %v3037
    %v3046 = vstv %s3020
    %v3047 = vmul.f32 %v2735, %v3046
    %v3048 = vmul.f32 %v2736, %v3046
    %v3049 = vmul.f32 %v2737, %v3046
    %v3050 = vmul.f32 %v2738, %v3046
    %3055 = vrot.lane.b32.xlu0 %v3047, 122
    %v3056 = vpop.permute.xlu0 %3055
    %3057 = vrot.lane.b32.xlu0 %v3048, 122
    %v3058 = vpop.permute.xlu0 %3057
    %3059 = vrot.lane.b32.xlu0 %v3049, 122
    %v3060 = vpop.permute.xlu0 %3059
    %3061 = vrot.lane.b32.xlu0 %v3050, 122
    %v3062 = vpop.permute.xlu0 %3061
    %v3067 = vadd.f32 %v3042, %v3056
    %v3068 = vadd.f32 %v3043, %v3058
    %v3069 = vadd.f32 %v3044, %v3060
    %v3070 = vadd.f32 %v3045, %v3062
    %v3071 = vld [vmem:[#allocation2 + $0x6] sm:$0xff]
    %v3072 = vld [vmem:[#allocation2 + $0xe] sm:$0xff]
    %v3073 = vld [vmem:[#allocation2 + $0x1e] sm:$0xff]
    %v3074 = vld [vmem:[#allocation2 + $0x26] sm:$0xff]
    %v3075 = vld [vmem:[%s1026 + $0x6] sm:$0xff]
    %v3076 = vld [vmem:[%s1026 + $0xe] sm:$0xff]
    %v3077 = vld [vmem:[%s1026 + $0x1e] sm:$0xff]
    %v3078 = vld [vmem:[%s1026 + $0x26] sm:$0xff]
    %s3079 = sld [smem:[#allocation7 + $0x2a]]
    %s3080 = sld [smem:[#allocation7 + $0x5b]]
    %v3081 = vstv %s3079
    %v3082 = vmul.f32 %v3071, %v3081
    %v3083 = vmul.f32 %v3072, %v3081
    %v3084 = vmul.f32 %v3073, %v3081
    %v3085 = vmul.f32 %v3074, %v3081
    %v3086 = vadd.f32 %v3067, %v3082
    %v3087 = vadd.f32 %v3068, %v3083
    %v3088 = vadd.f32 %v3069, %v3084
    %v3089 = vadd.f32 %v3070, %v3085
    %v3090 = vstv %s3080
    %v3091 = vmul.f32 %v3075, %v3090
    %v3092 = vmul.f32 %v3076, %v3090
    %v3093 = vmul.f32 %v3077, %v3090
    %v3094 = vmul.f32 %v3078, %v3090
    %v3095 = vadd.f32 %v3086, %v3091
    %v3096 = vadd.f32 %v3087, %v3092
    %v3097 = vadd.f32 %v3088, %v3093
    %v3098 = vadd.f32 %v3089, %v3094
    %s3099 = sld [smem:[#allocation7 + $0x2b]]
    %s3100 = sld [smem:[#allocation7 + $0x5c]]
    %v3101 = vstv %s3099
    %v3102 = vmul.f32 %v3071, %v3101
    %v3103 = vmul.f32 %v3072, %v3101
    %v3104 = vmul.f32 %v3073, %v3101
    %v3105 = vmul.f32 %v3074, %v3101
    %3110 = vrot.lane.b32.xlu0 %v3102, 127
    %v3111 = vpop.permute.xlu0 %3110
    %3112 = vrot.lane.b32.xlu0 %v3103, 127
    %v3113 = vpop.permute.xlu0 %3112
    %3114 = vrot.lane.b32.xlu0 %v3104, 127
    %v3115 = vpop.permute.xlu0 %3114
    %3116 = vrot.lane.b32.xlu0 %v3105, 127
    %v3117 = vpop.permute.xlu0 %3116
    %v3122 = vadd.f32 %v3095, %v3111
    %v3123 = vadd.f32 %v3096, %v3113
    %v3124 = vadd.f32 %v3097, %v3115
    %v3125 = vadd.f32 %v3098, %v3117
    %v3126 = vstv %s3100
    %v3127 = vmul.f32 %v3075, %v3126
    %v3128 = vmul.f32 %v3076, %v3126
    %v3129 = vmul.f32 %v3077, %v3126
    %v3130 = vmul.f32 %v3078, %v3126
    %3135 = vrot.lane.b32.xlu0 %v3127, 127
    %v3136 = vpop.permute.xlu0 %3135
    %3137 = vrot.lane.b32.xlu0 %v3128, 127
    %v3138 = vpop.permute.xlu0 %3137
    %3139 = vrot.lane.b32.xlu0 %v3129, 127
    %v3140 = vpop.permute.xlu0 %3139
    %3141 = vrot.lane.b32.xlu0 %v3130, 127
    %v3142 = vpop.permute.xlu0 %3141
    %v3147 = vadd.f32 %v3122, %v3136
    %v3148 = vadd.f32 %v3123, %v3138
    %v3149 = vadd.f32 %v3124, %v3140
    %v3150 = vadd.f32 %v3125, %v3142
    %s3151 = sld [smem:[#allocation7 + $0x2c]]
    %s3152 = sld [smem:[#allocation7 + $0x5d]]
    %v3153 = vstv %s3151
    %v3154 = vmul.f32 %v3071, %v3153
    %v3155 = vmul.f32 %v3072, %v3153
    %v3156 = vmul.f32 %v3073, %v3153
    %v3157 = vmul.f32 %v3074, %v3153
    %3162 = vrot.lane.b32.xlu0 %v3154, 126
    %v3163 = vpop.permute.xlu0 %3162
    %3164 = vrot.lane.b32.xlu0 %v3155, 126
    %v3165 = vpop.permute.xlu0 %3164
    %3166 = vrot.lane.b32.xlu0 %v3156, 126
    %v3167 = vpop.permute.xlu0 %3166
    %3168 = vrot.lane.b32.xlu0 %v3157, 126
    %v3169 = vpop.permute.xlu0 %3168
    %v3174 = vadd.f32 %v3147, %v3163
    %v3175 = vadd.f32 %v3148, %v3165
    %v3176 = vadd.f32 %v3149, %v3167
    %v3177 = vadd.f32 %v3150, %v3169
    %v3178 = vstv %s3152
    %v3179 = vmul.f32 %v3075, %v3178
    %v3180 = vmul.f32 %v3076, %v3178
    %v3181 = vmul.f32 %v3077, %v3178
    %v3182 = vmul.f32 %v3078, %v3178
    %3187 = vrot.lane.b32.xlu0 %v3179, 126
    %v3188 = vpop.permute.xlu0 %3187
    %3189 = vrot.lane.b32.xlu0 %v3180, 126
    %v3190 = vpop.permute.xlu0 %3189
    %3191 = vrot.lane.b32.xlu0 %v3181, 126
    %v3192 = vpop.permute.xlu0 %3191
    %3193 = vrot.lane.b32.xlu0 %v3182, 126
    %v3194 = vpop.permute.xlu0 %3193
    %v3199 = vadd.f32 %v3174, %v3188
    %v3200 = vadd.f32 %v3175, %v3190
    %v3201 = vadd.f32 %v3176, %v3192
    %v3202 = vadd.f32 %v3177, %v3194
    %s3203 = sld [smem:[#allocation7 + $0x2d]]
    %s3204 = sld [smem:[#allocation7 + $0x5e]]
    %v3205 = vstv %s3203
    %v3206 = vmul.f32 %v3071, %v3205
    %v3207 = vmul.f32 %v3072, %v3205
    %v3208 = vmul.f32 %v3073, %v3205
    %v3209 = vmul.f32 %v3074, %v3205
    %3214 = vrot.lane.b32.xlu0 %v3206, 125
    %v3215 = vpop.permute.xlu0 %3214
    %3216 = vrot.lane.b32.xlu0 %v3207, 125
    %v3217 = vpop.permute.xlu0 %3216
    %3218 = vrot.lane.b32.xlu0 %v3208, 125
    %v3219 = vpop.permute.xlu0 %3218
    %3220 = vrot.lane.b32.xlu0 %v3209, 125
    %v3221 = vpop.permute.xlu0 %3220
    %v3226 = vadd.f32 %v3199, %v3215
    %v3227 = vadd.f32 %v3200, %v3217
    %v3228 = vadd.f32 %v3201, %v3219
    %v3229 = vadd.f32 %v3202, %v3221
    %v3230 = vstv %s3204
    %v3231 = vmul.f32 %v3075, %v3230
    %v3232 = vmul.f32 %v3076, %v3230
    %v3233 = vmul.f32 %v3077, %v3230
    %v3234 = vmul.f32 %v3078, %v3230
    %3239 = vrot.lane.b32.xlu0 %v3231, 125
    %v3240 = vpop.permute.xlu0 %3239
    %3241 = vrot.lane.b32.xlu0 %v3232, 125
    %v3242 = vpop.permute.xlu0 %3241
    %3243 = vrot.lane.b32.xlu0 %v3233, 125
    %v3244 = vpop.permute.xlu0 %3243
    %3245 = vrot.lane.b32.xlu0 %v3234, 125
    %v3246 = vpop.permute.xlu0 %3245
    %v3251 = vadd.f32 %v3226, %v3240
    %v3252 = vadd.f32 %v3227, %v3242
    %v3253 = vadd.f32 %v3228, %v3244
    %v3254 = vadd.f32 %v3229, %v3246
    %s3255 = sld [smem:[#allocation7 + $0x2e]]
    %s3256 = sld [smem:[#allocation7 + $0x5f]]
    %v3257 = vstv %s3255
    %v3258 = vmul.f32 %v3071, %v3257
    %v3259 = vmul.f32 %v3072, %v3257
    %v3260 = vmul.f32 %v3073, %v3257
    %v3261 = vmul.f32 %v3074, %v3257
    %3266 = vrot.lane.b32.xlu0 %v3258, 124
    %v3267 = vpop.permute.xlu0 %3266
    %3268 = vrot.lane.b32.xlu0 %v3259, 124
    %v3269 = vpop.permute.xlu0 %3268
    %3270 = vrot.lane.b32.xlu0 %v3260, 124
    %v3271 = vpop.permute.xlu0 %3270
    %3272 = vrot.lane.b32.xlu0 %v3261, 124
    %v3273 = vpop.permute.xlu0 %3272
    %v3278 = vadd.f32 %v3251, %v3267
    %v3279 = vadd.f32 %v3252, %v3269
    %v3280 = vadd.f32 %v3253, %v3271
    %v3281 = vadd.f32 %v3254, %v3273
    %v3282 = vstv %s3256
    %v3283 = vmul.f32 %v3075, %v3282
    %v3284 = vmul.f32 %v3076, %v3282
    %v3285 = vmul.f32 %v3077, %v3282
    %v3286 = vmul.f32 %v3078, %v3282
    %3291 = vrot.lane.b32.xlu0 %v3283, 124
    %v3292 = vpop.permute.xlu0 %3291
    %3293 = vrot.lane.b32.xlu0 %v3284, 124
    %v3294 = vpop.permute.xlu0 %3293
    %3295 = vrot.lane.b32.xlu0 %v3285, 124
    %v3296 = vpop.permute.xlu0 %3295
    %3297 = vrot.lane.b32.xlu0 %v3286, 124
    %v3298 = vpop.permute.xlu0 %3297
    %v3303 = vadd.f32 %v3278, %v3292
    %v3304 = vadd.f32 %v3279, %v3294
    %v3305 = vadd.f32 %v3280, %v3296
    %v3306 = vadd.f32 %v3281, %v3298
    %s3307 = sld [smem:[#allocation7 + $0x2f]]
    %s3308 = sld [smem:[#allocation7 + $0x60]]
    %v3309 = vstv %s3307
    %v3310 = vmul.f32 %v3071, %v3309
    %v3311 = vmul.f32 %v3072, %v3309
    %v3312 = vmul.f32 %v3073, %v3309
    %v3313 = vmul.f32 %v3074, %v3309
    %3318 = vrot.lane.b32.xlu0 %v3310, 123
    %v3319 = vpop.permute.xlu0 %3318
    %3320 = vrot.lane.b32.xlu0 %v3311, 123
    %v3321 = vpop.permute.xlu0 %3320
    %3322 = vrot.lane.b32.xlu0 %v3312, 123
    %v3323 = vpop.permute.xlu0 %3322
    %3324 = vrot.lane.b32.xlu0 %v3313, 123
    %v3325 = vpop.permute.xlu0 %3324
    %v3330 = vadd.f32 %v3303, %v3319
    %v3331 = vadd.f32 %v3304, %v3321
    %v3332 = vadd.f32 %v3305, %v3323
    %v3333 = vadd.f32 %v3306, %v3325
    %v3334 = vstv %s3308
    %v3335 = vmul.f32 %v3075, %v3334
    %v3336 = vmul.f32 %v3076, %v3334
    %v3337 = vmul.f32 %v3077, %v3334
    %v3338 = vmul.f32 %v3078, %v3334
    %3343 = vrot.lane.b32.xlu0 %v3335, 123
    %v3344 = vpop.permute.xlu0 %3343
    %3345 = vrot.lane.b32.xlu0 %v3336, 123
    %v3346 = vpop.permute.xlu0 %3345
    %3347 = vrot.lane.b32.xlu0 %v3337, 123
    %v3348 = vpop.permute.xlu0 %3347
    %3349 = vrot.lane.b32.xlu0 %v3338, 123
    %v3350 = vpop.permute.xlu0 %3349
    %v3355 = vadd.f32 %v3330, %v3344
    %v3356 = vadd.f32 %v3331, %v3346
    %v3357 = vadd.f32 %v3332, %v3348
    %v3358 = vadd.f32 %v3333, %v3350
    %s3359 = sld [smem:[#allocation7 + $0x30]]
    %s3360 = sld [smem:[#allocation7 + $0x61]]
    %v3361 = vstv %s3359
    %v3362 = vmul.f32 %v3071, %v3361
    %v3363 = vmul.f32 %v3072, %v3361
    %v3364 = vmul.f32 %v3073, %v3361
    %v3365 = vmul.f32 %v3074, %v3361
    %3370 = vrot.lane.b32.xlu0 %v3362, 122
    %v3371 = vpop.permute.xlu0 %3370
    %3372 = vrot.lane.b32.xlu0 %v3363, 122
    %v3373 = vpop.permute.xlu0 %3372
    %3374 = vrot.lane.b32.xlu0 %v3364, 122
    %v3375 = vpop.permute.xlu0 %3374
    %3376 = vrot.lane.b32.xlu0 %v3365, 122
    %v3377 = vpop.permute.xlu0 %3376
    %v3382 = vadd.f32 %v3355, %v3371
    %v3383 = vadd.f32 %v3356, %v3373
    %v3384 = vadd.f32 %v3357, %v3375
    %v3385 = vadd.f32 %v3358, %v3377
    %v3386 = vstv %s3360
    %v3387 = vmul.f32 %v3075, %v3386
    %v3388 = vmul.f32 %v3076, %v3386
    %v3389 = vmul.f32 %v3077, %v3386
    %v3390 = vmul.f32 %v3078, %v3386
    %3395 = vrot.lane.b32.xlu0 %v3387, 122
    %v3396 = vpop.permute.xlu0 %3395
    %3397 = vrot.lane.b32.xlu0 %v3388, 122
    %v3398 = vpop.permute.xlu0 %3397
    %3399 = vrot.lane.b32.xlu0 %v3389, 122
    %v3400 = vpop.permute.xlu0 %3399
    %3401 = vrot.lane.b32.xlu0 %v3390, 122
    %v3402 = vpop.permute.xlu0 %3401
    %v3407 = vadd.f32 %v3382, %v3396
    %v3408 = vadd.f32 %v3383, %v3398
    %v3409 = vadd.f32 %v3384, %v3400
    %v3410 = vadd.f32 %v3385, %v3402
    %s3411 = sld [smem:[#allocation8]]
    %s3412 = sld [smem:[#allocation8 + $0x1]]
    %s3413 = sld [smem:[#allocation8 + $0x2]]
    %vm3414 = vcmask 130048
    %v3415 = vsel %vm3414, %v3407, 0.0
    %v3416 = vsel %vm3414, %v3408, 0.0
    %v3417 = vadd.f32 %v3415, %v3416
    %v3418 = vsel %vm3414, %v3409, 0.0
    %v3419 = vadd.f32 %v3417, %v3418
    %v3420 = vsel %vm3414, %v3410, 0.0
    %v3421 = vadd.f32 %v3419, %v3420
    %3422 = vadd.xlane.f32.xlu0 %v3421
    %v3423 = vpop.xlane.xlu0 %3422
    %v3424 = vrot.slane %v3423, 4
    %v3425 = vadd.f32 %v3423, %v3424
    %v3426 = vrot.slane %v3425, 2
    %v3427 = vadd.f32 %v3425, %v3426
    %v3428 = vrot.slane %v3427, 1
    %v3429 = vadd.f32 %v3427, %v3428
    %s3430 = vtos %v3429
    %v3431 = vrcp.pop 512.0
    %s3432 = vtos %v3431
    %s3433 = smul.f32 %s3430, %s3432
    %v3434 = vstv %s3433
    %v3435 = vsub.f32 %v3407, %v3434
    %v3436 = vsub.f32 %v3408, %v3434
    %v3437 = vsub.f32 %v3409, %v3434
    %v3438 = vsub.f32 %v3410, %v3434
    %v3439 = vmul.f32 %v3435, %v3435
    %v3440 = vmul.f32 %v3436, %v3436
    %v3441 = vmul.f32 %v3437, %v3437
    %v3442 = vmul.f32 %v3438, %v3438
    %v3443 = vsel %vm3414, %v3439, 0.0
    %v3444 = vsel %vm3414, %v3440, 0.0
    %v3445 = vadd.f32 %v3443, %v3444
    %v3446 = vsel %vm3414, %v3441, 0.0
    %v3447 = vadd.f32 %v3445, %v3446
    %v3448 = vsel %vm3414, %v3442, 0.0
    %v3449 = vadd.f32 %v3447, %v3448
    %3450 = vadd.xlane.f32.xlu0 %v3449
    %v3451 = vpop.xlane.xlu0 %3450
    %v3452 = vrot.slane %v3451, 4
    %v3453 = vadd.f32 %v3451, %v3452
    %v3454 = vrot.slane %v3453, 2
    %v3455 = vadd.f32 %v3453, %v3454
    %v3456 = vrot.slane %v3455, 1
    %v3457 = vadd.f32 %v3455, %v3456
    %s3458 = vtos %v3457
    %v3459 = vrcp.pop 512.0
    %s3460 = vtos %v3459
    %s3461 = smul.f32 %s3458, %s3460
    %s3462 = sadd.f32 %s3461, %s3413
    %v3463 = vstv %s3462
    %v3464 = vrsqrt.pop %v3463
    %s3465 = vtos %v3464
    %s3466 = smul.f32 %s3465, %s3411
    %v3467 = vstv %s3466
    %v3468 = vmul.f32 %v3435, %v3467
    %v3469 = vmul.f32 %v3436, %v3467
    %v3470 = vmul.f32 %v3437, %v3467
    %v3471 = vmul.f32 %v3438, %v3467
    %v3472 = vstv %s3412
    %v3473 = vadd.f32 %v3468, %v3472
    %v3474 = vadd.f32 %v3469, %v3472
    %v3475 = vadd.f32 %v3470, %v3472
    %v3476 = vadd.f32 %v3471, %v3472
    %v3477 = vxor.u32 %v3473, 2147483648
    %v3478 = vxor.u32 %v3474, 2147483648
    %v3479 = vxor.u32 %v3475, 2147483648
    %v3480 = vxor.u32 %v3476, 2147483648
    %v3481 = vmul.f32 %v3477, 1.442695
    %v3482 = vpow.pop %v3481
    %v3483 = vmul.f32 %v3478, 1.442695
    %v3484 = vpow.pop %v3483
    %v3485 = vmul.f32 %v3479, 1.442695
    %v3486 = vpow.pop %v3485
    %v3487 = vmul.f32 %v3480, 1.442695
    %v3488 = vpow.pop %v3487
    %v3489 = vadd.f32 %v3482, 1.0
    %v3490 = vadd.f32 %v3484, 1.0
    %v3491 = vadd.f32 %v3486, 1.0
    %v3492 = vadd.f32 %v3488, 1.0
    %v3493 = vrcp.pop %v3489
    %v3494 = vmul.f32 1.0, %v3493
    %v3495 = vrcp.pop %v3490
    %v3496 = vmul.f32 1.0, %v3495
    %v3497 = vrcp.pop %v3491
    %v3498 = vmul.f32 1.0, %v3497
    %v3499 = vrcp.pop %v3492
    %v3500 = vmul.f32 1.0, %v3499
    %v3501 = vcombine.high %v3494, 0.0
    %v3503 = vunpack.c.l.s4 1983009808
    %v3504 = vunpack.c.0.s8 %v3503
    %v3505 = vlaneseq
    %v3506 = vshrl.u32 %v3505, 7
    %v3507 = vsub.s32 %v3504, %v3506
    %v3508 = vrot.slane %v3494, %v3507
    %v3510 = vunpack.c.l.s4 1983009808
    %v3511 = vunpack.c.0.s8 %v3510
    %v3512 = vlaneseq
    %v3513 = vshrl.u32 %v3512, 7
    %v3514 = vsub.s32 %v3511, %v3513
    %v3515 = vrot.slane %v3501, %v3514
    %v3516 = vcombine.high %v3508, 0.0
    %v3518 = vunpack.c.l.s4 1934713408
    %v3519 = vunpack.c.0.s8 %v3518
    %v3520 = vlaneseq
    %v3521 = vshrl.u32 %v3520, 7
    %v3522 = vsub.s32 %v3519, %v3521
    %v3523 = vrot.slane %v3508, %v3522
    %v3525 = vunpack.c.l.s4 1934713408
    %v3526 = vunpack.c.0.s8 %v3525
    %v3527 = vlaneseq
    %v3528 = vshrl.u32 %v3527, 7
    %v3529 = vsub.s32 %v3526, %v3528
    %v3530 = vrot.slane %v3516, %v3529
    %v3531 = vcombine.high %v3515, 0.0
    %v3533 = vunpack.c.l.s4 1934713408
    %v3534 = vunpack.c.0.s8 %v3533
    %v3535 = vlaneseq
    %v3536 = vshrl.u32 %v3535, 7
    %v3537 = vsub.s32 %v3534, %v3536
    %v3538 = vrot.slane %v3515, %v3537
    %v3540 = vunpack.c.l.s4 1934713408
    %v3541 = vunpack.c.0.s8 %v3540
    %v3542 = vlaneseq
    %v3543 = vshrl.u32 %v3542, 7
    %v3544 = vsub.s32 %v3541, %v3543
    %v3545 = vrot.slane %v3531, %v3544
    %v3546 = vcombine.high %v3523, 0.0
    %v3547 = vcombine.high %v3530, 0.0
    %v3548 = vcombine.high %v3538, 0.0
    %v3549 = vcombine.high %v3545, 0.0
    %v3550 = vcombine.high %v3496, 0.0
    %v3552 = vunpack.c.l.s4 1983009808
    %v3553 = vunpack.c.0.s8 %v3552
    %v3554 = vlaneseq
    %v3555 = vshrl.u32 %v3554, 7
    %v3556 = vsub.s32 %v3553, %v3555
    %v3557 = vrot.slane %v3496, %v3556
    %v3559 = vunpack.c.l.s4 1983009808
    %v3560 = vunpack.c.0.s8 %v3559
    %v3561 = vlaneseq
    %v3562 = vshrl.u32 %v3561, 7
    %v3563 = vsub.s32 %v3560, %v3562
    %v3564 = vrot.slane %v3550, %v3563
    %v3565 = vcombine.high %v3557, 0.0
    %v3567 = vunpack.c.l.s4 1934713408
    %v3568 = vunpack.c.0.s8 %v3567
    %v3569 = vlaneseq
    %v3570 = vshrl.u32 %v3569, 7
    %v3571 = vsub.s32 %v3568, %v3570
    %v3572 = vrot.slane %v3557, %v3571
    %v3574 = vunpack.c.l.s4 1934713408
    %v3575 = vunpack.c.0.s8 %v3574
    %v3576 = vlaneseq
    %v3577 = vshrl.u32 %v3576, 7
    %v3578 = vsub.s32 %v3575, %v3577
    %v3579 = vrot.slane %v3565, %v3578
    %v3580 = vcombine.high %v3564, 0.0
    %v3582 = vunpack.c.l.s4 1934713408
    %v3583 = vunpack.c.0.s8 %v3582
    %v3584 = vlaneseq
    %v3585 = vshrl.u32 %v3584, 7
    %v3586 = vsub.s32 %v3583, %v3585
    %v3587 = vrot.slane %v3564, %v3586
    %v3589 = vunpack.c.l.s4 1934713408
    %v3590 = vunpack.c.0.s8 %v3589
    %v3591 = vlaneseq
    %v3592 = vshrl.u32 %v3591, 7
    %v3593 = vsub.s32 %v3590, %v3592
    %v3594 = vrot.slane %v3580, %v3593
    %v3595 = vcombine.high %v3572, 0.0
    %v3596 = vcombine.high %v3579, 0.0
    %v3597 = vcombine.high %v3587, 0.0
    %v3598 = vcombine.high %v3594, 0.0
    %v3599 = vcombine.high %v3498, 0.0
    %v3601 = vunpack.c.l.s4 1983009808
    %v3602 = vunpack.c.0.s8 %v3601
    %v3603 = vlaneseq
    %v3604 = vshrl.u32 %v3603, 7
    %v3605 = vsub.s32 %v3602, %v3604
    %v3606 = vrot.slane %v3498, %v3605
    %v3608 = vunpack.c.l.s4 1983009808
    %v3609 = vunpack.c.0.s8 %v3608
    %v3610 = vlaneseq
    %v3611 = vshrl.u32 %v3610, 7
    %v3612 = vsub.s32 %v3609, %v3611
    %v3613 = vrot.slane %v3599, %v3612
    %v3614 = vcombine.high %v3606, 0.0
    %v3616 = vunpack.c.l.s4 1934713408
    %v3617 = vunpack.c.0.s8 %v3616
    %v3618 = vlaneseq
    %v3619 = vshrl.u32 %v3618, 7
    %v3620 = vsub.s32 %v3617, %v3619
    %v3621 = vrot.slane %v3606, %v3620
    %v3623 = vunpack.c.l.s4 1934713408
    %v3624 = vunpack.c.0.s8 %v3623
    %v3625 = vlaneseq
    %v3626 = vshrl.u32 %v3625, 7
    %v3627 = vsub.s32 %v3624, %v3626
    %v3628 = vrot.slane %v3614, %v3627
    %v3629 = vcombine.high %v3613, 0.0
    %v3631 = vunpack.c.l.s4 1934713408
    %v3632 = vunpack.c.0.s8 %v3631
    %v3633 = vlaneseq
    %v3634 = vshrl.u32 %v3633, 7
    %v3635 = vsub.s32 %v3632, %v3634
    %v3636 = vrot.slane %v3613, %v3635
    %v3638 = vunpack.c.l.s4 1934713408
    %v3639 = vunpack.c.0.s8 %v3638
    %v3640 = vlaneseq
    %v3641 = vshrl.u32 %v3640, 7
    %v3642 = vsub.s32 %v3639, %v3641
    %v3643 = vrot.slane %v3629, %v3642
    %v3644 = vcombine.high %v3621, 0.0
    %v3645 = vcombine.high %v3628, 0.0
    %v3646 = vcombine.high %v3636, 0.0
    %v3647 = vcombine.high %v3643, 0.0
    %v3648 = vcombine.high %v3500, 0.0
    %v3650 = vunpack.c.l.s4 1983009808
    %v3651 = vunpack.c.0.s8 %v3650
    %v3652 = vlaneseq
    %v3653 = vshrl.u32 %v3652, 7
    %v3654 = vsub.s32 %v3651, %v3653
    %v3655 = vrot.slane %v3500, %v3654
    %v3657 = vunpack.c.l.s4 1983009808
    %v3658 = vunpack.c.0.s8 %v3657
    %v3659 = vlaneseq
    %v3660 = vshrl.u32 %v3659, 7
    %v3661 = vsub.s32 %v3658, %v3660
    %v3662 = vrot.slane %v3648, %v3661
    %v3663 = vcombine.high %v3655, 0.0
    %v3665 = vunpack.c.l.s4 1934713408
    %v3666 = vunpack.c.0.s8 %v3665
    %v3667 = vlaneseq
    %v3668 = vshrl.u32 %v3667, 7
    %v3669 = vsub.s32 %v3666, %v3668
    %v3670 = vrot.slane %v3655, %v3669
    %v3672 = vunpack.c.l.s4 1934713408
    %v3673 = vunpack.c.0.s8 %v3672
    %v3674 = vlaneseq
    %v3675 = vshrl.u32 %v3674, 7
    %v3676 = vsub.s32 %v3673, %v3675
    %v3677 = vrot.slane %v3663, %v3676
    %v3678 = vcombine.high %v3662, 0.0
    %v3680 = vunpack.c.l.s4 1934713408
    %v3681 = vunpack.c.0.s8 %v3680
    %v3682 = vlaneseq
    %v3683 = vshrl.u32 %v3682, 7
    %v3684 = vsub.s32 %v3681, %v3683
    %v3685 = vrot.slane %v3662, %v3684
    %v3687 = vunpack.c.l.s4 1934713408
    %v3688 = vunpack.c.0.s8 %v3687
    %v3689 = vlaneseq
    %v3690 = vshrl.u32 %v3689, 7
    %v3691 = vsub.s32 %v3688, %v3690
    %v3692 = vrot.slane %v3678, %v3691
    %v3693 = vcombine.high %v3670, 0.0
    %v3694 = vcombine.high %v3677, 0.0
    %v3695 = vcombine.high %v3685, 0.0
    %v3696 = vcombine.high %v3692, 0.0
    %3699 = vrot.lane.b32.xlu0 %v3546, 16
    %v3700 = vpop.permute.xlu0 %3699
    %3701 = vrot.lane.b32.xlu0 %v3644, 16
    %v3702 = vpop.permute.xlu0 %3701
    %3707 = vrot.lane.b32.xlu0 %v3530, 32
    %v3708 = vpop.permute.xlu0 %3707
    %3709 = vrot.lane.b32.xlu0 %v3628, 32
    %v3710 = vpop.permute.xlu0 %3709
    %3715 = vrot.lane.b32.xlu0 %v3547, 48
    %v3716 = vpop.permute.xlu0 %3715
    %3717 = vrot.lane.b32.xlu0 %v3645, 48
    %v3718 = vpop.permute.xlu0 %3717
    %3723 = vrot.lane.b32.xlu0 %v3538, 64
    %v3724 = vpop.permute.xlu0 %3723
    %3725 = vrot.lane.b32.xlu0 %v3636, 64
    %v3726 = vpop.permute.xlu0 %3725
    %3731 = vrot.lane.b32.xlu0 %v3548, 80
    %v3732 = vpop.permute.xlu0 %3731
    %3733 = vrot.lane.b32.xlu0 %v3646, 80
    %v3734 = vpop.permute.xlu0 %3733
    %3739 = vrot.lane.b32.xlu0 %v3545, 96
    %v3740 = vpop.permute.xlu0 %3739
    %3741 = vrot.lane.b32.xlu0 %v3643, 96
    %v3742 = vpop.permute.xlu0 %3741
    %3747 = vrot.lane.b32.xlu0 %v3549, 112
    %v3748 = vpop.permute.xlu0 %3747
    %3749 = vrot.lane.b32.xlu0 %v3647, 112
    %v3750 = vpop.permute.xlu0 %3749
    %3755 = vrot.lane.b32.xlu0 %v3595, 16
    %v3756 = vpop.permute.xlu0 %3755
    %3757 = vrot.lane.b32.xlu0 %v3693, 16
    %v3758 = vpop.permute.xlu0 %3757
    %3763 = vrot.lane.b32.xlu0 %v3579, 32
    %v3764 = vpop.permute.xlu0 %3763
    %3765 = vrot.lane.b32.xlu0 %v3677, 32
    %v3766 = vpop.permute.xlu0 %3765
    %3771 = vrot.lane.b32.xlu0 %v3596, 48
    %v3772 = vpop.permute.xlu0 %3771
    %3773 = vrot.lane.b32.xlu0 %v3694, 48
    %v3774 = vpop.permute.xlu0 %3773
    %3779 = vrot.lane.b32.xlu0 %v3587, 64
    %v3780 = vpop.permute.xlu0 %3779
    %3781 = vrot.lane.b32.xlu0 %v3685, 64
    %v3782 = vpop.permute.xlu0 %3781
    %3787 = vrot.lane.b32.xlu0 %v3597, 80
    %v3788 = vpop.permute.xlu0 %3787
    %3789 = vrot.lane.b32.xlu0 %v3695, 80
    %v3790 = vpop.permute.xlu0 %3789
    %3795 = vrot.lane.b32.xlu0 %v3594, 96
    %v3796 = vpop.permute.xlu0 %3795
    %3797 = vrot.lane.b32.xlu0 %v3692, 96
    %v3798 = vpop.permute.xlu0 %3797
    %3803 = vrot.lane.b32.xlu0 %v3598, 112
    %v3804 = vpop.permute.xlu0 %3803
    %3805 = vrot.lane.b32.xlu0 %v3696, 112
    %v3806 = vpop.permute.xlu0 %3805
    %v3809 = vsel %vm3414, %v3523, %v3700
    %v3810 = vsel %vm3414, %v3621, %v3702
    %v3811 = vsel %vm258, %v3809, %v3708
    %v3812 = vsel %vm258, %v3810, %v3710
    %vm3813 = vcmask 392192
    %v3814 = vsel %vm3813, %v3811, %v3716
    %v3815 = vsel %vm3813, %v3812, %v3718
    %vm3816 = vcmask 523264
    %v3817 = vsel %vm3816, %v3814, %v3724
    %v3818 = vsel %vm3816, %v3815, %v3726
    %vm3819 = vcmask 654336
    %v3820 = vsel %vm3819, %v3817, %v3732
    %v3821 = vsel %vm3819, %v3818, %v3734
    %vm3822 = vcmask 785408
    %v3823 = vsel %vm3822, %v3820, %v3740
    %v3824 = vsel %vm3822, %v3821, %v3742
    %vm3825 = vcmask 916480
    %v3826 = vsel %vm3825, %v3823, %v3748
    %v3827 = vsel %vm3825, %v3824, %v3750
    %v3828 = vsel %vm3414, %v3572, %v3756
    %v3829 = vsel %vm3414, %v3670, %v3758
    %v3830 = vsel %vm258, %v3828, %v3764
    %v3831 = vsel %vm258, %v3829, %v3766
    %v3832 = vsel %vm3813, %v3830, %v3772
    %v3833 = vsel %vm3813, %v3831, %v3774
    %v3834 = vsel %vm3816, %v3832, %v3780
    %v3835 = vsel %vm3816, %v3833, %v3782
    %v3836 = vsel %vm3819, %v3834, %v3788
    %v3837 = vsel %vm3819, %v3835, %v3790
    %v3838 = vsel %vm3822, %v3836, %v3796
    %v3839 = vsel %vm3822, %v3837, %v3798
    %v3840 = vsel %vm3825, %v3838, %v3804
    %v3841 = vsel %vm3825, %v3839, %v3806
    %v3842 = vlaneseq
    %v3843 = vshrl.u32 %v3842, 7
    %v3844 = vsub.s32 0, %v3843
    %v3845 = vrot.slane %v3826, %v3844
    %v3846 = vlaneseq
    %v3847 = vshrl.u32 %v3846, 7
    %v3848 = vsub.s32 0, %v3847
    %v3849 = vrot.slane %v3840, %v3848
    %v3850 = vlaneseq
    %v3851 = vshrl.u32 %v3850, 7
    %v3852 = vsub.s32 0, %v3851
    %v3853 = vrot.slane %v3827, %v3852
    %v3854 = vlaneseq
    %v3855 = vshrl.u32 %v3854, 7
    %v3856 = vsub.s32 0, %v3855
    %v3857 = vrot.slane %v3841, %v3856
    %v3858 = vmul.f32 %v466, %v3845
    %v3859 = vmul.f32 %v467, %v3849
    %v3860 = vmul.f32 %v468, %v3845
    %v3861 = vmul.f32 %v469, %v3849
    %v3862 = vmul.f32 %v470, %v3845
    %v3863 = vmul.f32 %v471, %v3849
    %v3864 = vmul.f32 %v472, %v3845
    %v3865 = vmul.f32 %v473, %v3849
    %v3866 = vmul.f32 %v474, %v3853
    %v3867 = vmul.f32 %v475, %v3857
    %v3868 = vmul.f32 %v476, %v3853
    %v3869 = vmul.f32 %v477, %v3857
    %v3870 = vmul.f32 %v478, %v3853
    %v3871 = vmul.f32 %v479, %v3857
    %v3872 = vmul.f32 %v480, %v3853
    %v3873 = vmul.f32 %v481, %v3857
    %3874 = vst [vmem:[#allocation10] sm:$0xff] %v3858
    %3875 = vst [vmem:[#allocation10 + $0x8] sm:$0xff] %v3859
    %3876 = vst [vmem:[#allocation10 + $0x10] sm:$0xff] %v3860
    %3877 = vst [vmem:[#allocation10 + $0x18] sm:$0xff] %v3861
    %3878 = vst [vmem:[#allocation10 + $0x20] sm:$0xff] %v3862
    %3879 = vst [vmem:[#allocation10 + $0x28] sm:$0xff] %v3863
    %3880 = vst [vmem:[#allocation10 + $0x30] sm:$0xff] %v3864
    %3881 = vst [vmem:[#allocation10 + $0x38] sm:$0xff] %v3865
    %3882 = vst [vmem:[#allocation10 + $0x40] sm:$0xff] %v3866
    %3883 = vst [vmem:[#allocation10 + $0x48] sm:$0xff] %v3867
    %3884 = vst [vmem:[#allocation10 + $0x50] sm:$0xff] %v3868
    %3885 = vst [vmem:[#allocation10 + $0x58] sm:$0xff] %v3869
    %3886 = vst [vmem:[#allocation10 + $0x60] sm:$0xff] %v3870
    %3887 = vst [vmem:[#allocation10 + $0x68] sm:$0xff] %v3871
    %3888 = vst [vmem:[#allocation10 + $0x70] sm:$0xff] %v3872
    %3889 = vst [vmem:[#allocation10 + $0x78] sm:$0xff] %v3873
    // Predicated region
    $region42: #{tpu_custom_call.1} parent=1 // pred_check
      _
    $region43: #{tpu_custom_call.1} parent=1 // pred_check_branch
      %3891 = sbr.rel (0) target = $region45
    $region44: #{tpu_custom_call.1} parent=1 // pred_region
      %s3893 = ssub.s32 2048, 2048
      %3894 = vsyncadd [#allocation5], %s3893
      %s3895 = sshll.u32 [#allocation10], 4
      %s3896 = int_to_ptr.vmem [resolvable:$true] %s3895
      %3901 = dma.vmem_to_hbm [thread:$0]  %s3896, 2048, %s7, [#allocation5], 256, 256, 16
    $region45: #{tpu_custom_call.1} parent=1 // pred_fallthru
      _
    // Predicated region
    $region46: #{tpu_custom_call.1} parent=1 // pred_check
      _
    $region47: #{tpu_custom_call.1} parent=1 // pred_check_branch
      %3903 = sbr.rel (0) target = $region49
    $region48: #{tpu_custom_call.1} parent=1 // pred_region
      %3904 = dma.done [#allocation5], 2048
    $region49: #{tpu_custom_call.1} parent=1 // pred_fallthru
      _
    %3905 = vsyncpa [#allocation4], 1
    %3906 = vsyncpa [#allocation5], 1
    %3907 = vsyncpa [#allocation6], 1
    %3908 = vsyncpa [#allocation9], 1

</llo_original>
